<compile_context>
chip_gen: v7x
topology: tpu7x:2x2x1
jax: 0.10.0
libtpu: 0.0.40
codegen_flags: <defaults>
</compile_context>

<pallas_src>
import functools

import jax
import jax.numpy as jnp
from jax.experimental import pallas as pl
from jax.experimental.pallas import tpu as pltpu


def _round_up(x, m):
    return ((x + m - 1) // m) * m


def _vmem_budget():
    """Per-generation VMEM sizing (v5e/v6e: 128 MiB, v7x: 64 MiB per core)."""
    try:
        cap = int(pltpu.get_tpu_info().vmem_capacity_bytes)
    except Exception:  # conservative fallback (safe on every generation)
        cap = 64 * 1024 * 1024
    budget = int(cap * 0.60)
    limit = int(min(cap * 0.75, cap - 8 * 1024 * 1024))
    return budget, limit


# ---------------------------------------------------------------------------
# Pallas kernel: implicit-GEMM conv over a flattened zero-padded canvas.
#   out[m] = relu( sum_t x[m + d_t] @ W_t + bias
#                  [+ xs[m] @ Ws] [+ res[m]] ) * mask[m]
# ---------------------------------------------------------------------------
def _conv_taps_kernel(*refs, tap_offsets, tm, has_shortcut, has_residual,
                      has_mask, apply_relu):
    it = iter(refs)
    a0_ref = next(it)                 # canvas rows [i*tm, (i+1)*tm)      bf16
    a1_ref = next(it)                 # canvas rows [(i+1)*tm, (i+2)*tm)  bf16
    w_ref = next(it)                  # [T, Cin_p, tn] BN-folded weights  bf16
    b_ref = next(it)                  # [1, tn] folded BN bias            f32
    s_ref = next(it) if has_shortcut else None
    sw_ref = next(it) if has_shortcut else None
    r_ref = next(it) if has_residual else None
    m_ref = next(it) if has_mask else None
    o_ref = next(it)
    xbuf = next(it)                   # VMEM scratch [2*tm, Cin_p]        bf16

    # Stage the two consecutive row blocks so every tap offset d (0 <= d <= tm)
    # becomes a static slice of one contiguous VMEM buffer.
    xbuf[0:tm, :] = a0_ref[...]
    xbuf[tm:2 * tm, :] = a1_ref[...]

    acc = jnp.zeros(o_ref.shape, jnp.float32)
    for t, d in enumerate(tap_offsets):
        acc += jnp.dot(xbuf[d:d + tm, :], w_ref[t],
                       preferred_element_type=jnp.float32)
    acc += b_ref[...]
    if s_ref is not None:             # fused 1x1 projection shortcut
        acc += jnp.dot(s_ref[...], sw_ref[...],
                       preferred_element_type=jnp.float32)
    if r_ref is not None:             # identity shortcut (bf16, upcast here)
        acc += r_ref[...].astype(jnp.float32)
    if apply_relu:
        acc = jnp.maximum(acc, 0.0)
    if m_ref is not None:             # zero canvas-border rows
        acc = acc * m_ref[...]
    o_ref[...] = acc.astype(o_ref.dtype)


def conv_taps(x_flat, w_taps, bias, tap_offsets, *, shortcut=None,
              shortcut_w=None, residual=None, mask=None,
              out_dtype=jnp.bfloat16, apply_relu=True, tm_target=1024):
    """Implicit-GEMM convolution over a flattened canvas.

    x_flat:   [M, Cin]       flattened zero-padded input canvas
    w_taps:   [T, Cin, Cout] per-tap (BN-folded) weights
    bias:     [Cout]
    tap_offsets: static row offsets d_t >= 0 (max(d) <= chosen row tile)
    shortcut/shortcut_w: optional [M, Cs] / [Cs, Cout] fused 1x1 projection
    residual: optional [M, Cout] identity shortcut
    mask:     optional [M] row mask (1 = keep, 0 = zero)
    Returns the row/channel padded output [Mp, Cout_p].
    """
    M, Cin = x_flat.shape
    T, Cin2, Cout = w_taps.shape
    assert Cin == Cin2 and T == len(tap_offsets)
    max_d = int(max(tap_offsets))

    Cin_p = _round_up(Cin, 128)
    Cout_p = _round_up(Cout, 128)
    Cs_p = _round_up(shortcut.shape[1], 128) if shortcut is not None else 0

    budget, vmem_limit = _vmem_budget()
    tn = Cout_p                       # whole BN-folded weight stays resident
    out_bytes = 4 if out_dtype == jnp.float32 else 2

    def vmem_bytes(t):
        b = 2 * 2 * t * Cin_p * 2          # two bf16 input blocks, dbl-buffered
        b += 2 * T * Cin_p * tn * 2        # resident tap weights
        b += 2 * tn * 4                    # bias
        b += 2 * t * tn * out_bytes        # output tile
        b += 2 * t * Cin_p * 2             # staging scratch
        b += t * Cin_p * 2 + t * tn * 4    # live patch + f32 accumulator
        if shortcut is not None:
            b += 2 * t * Cs_p * 2 + 2 * Cs_p * tn * 2
        if residual is not None:
            b += 2 * t * tn * 2
        if mask is not None:
            b += 2 * t * 4
        return b

    # Row tile: multiple of 8, >= max tap offset, prefer a divisor of M8 (no
    # trailing junk rows), prefer >= 2 row blocks (v7x megacore), fit budget.
    M8 = _round_up(M, 8)
    min_tm = _round_up(max(max_d, 8), 8)
    cap = min(tm_target, M8)
    if M8 >= 2 * min_tm:
        cap = min(cap, M8 // 2)
    cap = max((cap // 8) * 8, min_tm)

    tm = None
    t = min_tm
    while t <= cap:
        if M8 % t == 0 and vmem_bytes(t) <= budget:
            tm = t
        t += 8
    if tm is None:
        tm = min_tm
        t = min_tm
        while t <= cap:
            if vmem_bytes(t) <= budget:
                tm = t
            t += 8
    Mp = _round_up(M8, tm)

    xb = jnp.pad(x_flat.astype(jnp.bfloat16),
                 ((0, Mp + tm - M), (0, Cin_p - Cin)))      # +tm: block i+1
    wb = jnp.pad(w_taps.astype(jnp.bfloat16),
                 ((0, 0), (0, Cin_p - Cin), (0, Cout_p - Cout)))
    bb = jnp.pad(bias.reshape(1, Cout).astype(jnp.float32),
                 ((0, 0), (0, Cout_p - Cout)))

    in_specs = [
        pl.BlockSpec((tm, Cin_p), lambda i, j: (i, 0)),
        pl.BlockSpec((tm, Cin_p), lambda i, j: (i + 1, 0)),
        pl.BlockSpec((T, Cin_p, tn), lambda i, j: (0, 0, j)),
        pl.BlockSpec((1, tn), lambda i, j: (0, j)),
    ]
    args = [xb, xb, wb, bb]

    if shortcut is not None:
        Cs = shortcut.shape[1]
        sb = jnp.pad(shortcut.astype(jnp.bfloat16),
                     ((0, Mp - M), (0, Cs_p - Cs)))
        swb = jnp.pad(shortcut_w.astype(jnp.bfloat16),
                      ((0, Cs_p - Cs), (0, Cout_p - Cout)))
        in_specs += [pl.BlockSpec((tm, Cs_p), lambda i, j: (i, 0)),
                     pl.BlockSpec((Cs_p, tn), lambda i, j: (0, j))]
        args += [sb, swb]
    if residual is not None:
        rb = jnp.pad(residual.astype(jnp.bfloat16),
                     ((0, Mp - M), (0, Cout_p - residual.shape[1])))
        in_specs.append(pl.BlockSpec((tm, tn), lambda i, j: (i, j)))
        args.append(rb)
    if mask is not None:
        mb = jnp.pad(mask.astype(jnp.float32).reshape(M, 1),
                     ((0, Mp - M), (0, 0)))
        in_specs.append(pl.BlockSpec((tm, 1), lambda i, j: (i, 0)))
        args.append(mb)

    kernel = functools.partial(
        _conv_taps_kernel,
        tap_offsets=tuple(int(d) for d in tap_offsets), tm=tm,
        has_shortcut=shortcut is not None, has_residual=residual is not None,
        has_mask=mask is not None, apply_relu=apply_relu)

    out = pl.pallas_call(
        kernel,
        out_shape=jax.ShapeDtypeStruct((Mp, Cout_p), out_dtype),
        grid_spec=pltpu.PrefetchScalarGridSpec(
            num_scalar_prefetch=0,
            grid=(Mp // tm, Cout_p // tn),
            in_specs=in_specs,
            out_specs=pl.BlockSpec((tm, tn), lambda i, j: (i, j)),
            scratch_shapes=[pltpu.VMEM((2 * tm, Cin_p), jnp.bfloat16)],
        ),
        compiler_params=pltpu.CompilerParams(
            dimension_semantics=("parallel", "parallel"),
            vmem_limit_bytes=vmem_limit,
        ),
    )(*args)
    return out


# ---------------------------------------------------------------------------
# JAX glue: BN folding, canvas construction, block orchestration
# ---------------------------------------------------------------------------
def fold_bn(gamma, beta, mean, var, eps=1e-5):
    scale = gamma / jnp.sqrt(var + eps)
    return scale, beta - mean * scale


def _canvas_mask(N, Hc, Wc, Ho, Wo):
    m = jnp.zeros((Hc, Wc), jnp.float32).at[:Ho, :Wo].set(1.0)
    return jnp.tile(m.reshape(1, Hc * Wc), (N, 1)).reshape(N * Hc * Wc)


def basic_block_forward(x_nchw, params, stride):
    # TODO(synk): eval-mode BatchNorm only; training-mode batch statistics are
    #             not reproduced.
    assert stride in (1, 2), "ResNet BasicBlock uses stride 1 or 2"
    x = jnp.transpose(x_nchw, (0, 2, 3, 1))                   # NHWC
    N, H, W, Cin = x.shape
    w1 = params["conv1_w"]                                    # [Cout, Cin, 3, 3]
    Cout = w1.shape[0]
    Ho = (H + 2 - 3) // stride + 1
    Wo = (W + 2 - 3) // stride + 1
    Hc, Wc = Ho + 2, Wo + 2                                    # output canvas
    M_canvas = N * Hc * Wc

    xb = x.astype(jnp.bfloat16)
    s1, b1 = fold_bn(params["bn1_gamma"], params["bn1_beta"],
                     params["bn1_mean"], params["bn1_var"])
    s2, b2 = fold_bn(params["bn2_gamma"], params["bn2_beta"],
                     params["bn2_mean"], params["bn2_var"])

    # ---- stage 1: conv3x3(stride) -> BN1 -> ReLU (implicit GEMM) ----------
    if stride == 1:
        # Input canvas: image at (1,1) inside an (H+2, W+2) zero ring.
        x1_flat = jnp.pad(xb, ((0, 0), (1, 1), (1, 1), (0, 0))
                          ).reshape(M_canvas, Cin)
        w1_taps = jnp.transpose(w1, (2, 3, 1, 0)).reshape(9, Cin, Cout)
        taps1 = tuple(kh * Wc + kw for kh in range(3) for kw in range(3))
    else:
        # Space-to-depth: 3x3/stride-2 conv == 2x2/stride-1 conv over the
        # 2x2-blocked input (4*Cin channels) with rearranged, partly-zero
        # weights -> same implicit-GEMM kernel, no im2col.
        Hp = _round_up(H + 2, 2)
        Wp = _round_up(W + 2, 2)
        xp = jnp.pad(xb, ((0, 0), (1, Hp - H - 1), (1, Wp - W - 1), (0, 0)))
        xd = xp.reshape(N, Hp // 2, 2, Wp // 2, 2, Cin)
        xd = jnp.transpose(xd, (0, 1, 3, 2, 4, 5)
                           ).reshape(N, Hp // 2, Wp // 2, 4 * Cin)
        x1_flat = jnp.pad(
            xd, ((0, 0), (0, Hc - Hp // 2), (0, Wc - Wp // 2), (0, 0))
        ).reshape(M_canvas, 4 * Cin)
        wt = jnp.transpose(w1, (2, 3, 1, 0))                  # [3,3,Cin,Cout]
        wt = jnp.pad(wt, ((0, 1), (0, 1), (0, 0), (0, 0)))    # kh/kw==3 -> 0
        wt = wt.reshape(2, 2, 2, 2, Cin, Cout)                # (da,p,db,q,ci,co)
        w1_taps = jnp.transpose(wt, (0, 2, 1, 3, 4, 5)
                                ).reshape(4, 4 * Cin, Cout)
        taps1 = tuple(da * Wc + db for da in range(2) for db in range(2))
    w1_taps = w1_taps * s1[None, None, :]
    mask1 = _canvas_mask(N, Hc, Wc, Ho, Wo)
    y1 = conv_taps(x1_flat, w1_taps, b1, taps1, mask=mask1,
                   out_dtype=jnp.bfloat16, apply_relu=True)[:M_canvas]
    Cout_p = y1.shape[1]

    # ---- stage 2: conv3x3(1) -> BN2 (+ shortcut) -> ReLU ------------------
    # Shift the stage-1 canvas (image at (0,0), zero borders) down/right by one
    # pixel so the image sits at (1,1): it *is* conv2's zero-padded input.
    x2_flat = jnp.concatenate(
        [jnp.zeros((Wc + 1, Cout_p), jnp.bfloat16),
         y1[:M_canvas - (Wc + 1)]], axis=0)
    w2_taps = jnp.transpose(params["conv2_w"], (2, 3, 1, 0)
                            ).reshape(9, Cout, Cout)
    w2_taps = jnp.pad(w2_taps, ((0, 0), (0, Cout_p - Cout), (0, 0))) \
        * s2[None, None, :]
    taps2 = tuple(kh * Wc + kw for kh in range(3) for kw in range(3))

    if stride != 1 or Cin != Cout:
        # Projection shortcut (1x1 stride-s conv + BN) fused into the conv2
        # kernel as a second dot on the same output tile.
        ss, bs = fold_bn(params["bns_gamma"], params["bns_beta"],
                         params["bns_mean"], params["bns_var"])
        ws = jnp.transpose(params["convs_w"], (2, 3, 1, 0)
                           ).reshape(Cin, Cout) * ss[None, :]
        xs = xb[:, ::stride, ::stride, :][:, :Ho, :Wo, :]
        xs_flat = jnp.pad(xs, ((0, 0), (0, 2), (0, 2), (0, 0))
                          ).reshape(M_canvas, Cin)
        out = conv_taps(x2_flat, w2_taps, b2 + bs, taps2,
                        shortcut=xs_flat, shortcut_w=ws,
                        out_dtype=jnp.float32, apply_relu=True)
    else:
        # Identity shortcut streamed in bf16, upcast inside the kernel.
        res_flat = jnp.pad(xb, ((0, 0), (0, 2), (0, 2), (0, 0))
                           ).reshape(M_canvas, Cin)
        out = conv_taps(x2_flat, w2_taps, b2, taps2, residual=res_flat,
                        out_dtype=jnp.float32, apply_relu=True)

    out = out[:M_canvas].reshape(N, Hc, Wc, -1)[:, :Ho, :Wo, :Cout]
    return jnp.transpose(out, (0, 3, 1, 2))                   # back to NCHW


# ---------------------------------------------------------------------------
# Pure-JAX reference (eval-mode BN) for correctness check
# ---------------------------------------------------------------------------
def reference_forward(x, params, stride, eps=1e-5):
    def conv(a, w, s, pad):
        return jax.lax.conv_general_dilated(
            a, w, (s, s), [(pad, pad), (pad, pad)],
            dimension_numbers=("NCHW", "OIHW", "NCHW"))

    def bn(a, g, b, m, v):
        sh = (1, -1, 1, 1)
        return (a - m.reshape(sh)) / jnp.sqrt(v + eps).reshape(sh) \
               * g.reshape(sh) + b.reshape(sh)

    y = conv(x, params["conv1_w"], stride, 1)
    y = jnp.maximum(bn(y, params["bn1_gamma"], params["bn1_beta"],
                       params["bn1_mean"], params["bn1_var"]), 0.0)
    y = conv(y, params["conv2_w"], 1, 1)
    y = bn(y, params["bn2_gamma"], params["bn2_beta"],
           params["bn2_mean"], params["bn2_var"])
    cin, cout = x.shape[1], params["conv1_w"].shape[0]
    if stride != 1 or cin != cout:
        s = conv(x, params["convs_w"], stride, 0)
        s = bn(s, params["bns_gamma"], params["bns_beta"],
               params["bns_mean"], params["bns_var"])
    else:
        s = x
    return jnp.maximum(y + s, 0.0)


# ---------------------------------------------------------------------------
def make_params(key, cin, cout, need_shortcut):
    ks = jax.random.split(key, 8)
    p = {
        "conv1_w": 0.1 * jax.random.normal(ks[0], (cout, cin, 3, 3), jnp.float32),
        "bn1_gamma": 0.5 + jax.random.uniform(ks[1], (cout,), jnp.float32),
        "bn1_beta": 0.1 * jax.random.normal(ks[2], (cout,), jnp.float32),
        "bn1_mean": 0.1 * jax.random.normal(ks[3], (cout,), jnp.float32),
        "bn1_var": 0.5 + jax.random.uniform(ks[4], (cout,), jnp.float32),
        "conv2_w": 0.1 * jax.random.normal(ks[5], (cout, cout, 3, 3), jnp.float32),
        "bn2_gamma": 0.5 + jax.random.uniform(ks[6], (cout,), jnp.float32),
        "bn2_beta": 0.1 * jax.random.normal(ks[7], (cout,), jnp.float32),
        "bn2_mean": jnp.linspace(-0.1, 0.1, cout, dtype=jnp.float32),
        "bn2_var": jnp.linspace(0.8, 1.2, cout, dtype=jnp.float32),
    }
    if need_shortcut:
        ks2 = jax.random.split(ks[0], 3)
        p["convs_w"] = 0.1 * jax.random.normal(ks2[0], (cout, cin, 1, 1), jnp.float32)
        p["bns_gamma"] = 0.5 + jax.random.uniform(ks2[1], (cout,), jnp.float32)
        p["bns_beta"] = 0.1 * jax.random.normal(ks2[2], (cout,), jnp.float32)
        p["bns_mean"] = jnp.linspace(-0.05, 0.05, cout, dtype=jnp.float32)
        p["bns_var"] = jnp.linspace(0.9, 1.1, cout, dtype=jnp.float32)
    return p


def _check_case(key, N, Cin, H, W, Cout, stride, tag):
    kx, kp = jax.random.split(key)
    x = jax.random.normal(kx, (N, Cin, H, W), jnp.float32)
    need_sc = (stride != 1 or Cin != Cout)
    params = make_params(kp, Cin, Cout, need_shortcut=need_sc)

    fwd = jax.jit(functools.partial(basic_block_forward, stride=stride))
    out = jax.block_until_ready(fwd(x, params))
    ref = reference_forward(x, params, stride)

    Ho = (H + 2 - 3) // stride + 1
    assert out.shape == ref.shape == (N, Cout, Ho, Ho)
    err = float(jnp.max(jnp.abs(out - ref)))
    # bf16 MXU inputs / bf16 y1 canvas (f32 accumulation) -> loose tolerance.
    assert jnp.allclose(out, ref, atol=5e-2, rtol=5e-2), \
        f"[{tag}] max abs err = {err}"


if __name__ == "__main__":
    key = jax.random.PRNGKey(0)
    k1, k2 = jax.random.split(key)

    # Case 1: BasicBlock(in=4, out=8, stride=2) -> space-to-depth conv1 +
    # projection shortcut fused into the conv2 kernel.
    _check_case(k1, N=2, Cin=4, H=16, W=16, Cout=8, stride=2, tag="proj")

    # Case 2: BasicBlock(in=8, out=8, stride=1) -> identity shortcut streamed
    # as a fused bf16 residual input.
    _check_case(k2, N=2, Cin=8, H=16, W=16, Cout=8, stride=1, tag="identity")

    print("KERNEL_OK")
</pallas_src>

<mosaic_0001>
module attributes {stable_mosaic.version = 11 : i64} {
  func.func @_conv_taps_kernel(%arg0: i32, %arg1: i32, %arg2: memref<40x128xbf16, #tpu.memory_space<vmem>>, %arg3: memref<40x128xbf16, #tpu.memory_space<vmem>>, %arg4: memref<4x128x128xbf16, #tpu.memory_space<vmem>>, %arg5: memref<1x128xf32, #tpu.memory_space<vmem>>, %arg6: memref<40x1xf32, #tpu.memory_space<vmem>>, %arg7: memref<40x128xbf16, #tpu.memory_space<vmem>>, %arg8: memref<80x128xbf16, #tpu.memory_space<vmem>>) attributes {dimension_semantics = [#tpu.dimension_semantics<parallel>, #tpu.dimension_semantics<parallel>], iteration_bounds = array<i64: 5, 1>, scalar_prefetch = 0 : i64, scratch_operands = 1 : i64, tpu.core_type = #tpu.core_type<tc>, window_params = [{transform_indices = @transform_0, window_bounds = array<i64: 40, 128>}, {transform_indices = @transform_1, window_bounds = array<i64: 40, 128>}, {transform_indices = @transform_2, window_bounds = array<i64: 4, 128, 128>}, {transform_indices = @transform_3, window_bounds = array<i64: 1, 128>}, {transform_indices = @transform_4, window_bounds = array<i64: 40, 1>}, {transform_indices = @transform_5, window_bounds = array<i64: 40, 128>}]} {
    %c0 = arith.constant 0 : index
    %c0_0 = arith.constant 0 : index
    %0 = vector.load %arg2[%c0, %c0_0] : memref<40x128xbf16, #tpu.memory_space<vmem>>, vector<40x128xbf16>
    %c0_1 = arith.constant 0 : index
    %c0_2 = arith.constant 0 : index
    %1 = vector.load %arg8[%c0_1, %c0_2] : memref<80x128xbf16, #tpu.memory_space<vmem>>, vector<40x128xbf16>
    tpu.vector_store %arg8[%c0_1, %c0_2], %0 {strides = array<i32>} : memref<80x128xbf16, #tpu.memory_space<vmem>>, vector<40x128xbf16>,
    %c0_3 = arith.constant 0 : index
    %c0_4 = arith.constant 0 : index
    %2 = vector.load %arg3[%c0_3, %c0_4] : memref<40x128xbf16, #tpu.memory_space<vmem>>, vector<40x128xbf16>
    %c40 = arith.constant 40 : index
    %c0_5 = arith.constant 0 : index
    %3 = vector.load %arg8[%c40, %c0_5] : memref<80x128xbf16, #tpu.memory_space<vmem>>, vector<40x128xbf16>
    tpu.vector_store %arg8[%c40, %c0_5], %2 {strides = array<i32>} : memref<80x128xbf16, #tpu.memory_space<vmem>>, vector<40x128xbf16>,
    %cst = arith.constant 0.000000e+00 : f32
    %4 = vector.broadcast %cst : f32 to vector<40x128xf32>
    %c0_6 = arith.constant 0 : index
    %c0_7 = arith.constant 0 : index
    %5 = vector.load %arg8[%c0_6, %c0_7] : memref<80x128xbf16, #tpu.memory_space<vmem>>, vector<40x128xbf16>
    %c0_8 = arith.constant 0 : index
    %c0_9 = arith.constant 0 : index
    %c0_10 = arith.constant 0 : index
    %6 = vector.load %arg4[%c0_8, %c0_9, %c0_10] : memref<4x128x128xbf16, #tpu.memory_space<vmem>>, vector<1x128x128xbf16>
    %7 = vector.shape_cast %6 : vector<1x128x128xbf16> to vector<128x128xbf16>
    %cst_11 = arith.constant dense<0.000000e+00> : vector<40x128xf32>
    %8 = tpu.matmul %5, %7, %cst_11 {dimension_numbers = #tpu.dot_dimension_numbers<[1], [0], [0], [1], [0, 0, 1, 1], [], []>} : vector<40x128xbf16>, vector<128x128xbf16>, vector<40x128xf32> -> vector<40x128xf32>
    %9 = arith.addf %4, %8 : vector<40x128xf32>
    %c1 = arith.constant 1 : index
    %c0_12 = arith.constant 0 : index
    %10 = vector.load %arg8[%c1, %c0_12] : memref<80x128xbf16, #tpu.memory_space<vmem>>, vector<40x128xbf16>
    %c1_13 = arith.constant 1 : index
    %c0_14 = arith.constant 0 : index
    %c0_15 = arith.constant 0 : index
    %11 = vector.load %arg4[%c1_13, %c0_14, %c0_15] : memref<4x128x128xbf16, #tpu.memory_space<vmem>>, vector<1x128x128xbf16>
    %12 = vector.shape_cast %11 : vector<1x128x128xbf16> to vector<128x128xbf16>
    %cst_16 = arith.constant dense<0.000000e+00> : vector<40x128xf32>
    %13 = tpu.matmul %10, %12, %cst_16 {dimension_numbers = #tpu.dot_dimension_numbers<[1], [0], [0], [1], [0, 0, 1, 1], [], []>} : vector<40x128xbf16>, vector<128x128xbf16>, vector<40x128xf32> -> vector<40x128xf32>
    %14 = arith.addf %9, %13 : vector<40x128xf32>
    %c10 = arith.constant 10 : index
    %c0_17 = arith.constant 0 : index
    %15 = vector.load %arg8[%c10, %c0_17] : memref<80x128xbf16, #tpu.memory_space<vmem>>, vector<40x128xbf16>
    %c2 = arith.constant 2 : index
    %c0_18 = arith.constant 0 : index
    %c0_19 = arith.constant 0 : index
    %16 = vector.load %arg4[%c2, %c0_18, %c0_19] : memref<4x128x128xbf16, #tpu.memory_space<vmem>>, vector<1x128x128xbf16>
    %17 = vector.shape_cast %16 : vector<1x128x128xbf16> to vector<128x128xbf16>
    %cst_20 = arith.constant dense<0.000000e+00> : vector<40x128xf32>
    %18 = tpu.matmul %15, %17, %cst_20 {dimension_numbers = #tpu.dot_dimension_numbers<[1], [0], [0], [1], [0, 0, 1, 1], [], []>} : vector<40x128xbf16>, vector<128x128xbf16>, vector<40x128xf32> -> vector<40x128xf32>
    %19 = arith.addf %14, %18 : vector<40x128xf32>
    %c11 = arith.constant 11 : index
    %c0_21 = arith.constant 0 : index
    %20 = vector.load %arg8[%c11, %c0_21] : memref<80x128xbf16, #tpu.memory_space<vmem>>, vector<40x128xbf16>
    %c3 = arith.constant 3 : index
    %c0_22 = arith.constant 0 : index
    %c0_23 = arith.constant 0 : index
    %21 = vector.load %arg4[%c3, %c0_22, %c0_23] : memref<4x128x128xbf16, #tpu.memory_space<vmem>>, vector<1x128x128xbf16>
    %22 = vector.shape_cast %21 : vector<1x128x128xbf16> to vector<128x128xbf16>
    %cst_24 = arith.constant dense<0.000000e+00> : vector<40x128xf32>
    %23 = tpu.matmul %20, %22, %cst_24 {dimension_numbers = #tpu.dot_dimension_numbers<[1], [0], [0], [1], [0, 0, 1, 1], [], []>} : vector<40x128xbf16>, vector<128x128xbf16>, vector<40x128xf32> -> vector<40x128xf32>
    %24 = arith.addf %19, %23 : vector<40x128xf32>
    %c0_25 = arith.constant 0 : index
    %c0_26 = arith.constant 0 : index
    %25 = vector.load %arg5[%c0_25, %c0_26] : memref<1x128xf32, #tpu.memory_space<vmem>>, vector<1x128xf32>
    %26 = vector.broadcast %25 : vector<1x128xf32> to vector<40x128xf32>
    %27 = arith.addf %24, %26 : vector<40x128xf32>
    %cst_27 = arith.constant 0.000000e+00 : f32
    %28 = vector.broadcast %cst_27 : f32 to vector<40x128xf32>
    %29 = arith.maximumf %27, %28 : vector<40x128xf32>
    %c0_28 = arith.constant 0 : index
    %c0_29 = arith.constant 0 : index
    %30 = vector.load %arg6[%c0_28, %c0_29] : memref<40x1xf32, #tpu.memory_space<vmem>>, vector<40x1xf32>
    %31 = vector.broadcast %30 : vector<40x1xf32> to vector<40x128xf32>
    %32 = arith.mulf %29, %31 : vector<40x128xf32>
    %33 = arith.truncf %32 : vector<40x128xf32> to vector<40x128xbf16>
    %c0_30 = arith.constant 0 : index
    %c0_31 = arith.constant 0 : index
    %34 = vector.load %arg7[%c0_30, %c0_31] : memref<40x128xbf16, #tpu.memory_space<vmem>>, vector<40x128xbf16>
    tpu.vector_store %arg7[%c0_30, %c0_31], %33 {strides = array<i32>} : memref<40x128xbf16, #tpu.memory_space<vmem>>, vector<40x128xbf16>,
    return
  }
  func.func @transform_0(%arg0: i32, %arg1: i32) -> (i32, i32) {
    %c0_i32 = arith.constant 0 : i32
    %c0_i32_0 = arith.constant 0 : i32
    return %arg0, %c0_i32 : i32, i32
  }
  func.func @transform_1(%arg0: i32, %arg1: i32) -> (i32, i32) {
    %c1_i32 = arith.constant 1 : i32
    %0 = arith.addi %arg0, %c1_i32 : i32
    %c0_i32 = arith.constant 0 : i32
    %c0_i32_0 = arith.constant 0 : i32
    return %0, %c0_i32 : i32, i32
  }
  func.func @transform_2(%arg0: i32, %arg1: i32) -> (i32, i32, i32) {
    %c0_i32 = arith.constant 0 : i32
    %c0_i32_0 = arith.constant 0 : i32
    %c0_i32_1 = arith.constant 0 : i32
    return %c0_i32, %c0_i32_0, %arg1 : i32, i32, i32
  }
  func.func @transform_3(%arg0: i32, %arg1: i32) -> (i32, i32) {
    %c0_i32 = arith.constant 0 : i32
    %c0_i32_0 = arith.constant 0 : i32
    return %c0_i32, %arg1 : i32, i32
  }
  func.func @transform_4(%arg0: i32, %arg1: i32) -> (i32, i32) {
    %c0_i32 = arith.constant 0 : i32
    %c0_i32_0 = arith.constant 0 : i32
    return %arg0, %c0_i32 : i32, i32
  }
  func.func @transform_5(%arg0: i32, %arg1: i32) -> (i32, i32) {
    %c0_i32 = arith.constant 0 : i32
    return %arg0, %arg1 : i32, i32
  }
}

module attributes {stable_mosaic.version = 11 : i64} {
  func.func @_conv_taps_kernel(%arg0: i32, %arg1: i32, %arg2: memref<40x128xbf16, #tpu.memory_space<vmem>>, %arg3: memref<40x128xbf16, #tpu.memory_space<vmem>>, %arg4: memref<9x128x128xbf16, #tpu.memory_space<vmem>>, %arg5: memref<1x128xf32, #tpu.memory_space<vmem>>, %arg6: memref<40x128xbf16, #tpu.memory_space<vmem>>, %arg7: memref<128x128xbf16, #tpu.memory_space<vmem>>, %arg8: memref<40x128xf32, #tpu.memory_space<vmem>>, %arg9: memref<80x128xbf16, #tpu.memory_space<vmem>>) attributes {dimension_semantics = [#tpu.dimension_semantics<parallel>, #tpu.dimension_semantics<parallel>], iteration_bounds = array<i64: 5, 1>, scalar_prefetch = 0 : i64, scratch_operands = 1 : i64, tpu.core_type = #tpu.core_type<tc>, window_params = [{transform_indices = @transform_0, window_bounds = array<i64: 40, 128>}, {transform_indices = @transform_1, window_bounds = array<i64: 40, 128>}, {transform_indices = @transform_2, window_bounds = array<i64: 9, 128, 128>}, {transform_indices = @transform_3, window_bounds = array<i64: 1, 128>}, {transform_indices = @transform_4, window_bounds = array<i64: 40, 128>}, {transform_indices = @transform_5, window_bounds = array<i64: 128, 128>}, {transform_indices = @transform_6, window_bounds = array<i64: 40, 128>}]} {
    %c0 = arith.constant 0 : index
    %c0_0 = arith.constant 0 : index
    %0 = vector.load %arg2[%c0, %c0_0] : memref<40x128xbf16, #tpu.memory_space<vmem>>, vector<40x128xbf16>
    %c0_1 = arith.constant 0 : index
    %c0_2 = arith.constant 0 : index
    %1 = vector.load %arg9[%c0_1, %c0_2] : memref<80x128xbf16, #tpu.memory_space<vmem>>, vector<40x128xbf16>
    tpu.vector_store %arg9[%c0_1, %c0_2], %0 {strides = array<i32>} : memref<80x128xbf16, #tpu.memory_space<vmem>>, vector<40x128xbf16>,
    %c0_3 = arith.constant 0 : index
    %c0_4 = arith.constant 0 : index
    %2 = vector.load %arg3[%c0_3, %c0_4] : memref<40x128xbf16, #tpu.memory_space<vmem>>, vector<40x128xbf16>
    %c40 = arith.constant 40 : index
    %c0_5 = arith.constant 0 : index
    %3 = vector.load %arg9[%c40, %c0_5] : memref<80x128xbf16, #tpu.memory_space<vmem>>, vector<40x128xbf16>
    tpu.vector_store %arg9[%c40, %c0_5], %2 {strides = array<i32>} : memref<80x128xbf16, #tpu.memory_space<vmem>>, vector<40x128xbf16>,
    %cst = arith.constant 0.000000e+00 : f32
    %4 = vector.broadcast %cst : f32 to vector<40x128xf32>
    %c0_6 = arith.constant 0 : index
    %c0_7 = arith.constant 0 : index
    %5 = vector.load %arg9[%c0_6, %c0_7] : memref<80x128xbf16, #tpu.memory_space<vmem>>, vector<40x128xbf16>
    %c0_8 = arith.constant 0 : index
    %c0_9 = arith.constant 0 : index
    %c0_10 = arith.constant 0 : index
    %6 = vector.load %arg4[%c0_8, %c0_9, %c0_10] : memref<9x128x128xbf16, #tpu.memory_space<vmem>>, vector<1x128x128xbf16>
    %7 = vector.shape_cast %6 : vector<1x128x128xbf16> to vector<128x128xbf16>
    %cst_11 = arith.constant dense<0.000000e+00> : vector<40x128xf32>
    %8 = tpu.matmul %5, %7, %cst_11 {dimension_numbers = #tpu.dot_dimension_numbers<[1], [0], [0], [1], [0, 0, 1, 1], [], []>} : vector<40x128xbf16>, vector<128x128xbf16>, vector<40x128xf32> -> vector<40x128xf32>
    %9 = arith.addf %4, %8 : vector<40x128xf32>
    %c1 = arith.constant 1 : index
    %c0_12 = arith.constant 0 : index
    %10 = vector.load %arg9[%c1, %c0_12] : memref<80x128xbf16, #tpu.memory_space<vmem>>, vector<40x128xbf16>
    %c1_13 = arith.constant 1 : index
    %c0_14 = arith.constant 0 : index
    %c0_15 = arith.constant 0 : index
    %11 = vector.load %arg4[%c1_13, %c0_14, %c0_15] : memref<9x128x128xbf16, #tpu.memory_space<vmem>>, vector<1x128x128xbf16>
    %12 = vector.shape_cast %11 : vector<1x128x128xbf16> to vector<128x128xbf16>
    %cst_16 = arith.constant dense<0.000000e+00> : vector<40x128xf32>
    %13 = tpu.matmul %10, %12, %cst_16 {dimension_numbers = #tpu.dot_dimension_numbers<[1], [0], [0], [1], [0, 0, 1, 1], [], []>} : vector<40x128xbf16>, vector<128x128xbf16>, vector<40x128xf32> -> vector<40x128xf32>
    %14 = arith.addf %9, %13 : vector<40x128xf32>
    %c2 = arith.constant 2 : index
    %c0_17 = arith.constant 0 : index
    %15 = vector.load %arg9[%c2, %c0_17] : memref<80x128xbf16, #tpu.memory_space<vmem>>, vector<40x128xbf16>
    %c2_18 = arith.constant 2 : index
    %c0_19 = arith.constant 0 : index
    %c0_20 = arith.constant 0 : index
    %16 = vector.load %arg4[%c2_18, %c0_19, %c0_20] : memref<9x128x128xbf16, #tpu.memory_space<vmem>>, vector<1x128x128xbf16>
    %17 = vector.shape_cast %16 : vector<1x128x128xbf16> to vector<128x128xbf16>
    %cst_21 = arith.constant dense<0.000000e+00> : vector<40x128xf32>
    %18 = tpu.matmul %15, %17, %cst_21 {dimension_numbers = #tpu.dot_dimension_numbers<[1], [0], [0], [1], [0, 0, 1, 1], [], []>} : vector<40x128xbf16>, vector<128x128xbf16>, vector<40x128xf32> -> vector<40x128xf32>
    %19 = arith.addf %14, %18 : vector<40x128xf32>
    %c10 = arith.constant 10 : index
    %c0_22 = arith.constant 0 : index
    %20 = vector.load %arg9[%c10, %c0_22] : memref<80x128xbf16, #tpu.memory_space<vmem>>, vector<40x128xbf16>
    %c3 = arith.constant 3 : index
    %c0_23 = arith.constant 0 : index
    %c0_24 = arith.constant 0 : index
    %21 = vector.load %arg4[%c3, %c0_23, %c0_24] : memref<9x128x128xbf16, #tpu.memory_space<vmem>>, vector<1x128x128xbf16>
    %22 = vector.shape_cast %21 : vector<1x128x128xbf16> to vector<128x128xbf16>
    %cst_25 = arith.constant dense<0.000000e+00> : vector<40x128xf32>
    %23 = tpu.matmul %20, %22, %cst_25 {dimension_numbers = #tpu.dot_dimension_numbers<[1], [0], [0], [1], [0, 0, 1, 1], [], []>} : vector<40x128xbf16>, vector<128x128xbf16>, vector<40x128xf32> -> vector<40x128xf32>
    %24 = arith.addf %19, %23 : vector<40x128xf32>
    %c11 = arith.constant 11 : index
    %c0_26 = arith.constant 0 : index
    %25 = vector.load %arg9[%c11, %c0_26] : memref<80x128xbf16, #tpu.memory_space<vmem>>, vector<40x128xbf16>
    %c4 = arith.constant 4 : index
    %c0_27 = arith.constant 0 : index
    %c0_28 = arith.constant 0 : index
    %26 = vector.load %arg4[%c4, %c0_27, %c0_28] : memref<9x128x128xbf16, #tpu.memory_space<vmem>>, vector<1x128x128xbf16>
    %27 = vector.shape_cast %26 : vector<1x128x128xbf16> to vector<128x128xbf16>
    %cst_29 = arith.constant dense<0.000000e+00> : vector<40x128xf32>
    %28 = tpu.matmul %25, %27, %cst_29 {dimension_numbers = #tpu.dot_dimension_numbers<[1], [0], [0], [1], [0, 0, 1, 1], [], []>} : vector<40x128xbf16>, vector<128x128xbf16>, vector<40x128xf32> -> vector<40x128xf32>
    %29 = arith.addf %24, %28 : vector<40x128xf32>
    %c12 = arith.constant 12 : index
    %c0_30 = arith.constant 0 : index
    %30 = vector.load %arg9[%c12, %c0_30] : memref<80x128xbf16, #tpu.memory_space<vmem>>, vector<40x128xbf16>
    %c5 = arith.constant 5 : index
    %c0_31 = arith.constant 0 : index
    %c0_32 = arith.constant 0 : index
    %31 = vector.load %arg4[%c5, %c0_31, %c0_32] : memref<9x128x128xbf16, #tpu.memory_space<vmem>>, vector<1x128x128xbf16>
    %32 = vector.shape_cast %31 : vector<1x128x128xbf16> to vector<128x128xbf16>
    %cst_33 = arith.constant dense<0.000000e+00> : vector<40x128xf32>
    %33 = tpu.matmul %30, %32, %cst_33 {dimension_numbers = #tpu.dot_dimension_numbers<[1], [0], [0], [1], [0, 0, 1, 1], [], []>} : vector<40x128xbf16>, vector<128x128xbf16>, vector<40x128xf32> -> vector<40x128xf32>
    %34 = arith.addf %29, %33 : vector<40x128xf32>
    %c20 = arith.constant 20 : index
    %c0_34 = arith.constant 0 : index
    %35 = vector.load %arg9[%c20, %c0_34] : memref<80x128xbf16, #tpu.memory_space<vmem>>, vector<40x128xbf16>
    %c6 = arith.constant 6 : index
    %c0_35 = arith.constant 0 : index
    %c0_36 = arith.constant 0 : index
    %36 = vector.load %arg4[%c6, %c0_35, %c0_36] : memref<9x128x128xbf16, #tpu.memory_space<vmem>>, vector<1x128x128xbf16>
    %37 = vector.shape_cast %36 : vector<1x128x128xbf16> to vector<128x128xbf16>
    %cst_37 = arith.constant dense<0.000000e+00> : vector<40x128xf32>
    %38 = tpu.matmul %35, %37, %cst_37 {dimension_numbers = #tpu.dot_dimension_numbers<[1], [0], [0], [1], [0, 0, 1, 1], [], []>} : vector<40x128xbf16>, vector<128x128xbf16>, vector<40x128xf32> -> vector<40x128xf32>
    %39 = arith.addf %34, %38 : vector<40x128xf32>
    %c21 = arith.constant 21 : index
    %c0_38 = arith.constant 0 : index
    %40 = vector.load %arg9[%c21, %c0_38] : memref<80x128xbf16, #tpu.memory_space<vmem>>, vector<40x128xbf16>
    %c7 = arith.constant 7 : index
    %c0_39 = arith.constant 0 : index
    %c0_40 = arith.constant 0 : index
    %41 = vector.load %arg4[%c7, %c0_39, %c0_40] : memref<9x128x128xbf16, #tpu.memory_space<vmem>>, vector<1x128x128xbf16>
    %42 = vector.shape_cast %41 : vector<1x128x128xbf16> to vector<128x128xbf16>
    %cst_41 = arith.constant dense<0.000000e+00> : vector<40x128xf32>
    %43 = tpu.matmul %40, %42, %cst_41 {dimension_numbers = #tpu.dot_dimension_numbers<[1], [0], [0], [1], [0, 0, 1, 1], [], []>} : vector<40x128xbf16>, vector<128x128xbf16>, vector<40x128xf32> -> vector<40x128xf32>
    %44 = arith.addf %39, %43 : vector<40x128xf32>
    %c22 = arith.constant 22 : index
    %c0_42 = arith.constant 0 : index
    %45 = vector.load %arg9[%c22, %c0_42] : memref<80x128xbf16, #tpu.memory_space<vmem>>, vector<40x128xbf16>
    %c8 = arith.constant 8 : index
    %c0_43 = arith.constant 0 : index
    %c0_44 = arith.constant 0 : index
    %46 = vector.load %arg4[%c8, %c0_43, %c0_44] : memref<9x128x128xbf16, #tpu.memory_space<vmem>>, vector<1x128x128xbf16>
    %47 = vector.shape_cast %46 : vector<1x128x128xbf16> to vector<128x128xbf16>
    %cst_45 = arith.constant dense<0.000000e+00> : vector<40x128xf32>
    %48 = tpu.matmul %45, %47, %cst_45 {dimension_numbers = #tpu.dot_dimension_numbers<[1], [0], [0], [1], [0, 0, 1, 1], [], []>} : vector<40x128xbf16>, vector<128x128xbf16>, vector<40x128xf32> -> vector<40x128xf32>
    %49 = arith.addf %44, %48 : vector<40x128xf32>
    %c0_46 = arith.constant 0 : index
    %c0_47 = arith.constant 0 : index
    %50 = vector.load %arg5[%c0_46, %c0_47] : memref<1x128xf32, #tpu.memory_space<vmem>>, vector<1x128xf32>
    %51 = vector.broadcast %50 : vector<1x128xf32> to vector<40x128xf32>
    %52 = arith.addf %49, %51 : vector<40x128xf32>
    %c0_48 = arith.constant 0 : index
    %c0_49 = arith.constant 0 : index
    %53 = vector.load %arg6[%c0_48, %c0_49] : memref<40x128xbf16, #tpu.memory_space<vmem>>, vector<40x128xbf16>
    %c0_50 = arith.constant 0 : index
    %c0_51 = arith.constant 0 : index
    %54 = vector.load %arg7[%c0_50, %c0_51] : memref<128x128xbf16, #tpu.memory_space<vmem>>, vector<128x128xbf16>
    %cst_52 = arith.constant dense<0.000000e+00> : vector<40x128xf32>
    %55 = tpu.matmul %53, %54, %cst_52 {dimension_numbers = #tpu.dot_dimension_numbers<[1], [0], [0], [1], [0, 0, 1, 1], [], []>} : vector<40x128xbf16>, vector<128x128xbf16>, vector<40x128xf32> -> vector<40x128xf32>
    %56 = arith.addf %52, %55 : vector<40x128xf32>
    %cst_53 = arith.constant 0.000000e+00 : f32
    %57 = vector.broadcast %cst_53 : f32 to vector<40x128xf32>
    %58 = arith.maximumf %56, %57 : vector<40x128xf32>
    %c0_54 = arith.constant 0 : index
    %c0_55 = arith.constant 0 : index
    %59 = vector.load %arg8[%c0_54, %c0_55] : memref<40x128xf32, #tpu.memory_space<vmem>>, vector<40x128xf32>
    tpu.vector_store %arg8[%c0_54, %c0_55], %58 {strides = array<i32>} : memref<40x128xf32, #tpu.memory_space<vmem>>, vector<40x128xf32>,
    return
  }
  func.func @transform_0(%arg0: i32, %arg1: i32) -> (i32, i32) {
    %c0_i32 = arith.constant 0 : i32
    %c0_i32_0 = arith.constant 0 : i32
    return %arg0, %c0_i32 : i32, i32
  }
  func.func @transform_1(%arg0: i32, %arg1: i32) -> (i32, i32) {
    %c1_i32 = arith.constant 1 : i32
    %0 = arith.addi %arg0, %c1_i32 : i32
    %c0_i32 = arith.constant 0 : i32
    %c0_i32_0 = arith.constant 0 : i32
    return %0, %c0_i32 : i32, i32
  }
  func.func @transform_2(%arg0: i32, %arg1: i32) -> (i32, i32, i32) {
    %c0_i32 = arith.constant 0 : i32
    %c0_i32_0 = arith.constant 0 : i32
    %c0_i32_1 = arith.constant 0 : i32
    return %c0_i32, %c0_i32_0, %arg1 : i32, i32, i32
  }
  func.func @transform_3(%arg0: i32, %arg1: i32) -> (i32, i32) {
    %c0_i32 = arith.constant 0 : i32
    %c0_i32_0 = arith.constant 0 : i32
    return %c0_i32, %arg1 : i32, i32
  }
  func.func @transform_4(%arg0: i32, %arg1: i32) -> (i32, i32) {
    %c0_i32 = arith.constant 0 : i32
    %c0_i32_0 = arith.constant 0 : i32
    return %arg0, %c0_i32 : i32, i32
  }
  func.func @transform_5(%arg0: i32, %arg1: i32) -> (i32, i32) {
    %c0_i32 = arith.constant 0 : i32
    %c0_i32_0 = arith.constant 0 : i32
    return %c0_i32, %arg1 : i32, i32
  }
  func.func @transform_6(%arg0: i32, %arg1: i32) -> (i32, i32) {
    %c0_i32 = arith.constant 0 : i32
    return %arg0, %arg1 : i32, i32
  }
}

</mosaic_0001>

<llo_original>
// kernel: tile.6
$region0: #{tile.6}
  #allocation0 [shape = 's32[1]{0}', space=sflag, size = 0x4, scoped, tag = 'scoped memory for tile.6']
  %s0 = inlined_call_operand.vmem [shape: f32[100], index: 0, kind: input, shape index: {}]
  %s1 = inlined_call_operand.vmem [shape: f32[2,1,1,100], index: 1, kind: output, shape index: {}]
  // Predicated region
  $region2: #{tile.6} parent=0 // pred_check
    _
  $region3: #{tile.6} parent=0 // pred_check_branch
    %3 = sbr.rel (0) target = $region5
  $region4: #{tile.6} parent=0 // pred_region
    _
  $region5: #{tile.6} parent=0 // pred_fallthru
    _
  %v4 = vld [vmem:[%s0] ss:$0 sm:$0xff]
  %5 = vst [vmem:[%s1] sm:$0x3] %v4

// kernel: tile.0
$region0: #{tile.0}
  %s0 = inlined_call_operand.vmem [shape: f32[2,1,1,100], index: 0, kind: input, shape index: {}]
  %s1 = inlined_call_operand.vmem [shape: f32[200,1], index: 1, kind: output, shape index: {}]
  $region1: #{tile.0} parent=0
    #allocation0 [shape = 'u8[4096]{0}', space=vmem, size = 0x1000, scoped, tag = 'scoped mem for input reshape']
    %s3 = sshllo.u32 0, 2
    %v4 = vld [vmem:[%s0] sm:%s3]
    %5 = vst [vmem:[#allocation0] sm:%s3] %v4
    %v6 = vld [vmem:[#allocation0] sm:$0x3]
    %vm7 = vcmask 7168
    %8 = vst.msk [vmem:[%s1] ss:$100 sm:$0x3] %vm7, %v6
    %v9 = vld [vmem:[#allocation0] sm:$0x3]
    %10 = vrot.lane.b32.xlu0 %v9, 127
    %v11 = vpop.permute.xlu0 %10
    %vm12 = vcmask 7168
    %s13 = scalar_lea.vmem %s1, 1
    %14 = vst.msk [vmem:[%s13] ss:$100 sm:$0x3] %vm12, %v11
    %v15 = vld [vmem:[#allocation0] sm:$0x3]
    %16 = vrot.lane.b32.xlu0 %v15, 126
    %v17 = vpop.permute.xlu0 %16
    %vm18 = vcmask 7168
    %s19 = scalar_lea.vmem %s1, 2
    %20 = vst.msk [vmem:[%s19] ss:$100 sm:$0x3] %vm18, %v17
    %v21 = vld [vmem:[#allocation0] sm:$0x3]
    %22 = vrot.lane.b32.xlu0 %v21, 125
    %v23 = vpop.permute.xlu0 %22
    %vm24 = vcmask 7168
    %s25 = scalar_lea.vmem %s1, 3
    %26 = vst.msk [vmem:[%s25] ss:$100 sm:$0x3] %vm24, %v23
    %v27 = vld [vmem:[#allocation0] sm:$0x3]
    %28 = vrot.lane.b32.xlu0 %v27, 124
    %v29 = vpop.permute.xlu0 %28
    %vm30 = vcmask 7168
    %s31 = scalar_lea.vmem %s1, 4
    %32 = vst.msk [vmem:[%s31] ss:$100 sm:$0x3] %vm30, %v29
    %v33 = vld [vmem:[#allocation0] sm:$0x3]
    %34 = vrot.lane.b32.xlu0 %v33, 123
    %v35 = vpop.permute.xlu0 %34
    %vm36 = vcmask 7168
    %s37 = scalar_lea.vmem %s1, 5
    %38 = vst.msk [vmem:[%s37] ss:$100 sm:$0x3] %vm36, %v35
    %v39 = vld [vmem:[#allocation0] sm:$0x3]
    %40 = vrot.lane.b32.xlu0 %v39, 122
    %v41 = vpop.permute.xlu0 %40
    %vm42 = vcmask 7168
    %s43 = scalar_lea.vmem %s1, 6
    %44 = vst.msk [vmem:[%s43] ss:$100 sm:$0x3] %vm42, %v41
    %v45 = vld [vmem:[#allocation0] sm:$0x3]
    %46 = vrot.lane.b32.xlu0 %v45, 121
    %v47 = vpop.permute.xlu0 %46
    %vm48 = vcmask 7168
    %s49 = scalar_lea.vmem %s1, 7
    %50 = vst.msk [vmem:[%s49] ss:$100 sm:$0x3] %vm48, %v47
    %v51 = vld [vmem:[#allocation0] sm:$0x3]
    %52 = vrot.lane.b32.xlu0 %v51, 120
    %v53 = vpop.permute.xlu0 %52
    %vm54 = vcmask 7168
    %s55 = scalar_lea.vmem %s1, 8
    %56 = vst.msk [vmem:[%s55] ss:$100 sm:$0x3] %vm54, %v53
    %v57 = vld [vmem:[#allocation0] sm:$0x3]
    %58 = vrot.lane.b32.xlu0 %v57, 119
    %v59 = vpop.permute.xlu0 %58
    %vm60 = vcmask 7168
    %s61 = scalar_lea.vmem %s1, 9
    %62 = vst.msk [vmem:[%s61] ss:$100 sm:$0x3] %vm60, %v59
    %v63 = vld [vmem:[#allocation0] sm:$0x3]
    %64 = vrot.lane.b32.xlu0 %v63, 118
    %v65 = vpop.permute.xlu0 %64
    %vm66 = vcmask 7168
    %s67 = scalar_lea.vmem %s1, 10
    %68 = vst.msk [vmem:[%s67] ss:$100 sm:$0x3] %vm66, %v65
    %v69 = vld [vmem:[#allocation0] sm:$0x3]
    %70 = vrot.lane.b32.xlu0 %v69, 117
    %v71 = vpop.permute.xlu0 %70
    %vm72 = vcmask 7168
    %s73 = scalar_lea.vmem %s1, 11
    %74 = vst.msk [vmem:[%s73] ss:$100 sm:$0x3] %vm72, %v71
    %v75 = vld [vmem:[#allocation0] sm:$0x3]
    %76 = vrot.lane.b32.xlu0 %v75, 116
    %v77 = vpop.permute.xlu0 %76
    %vm78 = vcmask 7168
    %s79 = scalar_lea.vmem %s1, 12
    %80 = vst.msk [vmem:[%s79] ss:$100 sm:$0x3] %vm78, %v77
    %v81 = vld [vmem:[#allocation0] sm:$0x3]
    %82 = vrot.lane.b32.xlu0 %v81, 115
    %v83 = vpop.permute.xlu0 %82
    %vm84 = vcmask 7168
    %s85 = scalar_lea.vmem %s1, 13
    %86 = vst.msk [vmem:[%s85] ss:$100 sm:$0x3] %vm84, %v83
    %v87 = vld [vmem:[#allocation0] sm:$0x3]
    %88 = vrot.lane.b32.xlu0 %v87, 114
    %v89 = vpop.permute.xlu0 %88
    %vm90 = vcmask 7168
    %s91 = scalar_lea.vmem %s1, 14
    %92 = vst.msk [vmem:[%s91] ss:$100 sm:$0x3] %vm90, %v89
    %v93 = vld [vmem:[#allocation0] sm:$0x3]
    %94 = vrot.lane.b32.xlu0 %v93, 113
    %v95 = vpop.permute.xlu0 %94
    %vm96 = vcmask 7168
    %s97 = scalar_lea.vmem %s1, 15
    %98 = vst.msk [vmem:[%s97] ss:$100 sm:$0x3] %vm96, %v95
    %v99 = vld [vmem:[#allocation0] sm:$0x3]
    %100 = vrot.lane.b32.xlu0 %v99, 112
    %v101 = vpop.permute.xlu0 %100
    %vm102 = vcmask 7168
    %s103 = scalar_lea.vmem %s1, 16
    %104 = vst.msk [vmem:[%s103] ss:$100 sm:$0x3] %vm102, %v101
    %v105 = vld [vmem:[#allocation0] sm:$0x3]
    %106 = vrot.lane.b32.xlu0 %v105, 111
    %v107 = vpop.permute.xlu0 %106
    %vm108 = vcmask 7168
    %s109 = scalar_lea.vmem %s1, 17
    %110 = vst.msk [vmem:[%s109] ss:$100 sm:$0x3] %vm108, %v107
    %v111 = vld [vmem:[#allocation0] sm:$0x3]
    %112 = vrot.lane.b32.xlu0 %v111, 110
    %v113 = vpop.permute.xlu0 %112
    %vm114 = vcmask 7168
    %s115 = scalar_lea.vmem %s1, 18
    %116 = vst.msk [vmem:[%s115] ss:$100 sm:$0x3] %vm114, %v113
    %v117 = vld [vmem:[#allocation0] sm:$0x3]
    %118 = vrot.lane.b32.xlu0 %v117, 109
    %v119 = vpop.permute.xlu0 %118
    %vm120 = vcmask 7168
    %s121 = scalar_lea.vmem %s1, 19
    %122 = vst.msk [vmem:[%s121] ss:$100 sm:$0x3] %vm120, %v119
    %v123 = vld [vmem:[#allocation0] sm:$0x3]
    %124 = vrot.lane.b32.xlu0 %v123, 108
    %v125 = vpop.permute.xlu0 %124
    %vm126 = vcmask 7168
    %s127 = scalar_lea.vmem %s1, 20
    %128 = vst.msk [vmem:[%s127] ss:$100 sm:$0x3] %vm126, %v125
    %v129 = vld [vmem:[#allocation0] sm:$0x3]
    %130 = vrot.lane.b32.xlu0 %v129, 107
    %v131 = vpop.permute.xlu0 %130
    %vm132 = vcmask 7168
    %s133 = scalar_lea.vmem %s1, 21
    %134 = vst.msk [vmem:[%s133] ss:$100 sm:$0x3] %vm132, %v131
    %v135 = vld [vmem:[#allocation0] sm:$0x3]
    %136 = vrot.lane.b32.xlu0 %v135, 106
    %v137 = vpop.permute.xlu0 %136
    %vm138 = vcmask 7168
    %s139 = scalar_lea.vmem %s1, 22
    %140 = vst.msk [vmem:[%s139] ss:$100 sm:$0x3] %vm138, %v137
    %v141 = vld [vmem:[#allocation0] sm:$0x3]
    %142 = vrot.lane.b32.xlu0 %v141, 105
    %v143 = vpop.permute.xlu0 %142
    %vm144 = vcmask 7168
    %s145 = scalar_lea.vmem %s1, 23
    %146 = vst.msk [vmem:[%s145] ss:$100 sm:$0x3] %vm144, %v143
    %v147 = vld [vmem:[#allocation0] sm:$0x3]
    %148 = vrot.lane.b32.xlu0 %v147, 104
    %v149 = vpop.permute.xlu0 %148
    %vm150 = vcmask 7168
    %s151 = scalar_lea.vmem %s1, 24
    %152 = vst.msk [vmem:[%s151] ss:$100 sm:$0x3] %vm150, %v149
    %v153 = vld [vmem:[#allocation0] sm:$0x3]
    %154 = vrot.lane.b32.xlu0 %v153, 103
    %v155 = vpop.permute.xlu0 %154
    %vm156 = vcmask 7168
    %s157 = scalar_lea.vmem %s1, 25
    %158 = vst.msk [vmem:[%s157] ss:$100 sm:$0x3] %vm156, %v155
    %v159 = vld [vmem:[#allocation0] sm:$0x3]
    %160 = vrot.lane.b32.xlu0 %v159, 102
    %v161 = vpop.permute.xlu0 %160
    %vm162 = vcmask 7168
    %s163 = scalar_lea.vmem %s1, 26
    %164 = vst.msk [vmem:[%s163] ss:$100 sm:$0x3] %vm162, %v161
    %v165 = vld [vmem:[#allocation0] sm:$0x3]
    %166 = vrot.lane.b32.xlu0 %v165, 101
    %v167 = vpop.permute.xlu0 %166
    %vm168 = vcmask 7168
    %s169 = scalar_lea.vmem %s1, 27
    %170 = vst.msk [vmem:[%s169] ss:$100 sm:$0x3] %vm168, %v167
    %s171 = scalar_lea.vmem [#allocation0], 1
    %s172 = smov 3
    %v173 = vld [vmem:[%s171] ss:$-1 sm:%s172]
    %174 = vrot.lane.b32.xlu0 %v173, 100
    %v175 = vpop.permute.xlu0 %174
    %vm176 = vcmask 7168
    %s177 = scalar_lea.vmem %s1, 128
    %178 = vst.msk [vmem:[%s177] ss:$-100 sm:$0x3] %vm176, %v175
    %s179 = scalar_lea.vmem [#allocation0], 1
    %s180 = smov 3
    %v181 = vld [vmem:[%s179] ss:$-1 sm:%s180]
    %182 = vrot.lane.b32.xlu0 %v181, 99
    %v183 = vpop.permute.xlu0 %182
    %vm184 = vcmask 7168
    %s185 = scalar_lea.vmem %s1, 129
    %186 = vst.msk [vmem:[%s185] ss:$-100 sm:$0x3] %vm184, %v183
    %s187 = scalar_lea.vmem [#allocation0], 1
    %s188 = smov 3
    %v189 = vld [vmem:[%s187] ss:$-1 sm:%s188]
    %190 = vrot.lane.b32.xlu0 %v189, 98
    %v191 = vpop.permute.xlu0 %190
    %vm192 = vcmask 7168
    %s193 = scalar_lea.vmem %s1, 130
    %194 = vst.msk [vmem:[%s193] ss:$-100 sm:$0x3] %vm192, %v191
    %s195 = scalar_lea.vmem [#allocation0], 1
    %s196 = smov 3
    %v197 = vld [vmem:[%s195] ss:$-1 sm:%s196]
    %198 = vrot.lane.b32.xlu0 %v197, 97
    %v199 = vpop.permute.xlu0 %198
    %vm200 = vcmask 7168
    %s201 = scalar_lea.vmem %s1, 131
    %202 = vst.msk [vmem:[%s201] ss:$-100 sm:$0x3] %vm200, %v199
    %v203 = vld [vmem:[#allocation0] sm:$0x3]
    %204 = vrot.lane.b32.xlu0 %v203, 96
    %v205 = vpop.permute.xlu0 %204
    %vm206 = vcmask 7168
    %s207 = scalar_lea.vmem %s1, 32
    %208 = vst.msk [vmem:[%s207] ss:$100 sm:$0x3] %vm206, %v205
    %v209 = vld [vmem:[#allocation0] sm:$0x3]
    %210 = vrot.lane.b32.xlu0 %v209, 95
    %v211 = vpop.permute.xlu0 %210
    %vm212 = vcmask 7168
    %s213 = scalar_lea.vmem %s1, 33
    %214 = vst.msk [vmem:[%s213] ss:$100 sm:$0x3] %vm212, %v211
    %v215 = vld [vmem:[#allocation0] sm:$0x3]
    %216 = vrot.lane.b32.xlu0 %v215, 94
    %v217 = vpop.permute.xlu0 %216
    %vm218 = vcmask 7168
    %s219 = scalar_lea.vmem %s1, 34
    %220 = vst.msk [vmem:[%s219] ss:$100 sm:$0x3] %vm218, %v217
    %v221 = vld [vmem:[#allocation0] sm:$0x3]
    %222 = vrot.lane.b32.xlu0 %v221, 93
    %v223 = vpop.permute.xlu0 %222
    %vm224 = vcmask 7168
    %s225 = scalar_lea.vmem %s1, 35
    %226 = vst.msk [vmem:[%s225] ss:$100 sm:$0x3] %vm224, %v223
    %v227 = vld [vmem:[#allocation0] sm:$0x3]
    %228 = vrot.lane.b32.xlu0 %v227, 92
    %v229 = vpop.permute.xlu0 %228
    %vm230 = vcmask 7168
    %s231 = scalar_lea.vmem %s1, 36
    %232 = vst.msk [vmem:[%s231] ss:$100 sm:$0x3] %vm230, %v229
    %v233 = vld [vmem:[#allocation0] sm:$0x3]
    %234 = vrot.lane.b32.xlu0 %v233, 91
    %v235 = vpop.permute.xlu0 %234
    %vm236 = vcmask 7168
    %s237 = scalar_lea.vmem %s1, 37
    %238 = vst.msk [vmem:[%s237] ss:$100 sm:$0x3] %vm236, %v235
    %v239 = vld [vmem:[#allocation0] sm:$0x3]
    %240 = vrot.lane.b32.xlu0 %v239, 90
    %v241 = vpop.permute.xlu0 %240
    %vm242 = vcmask 7168
    %s243 = scalar_lea.vmem %s1, 38
    %244 = vst.msk [vmem:[%s243] ss:$100 sm:$0x3] %vm242, %v241
    %v245 = vld [vmem:[#allocation0] sm:$0x3]
    %246 = vrot.lane.b32.xlu0 %v245, 89
    %v247 = vpop.permute.xlu0 %246
    %vm248 = vcmask 7168
    %s249 = scalar_lea.vmem %s1, 39
    %250 = vst.msk [vmem:[%s249] ss:$100 sm:$0x3] %vm248, %v247
    %v251 = vld [vmem:[#allocation0] sm:$0x3]
    %252 = vrot.lane.b32.xlu0 %v251, 88
    %v253 = vpop.permute.xlu0 %252
    %vm254 = vcmask 7168
    %s255 = scalar_lea.vmem %s1, 40
    %256 = vst.msk [vmem:[%s255] ss:$100 sm:$0x3] %vm254, %v253
    %v257 = vld [vmem:[#allocation0] sm:$0x3]
    %258 = vrot.lane.b32.xlu0 %v257, 87
    %v259 = vpop.permute.xlu0 %258
    %vm260 = vcmask 7168
    %s261 = scalar_lea.vmem %s1, 41
    %262 = vst.msk [vmem:[%s261] ss:$100 sm:$0x3] %vm260, %v259
    %v263 = vld [vmem:[#allocation0] sm:$0x3]
    %264 = vrot.lane.b32.xlu0 %v263, 86
    %v265 = vpop.permute.xlu0 %264
    %vm266 = vcmask 7168
    %s267 = scalar_lea.vmem %s1, 42
    %268 = vst.msk [vmem:[%s267] ss:$100 sm:$0x3] %vm266, %v265
    %v269 = vld [vmem:[#allocation0] sm:$0x3]
    %270 = vrot.lane.b32.xlu0 %v269, 85
    %v271 = vpop.permute.xlu0 %270
    %vm272 = vcmask 7168
    %s273 = scalar_lea.vmem %s1, 43
    %274 = vst.msk [vmem:[%s273] ss:$100 sm:$0x3] %vm272, %v271
    %v275 = vld [vmem:[#allocation0] sm:$0x3]
    %276 = vrot.lane.b32.xlu0 %v275, 84
    %v277 = vpop.permute.xlu0 %276
    %vm278 = vcmask 7168
    %s279 = scalar_lea.vmem %s1, 44
    %280 = vst.msk [vmem:[%s279] ss:$100 sm:$0x3] %vm278, %v277
    %v281 = vld [vmem:[#allocation0] sm:$0x3]
    %282 = vrot.lane.b32.xlu0 %v281, 83
    %v283 = vpop.permute.xlu0 %282
    %vm284 = vcmask 7168
    %s285 = scalar_lea.vmem %s1, 45
    %286 = vst.msk [vmem:[%s285] ss:$100 sm:$0x3] %vm284, %v283
    %v287 = vld [vmem:[#allocation0] sm:$0x3]
    %288 = vrot.lane.b32.xlu0 %v287, 82
    %v289 = vpop.permute.xlu0 %288
    %vm290 = vcmask 7168
    %s291 = scalar_lea.vmem %s1, 46
    %292 = vst.msk [vmem:[%s291] ss:$100 sm:$0x3] %vm290, %v289
    %v293 = vld [vmem:[#allocation0] sm:$0x3]
    %294 = vrot.lane.b32.xlu0 %v293, 81
    %v295 = vpop.permute.xlu0 %294
    %vm296 = vcmask 7168
    %s297 = scalar_lea.vmem %s1, 47
    %298 = vst.msk [vmem:[%s297] ss:$100 sm:$0x3] %vm296, %v295
    %v299 = vld [vmem:[#allocation0] sm:$0x3]
    %300 = vrot.lane.b32.xlu0 %v299, 80
    %v301 = vpop.permute.xlu0 %300
    %vm302 = vcmask 7168
    %s303 = scalar_lea.vmem %s1, 48
    %304 = vst.msk [vmem:[%s303] ss:$100 sm:$0x3] %vm302, %v301
    %v305 = vld [vmem:[#allocation0] sm:$0x3]
    %306 = vrot.lane.b32.xlu0 %v305, 79
    %v307 = vpop.permute.xlu0 %306
    %vm308 = vcmask 7168
    %s309 = scalar_lea.vmem %s1, 49
    %310 = vst.msk [vmem:[%s309] ss:$100 sm:$0x3] %vm308, %v307
    %v311 = vld [vmem:[#allocation0] sm:$0x3]
    %312 = vrot.lane.b32.xlu0 %v311, 78
    %v313 = vpop.permute.xlu0 %312
    %vm314 = vcmask 7168
    %s315 = scalar_lea.vmem %s1, 50
    %316 = vst.msk [vmem:[%s315] ss:$100 sm:$0x3] %vm314, %v313
    %v317 = vld [vmem:[#allocation0] sm:$0x3]
    %318 = vrot.lane.b32.xlu0 %v317, 77
    %v319 = vpop.permute.xlu0 %318
    %vm320 = vcmask 7168
    %s321 = scalar_lea.vmem %s1, 51
    %322 = vst.msk [vmem:[%s321] ss:$100 sm:$0x3] %vm320, %v319
    %v323 = vld [vmem:[#allocation0] sm:$0x3]
    %324 = vrot.lane.b32.xlu0 %v323, 76
    %v325 = vpop.permute.xlu0 %324
    %vm326 = vcmask 7168
    %s327 = scalar_lea.vmem %s1, 52
    %328 = vst.msk [vmem:[%s327] ss:$100 sm:$0x3] %vm326, %v325
    %v329 = vld [vmem:[#allocation0] sm:$0x3]
    %330 = vrot.lane.b32.xlu0 %v329, 75
    %v331 = vpop.permute.xlu0 %330
    %vm332 = vcmask 7168
    %s333 = scalar_lea.vmem %s1, 53
    %334 = vst.msk [vmem:[%s333] ss:$100 sm:$0x3] %vm332, %v331
    %v335 = vld [vmem:[#allocation0] sm:$0x3]
    %336 = vrot.lane.b32.xlu0 %v335, 74
    %v337 = vpop.permute.xlu0 %336
    %vm338 = vcmask 7168
    %s339 = scalar_lea.vmem %s1, 54
    %340 = vst.msk [vmem:[%s339] ss:$100 sm:$0x3] %vm338, %v337
    %v341 = vld [vmem:[#allocation0] sm:$0x3]
    %342 = vrot.lane.b32.xlu0 %v341, 73
    %v343 = vpop.permute.xlu0 %342
    %vm344 = vcmask 7168
    %s345 = scalar_lea.vmem %s1, 55
    %346 = vst.msk [vmem:[%s345] ss:$100 sm:$0x3] %vm344, %v343
    %v347 = vld [vmem:[#allocation0] sm:$0x3]
    %348 = vrot.lane.b32.xlu0 %v347, 72
    %v349 = vpop.permute.xlu0 %348
    %vm350 = vcmask 7168
    %s351 = scalar_lea.vmem %s1, 56
    %352 = vst.msk [vmem:[%s351] ss:$100 sm:$0x3] %vm350, %v349
    %v353 = vld [vmem:[#allocation0] sm:$0x3]
    %354 = vrot.lane.b32.xlu0 %v353, 71
    %v355 = vpop.permute.xlu0 %354
    %vm356 = vcmask 7168
    %s357 = scalar_lea.vmem %s1, 57
    %358 = vst.msk [vmem:[%s357] ss:$100 sm:$0x3] %vm356, %v355
    %v359 = vld [vmem:[#allocation0] sm:$0x3]
    %360 = vrot.lane.b32.xlu0 %v359, 70
    %v361 = vpop.permute.xlu0 %360
    %vm362 = vcmask 7168
    %s363 = scalar_lea.vmem %s1, 58
    %364 = vst.msk [vmem:[%s363] ss:$100 sm:$0x3] %vm362, %v361
    %v365 = vld [vmem:[#allocation0] sm:$0x3]
    %366 = vrot.lane.b32.xlu0 %v365, 69
    %v367 = vpop.permute.xlu0 %366
    %vm368 = vcmask 7168
    %s369 = scalar_lea.vmem %s1, 59
    %370 = vst.msk [vmem:[%s369] ss:$100 sm:$0x3] %vm368, %v367
    %s371 = scalar_lea.vmem [#allocation0], 1
    %s372 = smov 3
    %v373 = vld [vmem:[%s371] ss:$-1 sm:%s372]
    %374 = vrot.lane.b32.xlu0 %v373, 68
    %v375 = vpop.permute.xlu0 %374
    %vm376 = vcmask 7168
    %s377 = scalar_lea.vmem %s1, 160
    %378 = vst.msk [vmem:[%s377] ss:$-100 sm:$0x3] %vm376, %v375
    %s379 = scalar_lea.vmem [#allocation0], 1
    %s380 = smov 3
    %v381 = vld [vmem:[%s379] ss:$-1 sm:%s380]
    %382 = vrot.lane.b32.xlu0 %v381, 67
    %v383 = vpop.permute.xlu0 %382
    %vm384 = vcmask 7168
    %s385 = scalar_lea.vmem %s1, 161
    %386 = vst.msk [vmem:[%s385] ss:$-100 sm:$0x3] %vm384, %v383
    %s387 = scalar_lea.vmem [#allocation0], 1
    %s388 = smov 3
    %v389 = vld [vmem:[%s387] ss:$-1 sm:%s388]
    %390 = vrot.lane.b32.xlu0 %v389, 66
    %v391 = vpop.permute.xlu0 %390
    %vm392 = vcmask 7168
    %s393 = scalar_lea.vmem %s1, 162
    %394 = vst.msk [vmem:[%s393] ss:$-100 sm:$0x3] %vm392, %v391
    %s395 = scalar_lea.vmem [#allocation0], 1
    %s396 = smov 3
    %v397 = vld [vmem:[%s395] ss:$-1 sm:%s396]
    %398 = vrot.lane.b32.xlu0 %v397, 65
    %v399 = vpop.permute.xlu0 %398
    %vm400 = vcmask 7168
    %s401 = scalar_lea.vmem %s1, 163
    %402 = vst.msk [vmem:[%s401] ss:$-100 sm:$0x3] %vm400, %v399
    %v403 = vld [vmem:[#allocation0] sm:$0x3]
    %404 = vrot.lane.b32.xlu0 %v403, 64
    %v405 = vpop.permute.xlu0 %404
    %vm406 = vcmask 7168
    %s407 = scalar_lea.vmem %s1, 64
    %408 = vst.msk [vmem:[%s407] ss:$100 sm:$0x3] %vm406, %v405
    %v409 = vld [vmem:[#allocation0] sm:$0x3]
    %410 = vrot.lane.b32.xlu0 %v409, 63
    %v411 = vpop.permute.xlu0 %410
    %vm412 = vcmask 7168
    %s413 = scalar_lea.vmem %s1, 65
    %414 = vst.msk [vmem:[%s413] ss:$100 sm:$0x3] %vm412, %v411
    %v415 = vld [vmem:[#allocation0] sm:$0x3]
    %416 = vrot.lane.b32.xlu0 %v415, 62
    %v417 = vpop.permute.xlu0 %416
    %vm418 = vcmask 7168
    %s419 = scalar_lea.vmem %s1, 66
    %420 = vst.msk [vmem:[%s419] ss:$100 sm:$0x3] %vm418, %v417
    %v421 = vld [vmem:[#allocation0] sm:$0x3]
    %422 = vrot.lane.b32.xlu0 %v421, 61
    %v423 = vpop.permute.xlu0 %422
    %vm424 = vcmask 7168
    %s425 = scalar_lea.vmem %s1, 67
    %426 = vst.msk [vmem:[%s425] ss:$100 sm:$0x3] %vm424, %v423
    %v427 = vld [vmem:[#allocation0] sm:$0x3]
    %428 = vrot.lane.b32.xlu0 %v427, 60
    %v429 = vpop.permute.xlu0 %428
    %vm430 = vcmask 7168
    %s431 = scalar_lea.vmem %s1, 68
    %432 = vst.msk [vmem:[%s431] ss:$100 sm:$0x3] %vm430, %v429
    %v433 = vld [vmem:[#allocation0] sm:$0x3]
    %434 = vrot.lane.b32.xlu0 %v433, 59
    %v435 = vpop.permute.xlu0 %434
    %vm436 = vcmask 7168
    %s437 = scalar_lea.vmem %s1, 69
    %438 = vst.msk [vmem:[%s437] ss:$100 sm:$0x3] %vm436, %v435
    %v439 = vld [vmem:[#allocation0] sm:$0x3]
    %440 = vrot.lane.b32.xlu0 %v439, 58
    %v441 = vpop.permute.xlu0 %440
    %vm442 = vcmask 7168
    %s443 = scalar_lea.vmem %s1, 70
    %444 = vst.msk [vmem:[%s443] ss:$100 sm:$0x3] %vm442, %v441
    %v445 = vld [vmem:[#allocation0] sm:$0x3]
    %446 = vrot.lane.b32.xlu0 %v445, 57
    %v447 = vpop.permute.xlu0 %446
    %vm448 = vcmask 7168
    %s449 = scalar_lea.vmem %s1, 71
    %450 = vst.msk [vmem:[%s449] ss:$100 sm:$0x3] %vm448, %v447
    %v451 = vld [vmem:[#allocation0] sm:$0x3]
    %452 = vrot.lane.b32.xlu0 %v451, 56
    %v453 = vpop.permute.xlu0 %452
    %vm454 = vcmask 7168
    %s455 = scalar_lea.vmem %s1, 72
    %456 = vst.msk [vmem:[%s455] ss:$100 sm:$0x3] %vm454, %v453
    %v457 = vld [vmem:[#allocation0] sm:$0x3]
    %458 = vrot.lane.b32.xlu0 %v457, 55
    %v459 = vpop.permute.xlu0 %458
    %vm460 = vcmask 7168
    %s461 = scalar_lea.vmem %s1, 73
    %462 = vst.msk [vmem:[%s461] ss:$100 sm:$0x3] %vm460, %v459
    %v463 = vld [vmem:[#allocation0] sm:$0x3]
    %464 = vrot.lane.b32.xlu0 %v463, 54
    %v465 = vpop.permute.xlu0 %464
    %vm466 = vcmask 7168
    %s467 = scalar_lea.vmem %s1, 74
    %468 = vst.msk [vmem:[%s467] ss:$100 sm:$0x3] %vm466, %v465
    %v469 = vld [vmem:[#allocation0] sm:$0x3]
    %470 = vrot.lane.b32.xlu0 %v469, 53
    %v471 = vpop.permute.xlu0 %470
    %vm472 = vcmask 7168
    %s473 = scalar_lea.vmem %s1, 75
    %474 = vst.msk [vmem:[%s473] ss:$100 sm:$0x3] %vm472, %v471
    %v475 = vld [vmem:[#allocation0] sm:$0x3]
    %476 = vrot.lane.b32.xlu0 %v475, 52
    %v477 = vpop.permute.xlu0 %476
    %vm478 = vcmask 7168
    %s479 = scalar_lea.vmem %s1, 76
    %480 = vst.msk [vmem:[%s479] ss:$100 sm:$0x3] %vm478, %v477
    %v481 = vld [vmem:[#allocation0] sm:$0x3]
    %482 = vrot.lane.b32.xlu0 %v481, 51
    %v483 = vpop.permute.xlu0 %482
    %vm484 = vcmask 7168
    %s485 = scalar_lea.vmem %s1, 77
    %486 = vst.msk [vmem:[%s485] ss:$100 sm:$0x3] %vm484, %v483
    %v487 = vld [vmem:[#allocation0] sm:$0x3]
    %488 = vrot.lane.b32.xlu0 %v487, 50
    %v489 = vpop.permute.xlu0 %488
    %vm490 = vcmask 7168
    %s491 = scalar_lea.vmem %s1, 78
    %492 = vst.msk [vmem:[%s491] ss:$100 sm:$0x3] %vm490, %v489
    %v493 = vld [vmem:[#allocation0] sm:$0x3]
    %494 = vrot.lane.b32.xlu0 %v493, 49
    %v495 = vpop.permute.xlu0 %494
    %vm496 = vcmask 7168
    %s497 = scalar_lea.vmem %s1, 79
    %498 = vst.msk [vmem:[%s497] ss:$100 sm:$0x3] %vm496, %v495
    %v499 = vld [vmem:[#allocation0] sm:$0x3]
    %500 = vrot.lane.b32.xlu0 %v499, 48
    %v501 = vpop.permute.xlu0 %500
    %vm502 = vcmask 7168
    %s503 = scalar_lea.vmem %s1, 80
    %504 = vst.msk [vmem:[%s503] ss:$100 sm:$0x3] %vm502, %v501
    %v505 = vld [vmem:[#allocation0] sm:$0x3]
    %506 = vrot.lane.b32.xlu0 %v505, 47
    %v507 = vpop.permute.xlu0 %506
    %vm508 = vcmask 7168
    %s509 = scalar_lea.vmem %s1, 81
    %510 = vst.msk [vmem:[%s509] ss:$100 sm:$0x3] %vm508, %v507
    %v511 = vld [vmem:[#allocation0] sm:$0x3]
    %512 = vrot.lane.b32.xlu0 %v511, 46
    %v513 = vpop.permute.xlu0 %512
    %vm514 = vcmask 7168
    %s515 = scalar_lea.vmem %s1, 82
    %516 = vst.msk [vmem:[%s515] ss:$100 sm:$0x3] %vm514, %v513
    %v517 = vld [vmem:[#allocation0] sm:$0x3]
    %518 = vrot.lane.b32.xlu0 %v517, 45
    %v519 = vpop.permute.xlu0 %518
    %vm520 = vcmask 7168
    %s521 = scalar_lea.vmem %s1, 83
    %522 = vst.msk [vmem:[%s521] ss:$100 sm:$0x3] %vm520, %v519
    %v523 = vld [vmem:[#allocation0] sm:$0x3]
    %524 = vrot.lane.b32.xlu0 %v523, 44
    %v525 = vpop.permute.xlu0 %524
    %vm526 = vcmask 7168
    %s527 = scalar_lea.vmem %s1, 84
    %528 = vst.msk [vmem:[%s527] ss:$100 sm:$0x3] %vm526, %v525
    %v529 = vld [vmem:[#allocation0] sm:$0x3]
    %530 = vrot.lane.b32.xlu0 %v529, 43
    %v531 = vpop.permute.xlu0 %530
    %vm532 = vcmask 7168
    %s533 = scalar_lea.vmem %s1, 85
    %534 = vst.msk [vmem:[%s533] ss:$100 sm:$0x3] %vm532, %v531
    %v535 = vld [vmem:[#allocation0] sm:$0x3]
    %536 = vrot.lane.b32.xlu0 %v535, 42
    %v537 = vpop.permute.xlu0 %536
    %vm538 = vcmask 7168
    %s539 = scalar_lea.vmem %s1, 86
    %540 = vst.msk [vmem:[%s539] ss:$100 sm:$0x3] %vm538, %v537
    %v541 = vld [vmem:[#allocation0] sm:$0x3]
    %542 = vrot.lane.b32.xlu0 %v541, 41
    %v543 = vpop.permute.xlu0 %542
    %vm544 = vcmask 7168
    %s545 = scalar_lea.vmem %s1, 87
    %546 = vst.msk [vmem:[%s545] ss:$100 sm:$0x3] %vm544, %v543
    %v547 = vld [vmem:[#allocation0] sm:$0x3]
    %548 = vrot.lane.b32.xlu0 %v547, 40
    %v549 = vpop.permute.xlu0 %548
    %vm550 = vcmask 7168
    %s551 = scalar_lea.vmem %s1, 88
    %552 = vst.msk [vmem:[%s551] ss:$100 sm:$0x3] %vm550, %v549
    %v553 = vld [vmem:[#allocation0] sm:$0x3]
    %554 = vrot.lane.b32.xlu0 %v553, 39
    %v555 = vpop.permute.xlu0 %554
    %vm556 = vcmask 7168
    %s557 = scalar_lea.vmem %s1, 89
    %558 = vst.msk [vmem:[%s557] ss:$100 sm:$0x3] %vm556, %v555
    %v559 = vld [vmem:[#allocation0] sm:$0x3]
    %560 = vrot.lane.b32.xlu0 %v559, 38
    %v561 = vpop.permute.xlu0 %560
    %vm562 = vcmask 7168
    %s563 = scalar_lea.vmem %s1, 90
    %564 = vst.msk [vmem:[%s563] ss:$100 sm:$0x3] %vm562, %v561
    %v565 = vld [vmem:[#allocation0] sm:$0x3]
    %566 = vrot.lane.b32.xlu0 %v565, 37
    %v567 = vpop.permute.xlu0 %566
    %vm568 = vcmask 7168
    %s569 = scalar_lea.vmem %s1, 91
    %570 = vst.msk [vmem:[%s569] ss:$100 sm:$0x3] %vm568, %v567
    %s571 = scalar_lea.vmem [#allocation0], 1
    %s572 = smov 3
    %v573 = vld [vmem:[%s571] ss:$-1 sm:%s572]
    %574 = vrot.lane.b32.xlu0 %v573, 36
    %v575 = vpop.permute.xlu0 %574
    %vm576 = vcmask 7168
    %s577 = scalar_lea.vmem %s1, 192
    %578 = vst.msk [vmem:[%s577] ss:$-100 sm:$0x3] %vm576, %v575
    %s579 = scalar_lea.vmem [#allocation0], 1
    %s580 = smov 3
    %v581 = vld [vmem:[%s579] ss:$-1 sm:%s580]
    %582 = vrot.lane.b32.xlu0 %v581, 35
    %v583 = vpop.permute.xlu0 %582
    %vm584 = vcmask 7168
    %s585 = scalar_lea.vmem %s1, 193
    %586 = vst.msk [vmem:[%s585] ss:$-100 sm:$0x3] %vm584, %v583
    %s587 = scalar_lea.vmem [#allocation0], 1
    %s588 = smov 3
    %v589 = vld [vmem:[%s587] ss:$-1 sm:%s588]
    %590 = vrot.lane.b32.xlu0 %v589, 34
    %v591 = vpop.permute.xlu0 %590
    %vm592 = vcmask 7168
    %s593 = scalar_lea.vmem %s1, 194
    %594 = vst.msk [vmem:[%s593] ss:$-100 sm:$0x3] %vm592, %v591
    %s595 = scalar_lea.vmem [#allocation0], 1
    %s596 = smov 3
    %v597 = vld [vmem:[%s595] ss:$-1 sm:%s596]
    %598 = vrot.lane.b32.xlu0 %v597, 33
    %v599 = vpop.permute.xlu0 %598
    %vm600 = vcmask 7168
    %s601 = scalar_lea.vmem %s1, 195
    %602 = vst.msk [vmem:[%s601] ss:$-100 sm:$0x3] %vm600, %v599
    %v603 = vld [vmem:[#allocation0] sm:$0x3]
    %604 = vrot.lane.b32.xlu0 %v603, 32
    %v605 = vpop.permute.xlu0 %604
    %vm606 = vcmask 7168
    %s607 = scalar_lea.vmem %s1, 96
    %608 = vst.msk [vmem:[%s607] ss:$100 sm:$0x3] %vm606, %v605
    %v609 = vld [vmem:[#allocation0] sm:$0x3]
    %610 = vrot.lane.b32.xlu0 %v609, 31
    %v611 = vpop.permute.xlu0 %610
    %vm612 = vcmask 7168
    %s613 = scalar_lea.vmem %s1, 97
    %614 = vst.msk [vmem:[%s613] ss:$100 sm:$0x3] %vm612, %v611
    %v615 = vld [vmem:[#allocation0] sm:$0x3]
    %616 = vrot.lane.b32.xlu0 %v615, 30
    %v617 = vpop.permute.xlu0 %616
    %vm618 = vcmask 7168
    %s619 = scalar_lea.vmem %s1, 98
    %620 = vst.msk [vmem:[%s619] ss:$100 sm:$0x3] %vm618, %v617
    %v621 = vld [vmem:[#allocation0] sm:$0x3]
    %622 = vrot.lane.b32.xlu0 %v621, 29
    %v623 = vpop.permute.xlu0 %622
    %vm624 = vcmask 7168
    %s625 = scalar_lea.vmem %s1, 99
    %626 = vst.msk [vmem:[%s625] ss:$100 sm:$0x3] %vm624, %v623

// kernel: basic_block_forward.2
$region0: #{basic_block_forward.2}
  #allocation0 [shape = 'u32[]', space=smem, size = 0x4, offset = 0x4, fixed_abs, tag = 'smem constant byte address 0x4 - core index']
  #allocation1 [shape = 'u32[144,128]{1,0:T(1,128)}', space=vmem, size = 0x12000, scoped, tag = 'internal scratch']
  #allocation2 [shape = 'bf16[80,128]{1,0:T(16,128)(2,1)}', space=vmem, size = 0x5000, scoped, tag = 'scratch operand']
  %s0 = inlined_call_operand.vmem [shape: bf16[240,128], index: 0, kind: input, shape index: {}, may-alias: {0,1}]
  %s1 = inlined_call_operand.vmem [shape: bf16[240,128], index: 1, kind: input, shape index: {}, may-alias: {0,1}]
  %s2 = inlined_call_operand.vmem [shape: bf16[4,128,128], index: 2, kind: input, shape index: {}]
  %s3 = inlined_call_operand.vmem [shape: f32[1,128], index: 3, kind: input, shape index: {}]
  %s4 = inlined_call_operand.vmem [shape: f32[200,1], index: 4, kind: input, shape index: {}]
  %s5 = inlined_call_operand.vmem [shape: bf16[200,128], index: 5, kind: output, shape index: {}]
  %s6 = sld [smem:[#allocation0]]
  $region53: #{basic_block_forward.2} parent=0
    _
  %s8 = ssub.s32 1, %s6
  %s9 = scalar_select 0, %s8, %s6
  loop: start=0, step=1, limit=7
  $region2: #{basic_block_forward.2} parent=0 // loop_pre_header
    _
  $region3: #{basic_block_forward.2} parent=0 // loop_header
    %s11 = sphi 0, %s15
    %p12 = scmp.ge.s32.totalorder %s11, 7
    %s18 = sphi 0, %s30
    %s19 = sphi 0, %s26
    %s20 = sphi 0, %s18
    %s21 = sphi 0, %s19
    %s22 = sphi 0, %s20
    %s23 = sphi 0, %s21
    %s33 = sphi 0, %s35
    %s36 = sphi 0, %s33
    %s37 = sphi 0, %s36
    %s53 = sphi 0, %s37
    %s61 = sphi 0, %s63
    %s64 = sphi 0, %s61
    %s65 = sphi 0, %s64
    %s81 = sphi 0, %s65
    %s87 = sphi 0, %s89
    %s90 = sphi 0, %s87
    %s91 = sphi 0, %s90
    %s107 = sphi 0, %s91
    %s113 = sphi 0, %s115
    %s116 = sphi 0, %s113
    %s117 = sphi 0, %s116
    %s133 = sphi 0, %s117
    %s139 = sphi 0, %s141
    %s142 = sphi 0, %s139
    %s143 = sphi 0, %s142
    %s159 = sphi 0, %s143
    %s167 = sphi 0, %s169
    %s170 = sphi 0, %s167
    %s171 = sphi 0, %s170
    %s187 = sphi 0, %s171
  $region4: #{basic_block_forward.2} parent=0 // loop_header_branch
    %14 = sbr.rel (%p12) target = $region8
  $region5: #{basic_block_forward.2} parent=0 // loop_body
    %s16 = ssub.s32 %s11, 1
    %s17 = ssub.s32 %s11, 2
    %s24 = sadd.s32 1, %s19
    %p25 = scmp.ge.s32.totalorder %s24, 1
    %s26 = scalar_select %p25, 0, %s24
    %s27 = sadd.s32 1, %s18
    %s28 = scalar_select %p25, %s27, %s18
    %p29 = scmp.ge.s32.totalorder %s28, 5
    %s30 = scalar_select %p29, 0, %s28
    %s31 = ssub.s32 %s18, %s30
    %p32 = scmp.eq.s32.totalorder %s31, 0
    %s34 = sadd.s32 %s33, 1
    %s35 = scalar_select %p32, %s33, %s34
    %p38 = pneg %p32
    %p39 = scmp.eq.s32.totalorder %s11, 4
    %p40 = por %p38, %p39
    %p41 = scmp.ne.s32.totalorder %s33, %s36
    %p42 = scmp.eq.s32.totalorder %s11, 0
    %p43 = por %p41, %p42
    %p44 = scmp.ne.s32.totalorder %s33, %s36
    %p45 = scmp.eq.s32.totalorder %s16, 4
    %p46 = por %p44, %p45
    %p47 = scmp.ne.s32.totalorder %s36, %s37
    %p48 = scmp.eq.s32.totalorder %s16, 0
    %p49 = por %p47, %p48
    %p50 = scmp.ne.s32.totalorder %s36, %s37
    %p51 = scmp.eq.s32.totalorder %s17, 4
    %p52 = por %p50, %p51
    %p54 = scmp.ne.s32.totalorder %s37, %s53
    %p55 = scmp.eq.s32.totalorder %s17, 0
    %p56 = por %p54, %p55
    %s57 = sadd.s32 %s18, 1
    %s58 = sadd.s32 %s30, 1
    %s59 = ssub.s32 %s57, %s58
    %p60 = scmp.eq.s32.totalorder %s59, 0
    %s62 = sadd.s32 %s61, 1
    %s63 = scalar_select %p60, %s61, %s62
    %p66 = pneg %p60
    %p67 = scmp.eq.s32.totalorder %s11, 4
    %p68 = por %p66, %p67
    %p69 = scmp.ne.s32.totalorder %s61, %s64
    %p70 = scmp.eq.s32.totalorder %s11, 0
    %p71 = por %p69, %p70
    %p72 = scmp.ne.s32.totalorder %s61, %s64
    %p73 = scmp.eq.s32.totalorder %s16, 4
    %p74 = por %p72, %p73
    %p75 = scmp.ne.s32.totalorder %s64, %s65
    %p76 = scmp.eq.s32.totalorder %s16, 0
    %p77 = por %p75, %p76
    %p78 = scmp.ne.s32.totalorder %s64, %s65
    %p79 = scmp.eq.s32.totalorder %s17, 4
    %p80 = por %p78, %p79
    %p82 = scmp.ne.s32.totalorder %s65, %s81
    %p83 = scmp.eq.s32.totalorder %s17, 0
    %p84 = por %p82, %p83
    %s85 = ssub.s32 %s19, %s26
    %p86 = scmp.eq.s32.totalorder %s85, 0
    %s88 = sadd.s32 %s87, 1
    %s89 = scalar_select %p86, %s87, %s88
    %p92 = pneg %p86
    %p93 = scmp.eq.s32.totalorder %s11, 4
    %p94 = por %p92, %p93
    %p95 = scmp.ne.s32.totalorder %s87, %s90
    %p96 = scmp.eq.s32.totalorder %s11, 0
    %p97 = por %p95, %p96
    %p98 = scmp.ne.s32.totalorder %s87, %s90
    %p99 = scmp.eq.s32.totalorder %s16, 4
    %p100 = por %p98, %p99
    %p101 = scmp.ne.s32.totalorder %s90, %s91
    %p102 = scmp.eq.s32.totalorder %s16, 0
    %p103 = por %p101, %p102
    %p104 = scmp.ne.s32.totalorder %s90, %s91
    %p105 = scmp.eq.s32.totalorder %s17, 4
    %p106 = por %p104, %p105
    %p108 = scmp.ne.s32.totalorder %s91, %s107
    %p109 = scmp.eq.s32.totalorder %s17, 0
    %p110 = por %p108, %p109
    %s111 = ssub.s32 %s19, %s26
    %p112 = scmp.eq.s32.totalorder %s111, 0
    %s114 = sadd.s32 %s113, 1
    %s115 = scalar_select %p112, %s113, %s114
    %p118 = pneg %p112
    %p119 = scmp.eq.s32.totalorder %s11, 4
    %p120 = por %p118, %p119
    %p121 = scmp.ne.s32.totalorder %s113, %s116
    %p122 = scmp.eq.s32.totalorder %s11, 0
    %p123 = por %p121, %p122
    %p124 = scmp.ne.s32.totalorder %s113, %s116
    %p125 = scmp.eq.s32.totalorder %s16, 4
    %p126 = por %p124, %p125
    %p127 = scmp.ne.s32.totalorder %s116, %s117
    %p128 = scmp.eq.s32.totalorder %s16, 0
    %p129 = por %p127, %p128
    %p130 = scmp.ne.s32.totalorder %s116, %s117
    %p131 = scmp.eq.s32.totalorder %s17, 4
    %p132 = por %p130, %p131
    %p134 = scmp.ne.s32.totalorder %s117, %s133
    %p135 = scmp.eq.s32.totalorder %s17, 0
    %p136 = por %p134, %p135
    %s137 = ssub.s32 %s18, %s30
    %p138 = scmp.eq.s32.totalorder %s137, 0
    %s140 = sadd.s32 %s139, 1
    %s141 = scalar_select %p138, %s139, %s140
    %p144 = pneg %p138
    %p145 = scmp.eq.s32.totalorder %s11, 4
    %p146 = por %p144, %p145
    %p147 = scmp.ne.s32.totalorder %s139, %s142
    %p148 = scmp.eq.s32.totalorder %s11, 0
    %p149 = por %p147, %p148
    %p150 = scmp.ne.s32.totalorder %s139, %s142
    %p151 = scmp.eq.s32.totalorder %s16, 4
    %p152 = por %p150, %p151
    %p153 = scmp.ne.s32.totalorder %s142, %s143
    %p154 = scmp.eq.s32.totalorder %s16, 0
    %p155 = por %p153, %p154
    %p156 = scmp.ne.s32.totalorder %s142, %s143
    %p157 = scmp.eq.s32.totalorder %s17, 4
    %p158 = por %p156, %p157
    %p160 = scmp.ne.s32.totalorder %s143, %s159
    %p161 = scmp.eq.s32.totalorder %s17, 0
    %p162 = por %p160, %p161
    %s163 = ssub.s32 %s18, %s30
    %s164 = ssub.s32 %s19, %s26
    %s165 = sor.u32 %s163, %s164
    %p166 = scmp.eq.s32.totalorder %s165, 0
    %s168 = sadd.s32 %s167, 1
    %s169 = scalar_select %p166, %s167, %s168
    %p172 = pneg %p166
    %p173 = scmp.eq.s32.totalorder %s11, 4
    %p174 = por %p172, %p173
    %p175 = scmp.ne.s32.totalorder %s167, %s170
    %p176 = scmp.eq.s32.totalorder %s11, 0
    %p177 = por %p175, %p176
    %p178 = scmp.ne.s32.totalorder %s167, %s170
    %p179 = scmp.eq.s32.totalorder %s16, 4
    %p180 = por %p178, %p179
    %p181 = scmp.ne.s32.totalorder %s170, %s171
    %p182 = scmp.eq.s32.totalorder %s16, 0
    %p183 = por %p181, %p182
    %p184 = scmp.ne.s32.totalorder %s170, %s171
    %p185 = scmp.eq.s32.totalorder %s17, 4
    %p186 = por %p184, %p185
    %p188 = scmp.ne.s32.totalorder %s171, %s187
    %p189 = scmp.eq.s32.totalorder %s17, 0
    %p190 = por %p188, %p189
    %p191 = scmp.le.s32.totalorder 1, %s11
    %p192 = scmp.lt.s32.totalorder %s11, 6
    %p193 = pnand %p191, %p192
    %p194 = pneg %p193
    // Predicated region
    $region9: #{basic_block_forward.2} parent=5 // pred_check
      _
    $region10: #{basic_block_forward.2} parent=5 // pred_check_branch
      %196 = sbr.rel (%p193) target = $region12
    $region11: #{basic_block_forward.2} parent=5 // pred_region
      %s197 = ssub.s32 %s11, 1
      // Predicated region
      $region13: #{basic_block_forward.2} parent=11 // pred_check
        %p198 = pneg %p103
      $region14: #{basic_block_forward.2} parent=11 // pred_check_branch
        %200 = sbr.rel (%p198) target = $region16
      $region15: #{basic_block_forward.2} parent=11 // pred_region
        %p201 = scmp.lt.s32.totalorder %s21, 0
        %s202 = scalar_select %p201, %s21, 0
        %s203 = smul.addr %s202, 4
        %s204 = scalar_lea.vmem %s2, %s203
      $region16: #{basic_block_forward.2} parent=11 // pred_fallthru
        _
      // Predicated region
      $region17: #{basic_block_forward.2} parent=11 // pred_check
        %p205 = pneg %p129
      $region18: #{basic_block_forward.2} parent=11 // pred_check_branch
        %207 = sbr.rel (%p205) target = $region20
      $region19: #{basic_block_forward.2} parent=11 // pred_region
        %p208 = scmp.lt.s32.totalorder %s21, 0
        %s209 = scalar_select %p208, %s21, 0
        %s210 = scalar_lea.vmem %s3, %s209
      $region20: #{basic_block_forward.2} parent=11 // pred_fallthru
        _
    $region12: #{basic_block_forward.2} parent=5 // pred_fallthru
      _
    %p211 = scmp.lt.s32.totalorder %s11, 5
    // Predicated region
    $region21: #{basic_block_forward.2} parent=5 // pred_check
      %p212 = pneg %p211
    $region22: #{basic_block_forward.2} parent=5 // pred_check_branch
      %214 = sbr.rel (%p212) target = $region24
    $region23: #{basic_block_forward.2} parent=5 // pred_region
      // Predicated region
      $region25: #{basic_block_forward.2} parent=23 // pred_check
        %p215 = pneg %p43
      $region26: #{basic_block_forward.2} parent=23 // pred_check_branch
        %217 = sbr.rel (%p215) target = $region28
      $region27: #{basic_block_forward.2} parent=23 // pred_region
        %s218 = smul.u32 5, %s18
        %p219 = scmp.lt.s32.totalorder %s218, 29
        %s220 = scalar_select %p219, %s218, 29
        %s221 = smul.addr %s220, 4
        %s222 = scalar_lea.vmem %s0, %s221
        %s223 = smul.u32 5, %s18
      $region28: #{basic_block_forward.2} parent=23 // pred_fallthru
        _
      // Predicated region
      $region29: #{basic_block_forward.2} parent=23 // pred_check
        %p224 = pneg %p71
      $region30: #{basic_block_forward.2} parent=23 // pred_check_branch
        %226 = sbr.rel (%p224) target = $region32
      $region31: #{basic_block_forward.2} parent=23 // pred_region
        %s227 = sadd.s32 %s18, 1
        %s228 = smul.u32 5, %s227
        %p229 = scmp.lt.s32.totalorder %s228, 29
        %s230 = scalar_select %p229, %s228, 29
        %s231 = smul.addr %s230, 4
        %s232 = scalar_lea.vmem %s1, %s231
        %s233 = sadd.s32 %s18, 1
        %s234 = smul.u32 5, %s233
      $region32: #{basic_block_forward.2} parent=23 // pred_fallthru
        _
      // Predicated region
      $region33: #{basic_block_forward.2} parent=23 // pred_check
        %p235 = pneg %p149
      $region34: #{basic_block_forward.2} parent=23 // pred_check_branch
        %237 = sbr.rel (%p235) target = $region36
      $region35: #{basic_block_forward.2} parent=23 // pred_region
        %s238 = smul.u32 5, %s18
        %p239 = scmp.lt.s32.totalorder %s238, 24
        %s240 = scalar_select %p239, %s238, 24
        %s241 = smul.addr %s240, 8
        %s242 = scalar_lea.vmem %s4, %s241
        %s243 = smul.u32 5, %s18
      $region36: #{basic_block_forward.2} parent=23 // pred_fallthru
        _
    $region24: #{basic_block_forward.2} parent=5 // pred_fallthru
      _
    %p244 = scmp.le.s32.totalorder 1, %s11
    %p245 = scmp.lt.s32.totalorder %s11, 6
    %p246 = pnand %p244, %p245
    %p247 = pneg %p246
    // Predicated region
    $region37: #{basic_block_forward.2} parent=5 // pred_check
      _
    $region38: #{basic_block_forward.2} parent=5 // pred_check_branch
      %249 = sbr.rel (%p246) target = $region40
    $region39: #{basic_block_forward.2} parent=5 // pred_region
      %s250 = ssub.s32 %s11, 1
      %s251 = smul.u32 5, %s20
      %p252 = scmp.lt.s32.totalorder %s251, 29
      %s253 = scalar_select %p252, %s251, 29
      %s254 = smul.addr %s253, 4
      %s255 = scalar_lea.vmem %s0, %s254
      %p256 = pneg %p49
      %p257 = pneg %p46
      %s258 = sadd.s32 %s20, 1
      %s259 = smul.u32 5, %s258
      %p260 = scmp.lt.s32.totalorder %s259, 29
      %s261 = scalar_select %p260, %s259, 29
      %s262 = smul.addr %s261, 4
      %s263 = scalar_lea.vmem %s1, %s262
      %p264 = pneg %p77
      %p265 = pneg %p74
      %p266 = scmp.lt.s32.totalorder %s21, 0
      %s267 = scalar_select %p266, %s21, 0
      %s268 = smul.addr %s267, 4
      %s269 = scalar_lea.vmem %s2, %s268
      %p270 = pneg %p103
      %p271 = pneg %p100
      %p272 = scmp.lt.s32.totalorder %s21, 0
      %s273 = scalar_select %p272, %s21, 0
      %s274 = scalar_lea.vmem %s3, %s273
      %p275 = pneg %p129
      %p276 = pneg %p126
      %s277 = smul.u32 5, %s20
      %p278 = scmp.lt.s32.totalorder %s277, 24
      %s279 = scalar_select %p278, %s277, 24
      %s280 = smul.addr %s279, 8
      %s281 = scalar_lea.vmem %s4, %s280
      %p282 = pneg %p155
      %p283 = pneg %p152
      %p284 = pneg %p183
      %p285 = pneg %p180
      %s286 = smul.u32 5, %s20
      %p287 = scmp.lt.s32.totalorder %s286, 24
      %s288 = scalar_select %p287, %s286, 24
      %p289 = scmp.lt.s32.totalorder %s21, 0
      %s290 = scalar_select %p289, %s21, 0
      %s291 = sadd.s32 %s290, %s288
      %s292 = smul.addr %s291, 4
      %s293 = scalar_lea.vmem %s5, %s292
      %s294 = smul.u32 5, %s20
      %p295 = scmp.lt.s32.totalorder %s294, 29
      %s296 = scalar_select %p295, %s294, 29
      %s297 = smul.addr %s296, 4
      %s298 = scalar_lea.vmem %s0, %s297
      %s299 = smul.u32 5, %s20
      %s300 = sadd.s32 %s20, 1
      %s301 = smul.u32 5, %s300
      %p302 = scmp.lt.s32.totalorder %s301, 29
      %s303 = scalar_select %p302, %s301, 29
      %s304 = smul.addr %s303, 4
      %s305 = scalar_lea.vmem %s1, %s304
      %s306 = sadd.s32 %s20, 1
      %s307 = smul.u32 5, %s306
      %p308 = scmp.lt.s32.totalorder %s21, 0
      %s309 = scalar_select %p308, %s21, 0
      %s310 = smul.addr %s309, 4
      %s311 = scalar_lea.vmem %s2, %s310
      %p312 = scmp.lt.s32.totalorder %s21, 0
      %s313 = scalar_select %p312, %s21, 0
      %s314 = scalar_lea.vmem %s3, %s313
      %s315 = smul.u32 5, %s20
      %p316 = scmp.lt.s32.totalorder %s315, 24
      %s317 = scalar_select %p316, %s315, 24
      %s318 = smul.addr %s317, 8
      %s319 = scalar_lea.vmem %s4, %s318
      %s320 = smul.u32 5, %s20
      %s321 = smul.u32 5, %s20
      %p322 = scmp.lt.s32.totalorder %s321, 24
      %s323 = scalar_select %p322, %s321, 24
      %p324 = scmp.lt.s32.totalorder %s21, 0
      %s325 = scalar_select %p324, %s21, 0
      %s326 = sadd.s32 %s325, %s323
      %s327 = smul.addr %s326, 4
      %s328 = scalar_lea.vmem %s5, %s327
      %s329 = smul.u32 5, %s20
      %v331 = vld [vmem:[%s298] sm:$0xf]
      %v332 = vld [vmem:[%s298 + $0x4] sm:$0xf]
      %v333 = vld [vmem:[%s298 + $0x8] sm:$0xf]
      %v334 = vld [vmem:[%s298 + $0xc] sm:$0xf]
      %v335 = vld [vmem:[%s298 + $0x10] sm:$0xf]
      %v341 = vunpack.c.l.b16 %v331
      %v342 = vunpack.c.l.b16 %v332
      %v343 = vunpack.c.l.b16 %v333
      %v344 = vunpack.c.l.b16 %v334
      %v345 = vunpack.c.l.b16 %v335
      %v346 = vpack.c.b16 %v342, %v341
      %v347 = vpack.c.b16 %v344, %v343
      %v348 = vpack.c.b16 %v345, %v345
      %352 = vst [vmem:[#allocation2] sm:$0xff] %v346
      %353 = vst [vmem:[#allocation2 + $0x8] sm:$0xff] %v347
      %354 = vst [vmem:[#allocation2 + $0x10] sm:$0xf] %v348
      %v355 = vld [vmem:[%s305] sm:$0xf]
      %v356 = vld [vmem:[%s305 + $0x4] sm:$0xf]
      %v357 = vld [vmem:[%s305 + $0x8] sm:$0xf]
      %v358 = vld [vmem:[%s305 + $0xc] sm:$0xf]
      %v359 = vld [vmem:[%s305 + $0x10] sm:$0xf]
      %v365 = vunpack.c.l.b16 %v355
      %v366 = vunpack.c.l.b16 %v356
      %v367 = vunpack.c.l.b16 %v357
      %v368 = vunpack.c.l.b16 %v358
      %v369 = vunpack.c.l.b16 %v359
      %v370 = vpack.c.b16 %v365, %v365
      %v371 = vpack.c.b16 %v367, %v366
      %v372 = vpack.c.b16 %v369, %v368
      %376 = vst [vmem:[#allocation2 + $0x10] sm:$0xf0] %v370
      %377 = vst [vmem:[#allocation2 + $0x18] sm:$0xff] %v371
      %378 = vst [vmem:[#allocation2 + $0x20] sm:$0xff] %v372
      %v379 = vld [vmem:[#allocation2] sm:$0xff]
      %v380 = vld [vmem:[#allocation2 + $0x8] sm:$0xff]
      %v381 = vld [vmem:[#allocation2 + $0x10] sm:$0xf]
      %v382 = vld [vmem:[%s311] sm:$0xf]
      %v383 = vld [vmem:[%s311 + $0x4] sm:$0xf]
      %v384 = vld [vmem:[%s311 + $0x8] sm:$0xf]
      %v385 = vld [vmem:[%s311 + $0xc] sm:$0xf]
      %v386 = vld [vmem:[%s311 + $0x10] sm:$0xf]
      %v387 = vld [vmem:[%s311 + $0x14] sm:$0xf]
      %v388 = vld [vmem:[%s311 + $0x18] sm:$0xf]
      %v389 = vld [vmem:[%s311 + $0x1c] sm:$0xf]
      %v390 = vld [vmem:[%s311 + $0x20] sm:$0xf]
      %v391 = vld [vmem:[%s311 + $0x24] sm:$0xf]
      %v392 = vld [vmem:[%s311 + $0x28] sm:$0xf]
      %v393 = vld [vmem:[%s311 + $0x2c] sm:$0xf]
      %v394 = vld [vmem:[%s311 + $0x30] sm:$0xf]
      %v395 = vld [vmem:[%s311 + $0x34] sm:$0xf]
      %v396 = vld [vmem:[%s311 + $0x38] sm:$0xf]
      %v397 = vld [vmem:[%s311 + $0x3c] sm:$0xf]
      %v398 = vld [vmem:[#allocation2 + $0x10] sm:$0x1f]
      %s399 = scalar_lea.vmem %s311, 64
      %v400 = vld [vmem:[%s399] sm:$0xf]
      %v401 = vld [vmem:[%s399 + $0x4] sm:$0xf]
      %v402 = vld [vmem:[%s399 + $0x8] sm:$0xf]
      %v403 = vld [vmem:[%s399 + $0xc] sm:$0xf]
      %v404 = vld [vmem:[%s399 + $0x10] sm:$0xf]
      %v405 = vld [vmem:[%s399 + $0x14] sm:$0xf]
      %v406 = vld [vmem:[%s399 + $0x18] sm:$0xf]
      %v407 = vld [vmem:[%s399 + $0x1c] sm:$0xf]
      %v408 = vld [vmem:[%s399 + $0x20] sm:$0xf]
      %v409 = vld [vmem:[%s399 + $0x24] sm:$0xf]
      %v410 = vld [vmem:[%s399 + $0x28] sm:$0xf]
      %v411 = vld [vmem:[%s399 + $0x2c] sm:$0xf]
      %v412 = vld [vmem:[%s399 + $0x30] sm:$0xf]
      %v413 = vld [vmem:[%s399 + $0x34] sm:$0xf]
      %v414 = vld [vmem:[%s399 + $0x38] sm:$0xf]
      %v415 = vld [vmem:[%s399 + $0x3c] sm:$0xf]
      %vm416 = vsmask.f32 7424
      %v418 = vshrl.u32 %v379, 16
      %v420 = vshll.u32 %v379, 16
      %v422 = vrot.slane %v420, 1
      %v423 = vor.u32 %v418, %v422
      %v425 = vshll.u32 %v380, 16
      %v427 = vrot.slane %v425, 1
      %v428 = vsel %vm416, %v423, %v427
      %v429 = vshrl.u32 %v380, 16
      %v431 = vor.u32 %v429, %v427
      %v433 = vshll.u32 %v398, 16
      %v435 = vrot.slane %v433, 1
      %v436 = vsel %vm416, %v431, %v435
      %v437 = vshrl.u32 %v398, 16
      %v439 = vor.u32 %v437, %v435
      %v459 = vunpack.c.l.b16 %v400
      %v460 = vunpack.c.l.b16 %v401
      %v461 = vunpack.c.l.b16 %v402
      %v462 = vunpack.c.l.b16 %v403
      %v463 = vunpack.c.l.b16 %v404
      %v464 = vunpack.c.l.b16 %v405
      %v465 = vunpack.c.l.b16 %v406
      %v466 = vunpack.c.l.b16 %v407
      %v467 = vunpack.c.l.b16 %v408
      %v468 = vunpack.c.l.b16 %v409
      %v469 = vunpack.c.l.b16 %v410
      %v470 = vunpack.c.l.b16 %v411
      %v471 = vunpack.c.l.b16 %v412
      %v472 = vunpack.c.l.b16 %v413
      %v473 = vunpack.c.l.b16 %v414
      %v474 = vunpack.c.l.b16 %v415
      %v475 = vpack.c.b16 %v460, %v459
      %v476 = vpack.c.b16 %v462, %v461
      %v477 = vpack.c.b16 %v464, %v463
      %v478 = vpack.c.b16 %v466, %v465
      %v479 = vpack.c.b16 %v468, %v467
      %v480 = vpack.c.b16 %v470, %v469
      %v481 = vpack.c.b16 %v472, %v471
      %v482 = vpack.c.b16 %v474, %v473
      %491 = vmatprep.subr.bf16.mxu0 0
      %492 = vmatpush1.bf16.msra.mxu0 %v475
      %493 = vmatprep.subr.bf16.mxu0 0
      %494 = vmatpush1.bf16.msra.mxu0 %v476
      %495 = vmatprep.subr.bf16.mxu0 0
      %496 = vmatpush1.bf16.msra.mxu0 %v477
      %497 = vmatprep.subr.bf16.mxu0 0
      %498 = vmatpush1.bf16.msra.mxu0 %v478
      %499 = vmatprep.subr.bf16.mxu0 0
      %500 = vmatpush1.bf16.msra.mxu0 %v479
      %501 = vmatprep.subr.bf16.mxu0 0
      %502 = vmatpush1.bf16.msra.mxu0 %v480
      %503 = vmatprep.subr.bf16.mxu0 0
      %504 = vmatpush1.bf16.msra.mxu0 %v481
      %505 = vmatprep.subr.bf16.mxu0 0
      %506 = vmatpush1.bf16.msra.mxu0 %v482
      %507 = vmatprep.subr.bf16.mxu0 0
      %508 = vmatpush1.bf16.msra.mxu0 0
      %509 = vmatprep.subr.bf16.mxu0 0
      %510 = vmatpush1.bf16.msra.mxu0 0
      %511 = vmatprep.subr.bf16.mxu0 0
      %512 = vmatpush1.bf16.msra.mxu0 0
      %513 = vmatprep.subr.bf16.mxu0 0
      %514 = vmatpush1.bf16.msra.mxu0 0
      %515 = vmatprep.subr.bf16.mxu0 0
      %516 = vmatpush1.bf16.msra.mxu0 0
      %517 = vmatprep.subr.bf16.mxu0 0
      %518 = vmatpush1.bf16.msra.mxu0 0
      %519 = vmatprep.subr.bf16.mxu0 0
      %520 = vmatpush1.bf16.msra.mxu0 0
      %521 = vmatprep.subr.bf16.mxu0 0
      %522 = vmatpush1.bf16.msra.mxu0 0
      %523 = vmatprep.mubr.bf16.mxu0 0
      %524 = vmatmul.mubr.bf16.gmra.mrb[0].mxu0 %v428
      %v525 = vpop.f32.mrb[0].mxu0
      %v526 = vadd.f32 0.0, %v525
      %v527 = vpop.f32.mrb[0].mxu0
      %v528 = vpop.f32.mrb[0].mxu0
      %v529 = vadd.f32 0.0, %v528
      %v530 = vpop.f32.mrb[0].mxu0
      %531 = vmatprep.mubr.bf16.mxu0 0
      %532 = vmatmul.mubr.bf16.gmra.mrb[0].mxu0 %v436
      %v533 = vpop.f32.mrb[0].mxu0
      %v534 = vadd.f32 0.0, %v533
      %v535 = vpop.f32.mrb[0].mxu0
      %v536 = vpop.f32.mrb[0].mxu0
      %v537 = vadd.f32 0.0, %v536
      %v538 = vpop.f32.mrb[0].mxu0
      %539 = vmatprep.mubr.bf16.mxu0 0
      %540 = vmatmul.mubr.bf16.gmra.mrb[0].mxu0 %v439
      %v541 = vpop.f32.mrb[0].mxu0
      %v542 = vadd.f32 0.0, %v541
      %v543 = vpop.f32.mrb[0].mxu0
      %v544 = vpop.f32.mrb[0].mxu0
      %v545 = vpop.f32.mrb[0].mxu0
      %546 = vdwg.mxu0
      %v563 = vunpack.c.l.b16 %v382
      %v564 = vunpack.c.l.b16 %v383
      %v565 = vunpack.c.l.b16 %v384
      %v566 = vunpack.c.l.b16 %v385
      %v567 = vunpack.c.l.b16 %v386
      %v568 = vunpack.c.l.b16 %v387
      %v569 = vunpack.c.l.b16 %v388
      %v570 = vunpack.c.l.b16 %v389
      %v571 = vunpack.c.l.b16 %v390
      %v572 = vunpack.c.l.b16 %v391
      %v573 = vunpack.c.l.b16 %v392
      %v574 = vunpack.c.l.b16 %v393
      %v575 = vunpack.c.l.b16 %v394
      %v576 = vunpack.c.l.b16 %v395
      %v577 = vunpack.c.l.b16 %v396
      %v578 = vunpack.c.l.b16 %v397
      %v579 = vpack.c.b16 %v564, %v563
      %v580 = vpack.c.b16 %v566, %v565
      %v581 = vpack.c.b16 %v568, %v567
      %v582 = vpack.c.b16 %v570, %v569
      %v583 = vpack.c.b16 %v572, %v571
      %v584 = vpack.c.b16 %v574, %v573
      %v585 = vpack.c.b16 %v576, %v575
      %v586 = vpack.c.b16 %v578, %v577
      %595 = vmatprep.subr.bf16.mxu0 0
      %596 = vmatpush1.bf16.msra.mxu0 %v579
      %597 = vmatprep.subr.bf16.mxu0 0
      %598 = vmatpush1.bf16.msra.mxu0 %v580
      %599 = vmatprep.subr.bf16.mxu0 0
      %600 = vmatpush1.bf16.msra.mxu0 %v581
      %601 = vmatprep.subr.bf16.mxu0 0
      %602 = vmatpush1.bf16.msra.mxu0 %v582
      %603 = vmatprep.subr.bf16.mxu0 0
      %604 = vmatpush1.bf16.msra.mxu0 %v583
      %605 = vmatprep.subr.bf16.mxu0 0
      %606 = vmatpush1.bf16.msra.mxu0 %v584
      %607 = vmatprep.subr.bf16.mxu0 0
      %608 = vmatpush1.bf16.msra.mxu0 %v585
      %609 = vmatprep.subr.bf16.mxu0 0
      %610 = vmatpush1.bf16.msra.mxu0 %v586
      %611 = vmatprep.subr.bf16.mxu0 0
      %612 = vmatpush1.bf16.msra.mxu0 0
      %613 = vmatprep.subr.bf16.mxu0 0
      %614 = vmatpush1.bf16.msra.mxu0 0
      %615 = vmatprep.subr.bf16.mxu0 0
      %616 = vmatpush1.bf16.msra.mxu0 0
      %617 = vmatprep.subr.bf16.mxu0 0
      %618 = vmatpush1.bf16.msra.mxu0 0
      %619 = vmatprep.subr.bf16.mxu0 0
      %620 = vmatpush1.bf16.msra.mxu0 0
      %621 = vmatprep.subr.bf16.mxu0 0
      %622 = vmatpush1.bf16.msra.mxu0 0
      %623 = vmatprep.subr.bf16.mxu0 0
      %624 = vmatpush1.bf16.msra.mxu0 0
      %625 = vmatprep.subr.bf16.mxu0 0
      %626 = vmatpush1.bf16.msra.mxu0 0
      %627 = vmatprep.mubr.bf16.mxu0 0
      %628 = vmatmul.mubr.bf16.gmra.mrb[0].mxu0 %v379
      %v629 = vpop.f32.mrb[0].mxu0
      %v630 = vadd.f32 %v526, %v629
      %v631 = vpop.f32.mrb[0].mxu0
      %v632 = vpop.f32.mrb[0].mxu0
      %v633 = vadd.f32 %v529, %v632
      %v634 = vpop.f32.mrb[0].mxu0
      %635 = vmatprep.mubr.bf16.mxu0 0
      %636 = vmatmul.mubr.bf16.gmra.mrb[0].mxu0 %v380
      %v637 = vpop.f32.mrb[0].mxu0
      %v638 = vadd.f32 %v534, %v637
      %v639 = vpop.f32.mrb[0].mxu0
      %v640 = vpop.f32.mrb[0].mxu0
      %v641 = vadd.f32 %v537, %v640
      %v642 = vpop.f32.mrb[0].mxu0
      %643 = vmatprep.mubr.bf16.mxu0 0
      %644 = vmatmul.mubr.bf16.gmra.mrb[0].mxu0 %v381
      %v645 = vpop.f32.mrb[0].mxu0
      %v646 = vadd.f32 %v542, %v645
      %v647 = vpop.f32.mrb[0].mxu0
      %v648 = vpop.f32.mrb[0].mxu0
      %v649 = vpop.f32.mrb[0].mxu0
      %650 = vdwg.mxu0
      %v651 = vld [vmem:[#allocation2] sm:$0xe0]
      %v652 = vld [vmem:[#allocation2 + $0x8] sm:$0xff]
      %v653 = vld [vmem:[#allocation2 + $0x10] sm:$0xff]
      %v654 = vld [vmem:[#allocation2 + $0x18] sm:$0x1]
      %s655 = scalar_lea.vmem %s311, 128
      %v656 = vld [vmem:[%s655] sm:$0xf]
      %v657 = vld [vmem:[%s655 + $0x4] sm:$0xf]
      %v658 = vld [vmem:[%s655 + $0x8] sm:$0xf]
      %v659 = vld [vmem:[%s655 + $0xc] sm:$0xf]
      %v660 = vld [vmem:[%s655 + $0x10] sm:$0xf]
      %v661 = vld [vmem:[%s655 + $0x14] sm:$0xf]
      %v662 = vld [vmem:[%s655 + $0x18] sm:$0xf]
      %v663 = vld [vmem:[%s655 + $0x1c] sm:$0xf]
      %v664 = vld [vmem:[%s655 + $0x20] sm:$0xf]
      %v665 = vld [vmem:[%s655 + $0x24] sm:$0xf]
      %v666 = vld [vmem:[%s655 + $0x28] sm:$0xf]
      %v667 = vld [vmem:[%s655 + $0x2c] sm:$0xf]
      %v668 = vld [vmem:[%s655 + $0x30] sm:$0xf]
      %v669 = vld [vmem:[%s655 + $0x34] sm:$0xf]
      %v670 = vld [vmem:[%s655 + $0x38] sm:$0xf]
      %v671 = vld [vmem:[%s655 + $0x3c] sm:$0xf]
      %vm676 = vcmask 1042432
      %v677 = vrot.slane %v651, 5
      %v678 = vrot.slane %v652, 5
      %v679 = vsel %vm676, %v677, %v678
      %v680 = vrot.slane %v653, 5
      %v681 = vsel %vm676, %v678, %v680
      %v682 = vrot.slane %v654, 5
      %v683 = vsel %vm676, %v680, %v682
      %v703 = vunpack.c.l.b16 %v656
      %v704 = vunpack.c.l.b16 %v657
      %v705 = vunpack.c.l.b16 %v658
      %v706 = vunpack.c.l.b16 %v659
      %v707 = vunpack.c.l.b16 %v660
      %v708 = vunpack.c.l.b16 %v661
      %v709 = vunpack.c.l.b16 %v662
      %v710 = vunpack.c.l.b16 %v663
      %v711 = vunpack.c.l.b16 %v664
      %v712 = vunpack.c.l.b16 %v665
      %v713 = vunpack.c.l.b16 %v666
      %v714 = vunpack.c.l.b16 %v667
      %v715 = vunpack.c.l.b16 %v668
      %v716 = vunpack.c.l.b16 %v669
      %v717 = vunpack.c.l.b16 %v670
      %v718 = vunpack.c.l.b16 %v671
      %v719 = vpack.c.b16 %v704, %v703
      %v720 = vpack.c.b16 %v706, %v705
      %v721 = vpack.c.b16 %v708, %v707
      %v722 = vpack.c.b16 %v710, %v709
      %v723 = vpack.c.b16 %v712, %v711
      %v724 = vpack.c.b16 %v714, %v713
      %v725 = vpack.c.b16 %v716, %v715
      %v726 = vpack.c.b16 %v718, %v717
      %735 = vmatprep.subr.bf16.mxu0 0
      %736 = vmatpush1.bf16.msra.mxu0 %v719
      %737 = vmatprep.subr.bf16.mxu0 0
      %738 = vmatpush1.bf16.msra.mxu0 %v720
      %739 = vmatprep.subr.bf16.mxu0 0
      %740 = vmatpush1.bf16.msra.mxu0 %v721
      %741 = vmatprep.subr.bf16.mxu0 0
      %742 = vmatpush1.bf16.msra.mxu0 %v722
      %743 = vmatprep.subr.bf16.mxu0 0
      %744 = vmatpush1.bf16.msra.mxu0 %v723
      %745 = vmatprep.subr.bf16.mxu0 0
      %746 = vmatpush1.bf16.msra.mxu0 %v724
      %747 = vmatprep.subr.bf16.mxu0 0
      %748 = vmatpush1.bf16.msra.mxu0 %v725
      %749 = vmatprep.subr.bf16.mxu0 0
      %750 = vmatpush1.bf16.msra.mxu0 %v726
      %751 = vmatprep.subr.bf16.mxu0 0
      %752 = vmatpush1.bf16.msra.mxu0 0
      %753 = vmatprep.subr.bf16.mxu0 0
      %754 = vmatpush1.bf16.msra.mxu0 0
      %755 = vmatprep.subr.bf16.mxu0 0
      %756 = vmatpush1.bf16.msra.mxu0 0
      %757 = vmatprep.subr.bf16.mxu0 0
      %758 = vmatpush1.bf16.msra.mxu0 0
      %759 = vmatprep.subr.bf16.mxu0 0
      %760 = vmatpush1.bf16.msra.mxu0 0
      %761 = vmatprep.subr.bf16.mxu0 0
      %762 = vmatpush1.bf16.msra.mxu0 0
      %763 = vmatprep.subr.bf16.mxu0 0
      %764 = vmatpush1.bf16.msra.mxu0 0
      %765 = vmatprep.subr.bf16.mxu0 0
      %766 = vmatpush1.bf16.msra.mxu0 0
      %767 = vmatprep.mubr.bf16.mxu0 0
      %768 = vmatmul.mubr.bf16.gmra.mrb[0].mxu0 %v679
      %v769 = vpop.f32.mrb[0].mxu0
      %v770 = vadd.f32 0.0, %v769
      %v771 = vpop.f32.mrb[0].mxu0
      %v772 = vpop.f32.mrb[0].mxu0
      %v773 = vadd.f32 0.0, %v772
      %v774 = vpop.f32.mrb[0].mxu0
      %775 = vmatprep.mubr.bf16.mxu0 0
      %776 = vmatmul.mubr.bf16.gmra.mrb[0].mxu0 %v681
      %v777 = vpop.f32.mrb[0].mxu0
      %v778 = vadd.f32 0.0, %v777
      %v779 = vpop.f32.mrb[0].mxu0
      %v780 = vpop.f32.mrb[0].mxu0
      %v781 = vadd.f32 0.0, %v780
      %v782 = vpop.f32.mrb[0].mxu0
      %783 = vmatprep.mubr.bf16.mxu0 0
      %784 = vmatmul.mubr.bf16.gmra.mrb[0].mxu0 %v683
      %v785 = vpop.f32.mrb[0].mxu0
      %v786 = vadd.f32 0.0, %v785
      %v787 = vpop.f32.mrb[0].mxu0
      %v788 = vpop.f32.mrb[0].mxu0
      %v789 = vpop.f32.mrb[0].mxu0
      %790 = vdwg.mxu0
      %v791 = vadd.f32 %v630, %v770
      %v792 = vadd.f32 %v633, %v773
      %v793 = vadd.f32 %v638, %v778
      %v794 = vadd.f32 %v641, %v781
      %v795 = vadd.f32 %v646, %v786
      %v796 = vld [vmem:[#allocation2 + $0x18] sm:$0x3]
      %s797 = scalar_lea.vmem %s311, 192
      %v798 = vld [vmem:[%s797] sm:$0xf]
      %v799 = vld [vmem:[%s797 + $0x4] sm:$0xf]
      %v800 = vld [vmem:[%s797 + $0x8] sm:$0xf]
      %v801 = vld [vmem:[%s797 + $0xc] sm:$0xf]
      %v802 = vld [vmem:[%s797 + $0x10] sm:$0xf]
      %v803 = vld [vmem:[%s797 + $0x14] sm:$0xf]
      %v804 = vld [vmem:[%s797 + $0x18] sm:$0xf]
      %v805 = vld [vmem:[%s797 + $0x1c] sm:$0xf]
      %v806 = vld [vmem:[%s797 + $0x20] sm:$0xf]
      %v807 = vld [vmem:[%s797 + $0x24] sm:$0xf]
      %v808 = vld [vmem:[%s797 + $0x28] sm:$0xf]
      %v809 = vld [vmem:[%s797 + $0x2c] sm:$0xf]
      %v810 = vld [vmem:[%s797 + $0x30] sm:$0xf]
      %v811 = vld [vmem:[%s797 + $0x34] sm:$0xf]
      %v812 = vld [vmem:[%s797 + $0x38] sm:$0xf]
      %v813 = vld [vmem:[%s797 + $0x3c] sm:$0xf]
      %vm814 = vsmask.f32 2304
      %v816 = vshrl.u32 %v651, 16
      %v818 = vrot.slane %v816, 5
      %v819 = vshll.u32 %v651, 16
      %v821 = vrot.slane %v819, 6
      %v822 = vor.u32 %v818, %v821
      %v824 = vshrl.u32 %v652, 16
      %v826 = vrot.slane %v824, 5
      %v827 = vshll.u32 %v652, 16
      %v829 = vrot.slane %v827, 6
      %v830 = vor.u32 %v826, %v829
      %v831 = vsel %vm814, %v822, %v830
      %v833 = vshrl.u32 %v653, 16
      %v835 = vrot.slane %v833, 5
      %v836 = vshll.u32 %v653, 16
      %v838 = vrot.slane %v836, 6
      %v839 = vor.u32 %v835, %v838
      %v840 = vsel %vm814, %v830, %v839
      %v842 = vshrl.u32 %v796, 16
      %v844 = vrot.slane %v842, 5
      %v845 = vshll.u32 %v796, 16
      %v847 = vrot.slane %v845, 6
      %v848 = vor.u32 %v844, %v847
      %v849 = vsel %vm814, %v839, %v848
      %v869 = vunpack.c.l.b16 %v798
      %v870 = vunpack.c.l.b16 %v799
      %v871 = vunpack.c.l.b16 %v800
      %v872 = vunpack.c.l.b16 %v801
      %v873 = vunpack.c.l.b16 %v802
      %v874 = vunpack.c.l.b16 %v803
      %v875 = vunpack.c.l.b16 %v804
      %v876 = vunpack.c.l.b16 %v805
      %v877 = vunpack.c.l.b16 %v806
      %v878 = vunpack.c.l.b16 %v807
      %v879 = vunpack.c.l.b16 %v808
      %v880 = vunpack.c.l.b16 %v809
      %v881 = vunpack.c.l.b16 %v810
      %v882 = vunpack.c.l.b16 %v811
      %v883 = vunpack.c.l.b16 %v812
      %v884 = vunpack.c.l.b16 %v813
      %v885 = vpack.c.b16 %v870, %v869
      %v886 = vpack.c.b16 %v872, %v871
      %v887 = vpack.c.b16 %v874, %v873
      %v888 = vpack.c.b16 %v876, %v875
      %v889 = vpack.c.b16 %v878, %v877
      %v890 = vpack.c.b16 %v880, %v879
      %v891 = vpack.c.b16 %v882, %v881
      %v892 = vpack.c.b16 %v884, %v883
      %901 = vmatprep.subr.bf16.mxu0 0
      %902 = vmatpush1.bf16.msra.mxu0 %v885
      %903 = vmatprep.subr.bf16.mxu0 0
      %904 = vmatpush1.bf16.msra.mxu0 %v886
      %905 = vmatprep.subr.bf16.mxu0 0
      %906 = vmatpush1.bf16.msra.mxu0 %v887
      %907 = vmatprep.subr.bf16.mxu0 0
      %908 = vmatpush1.bf16.msra.mxu0 %v888
      %909 = vmatprep.subr.bf16.mxu0 0
      %910 = vmatpush1.bf16.msra.mxu0 %v889
      %911 = vmatprep.subr.bf16.mxu0 0
      %912 = vmatpush1.bf16.msra.mxu0 %v890
      %913 = vmatprep.subr.bf16.mxu0 0
      %914 = vmatpush1.bf16.msra.mxu0 %v891
      %915 = vmatprep.subr.bf16.mxu0 0
      %916 = vmatpush1.bf16.msra.mxu0 %v892
      %917 = vmatprep.subr.bf16.mxu0 0
      %918 = vmatpush1.bf16.msra.mxu0 0
      %919 = vmatprep.subr.bf16.mxu0 0
      %920 = vmatpush1.bf16.msra.mxu0 0
      %921 = vmatprep.subr.bf16.mxu0 0
      %922 = vmatpush1.bf16.msra.mxu0 0
      %923 = vmatprep.subr.bf16.mxu0 0
      %924 = vmatpush1.bf16.msra.mxu0 0
      %925 = vmatprep.subr.bf16.mxu0 0
      %926 = vmatpush1.bf16.msra.mxu0 0
      %927 = vmatprep.subr.bf16.mxu0 0
      %928 = vmatpush1.bf16.msra.mxu0 0
      %929 = vmatprep.subr.bf16.mxu0 0
      %930 = vmatpush1.bf16.msra.mxu0 0
      %931 = vmatprep.subr.bf16.mxu0 0
      %932 = vmatpush1.bf16.msra.mxu0 0
      %933 = vmatprep.mubr.bf16.mxu0 0
      %934 = vmatmul.mubr.bf16.gmra.mrb[0].mxu0 %v831
      %v935 = vpop.f32.mrb[0].mxu0
      %v936 = vadd.f32 0.0, %v935
      %v937 = vpop.f32.mrb[0].mxu0
      %v938 = vpop.f32.mrb[0].mxu0
      %v939 = vadd.f32 0.0, %v938
      %v940 = vpop.f32.mrb[0].mxu0
      %941 = vmatprep.mubr.bf16.mxu0 0
      %942 = vmatmul.mubr.bf16.gmra.mrb[0].mxu0 %v840
      %v943 = vpop.f32.mrb[0].mxu0
      %v944 = vadd.f32 0.0, %v943
      %v945 = vpop.f32.mrb[0].mxu0
      %v946 = vpop.f32.mrb[0].mxu0
      %v947 = vadd.f32 0.0, %v946
      %v948 = vpop.f32.mrb[0].mxu0
      %949 = vmatprep.mubr.bf16.mxu0 0
      %950 = vmatmul.mubr.bf16.gmra.mrb[0].mxu0 %v849
      %v951 = vpop.f32.mrb[0].mxu0
      %v952 = vadd.f32 0.0, %v951
      %v953 = vpop.f32.mrb[0].mxu0
      %v954 = vpop.f32.mrb[0].mxu0
      %v955 = vpop.f32.mrb[0].mxu0
      %956 = vdwg.mxu0
      %v957 = vadd.f32 %v791, %v936
      %v958 = vadd.f32 %v792, %v939
      %v959 = vadd.f32 %v793, %v944
      %v960 = vadd.f32 %v794, %v947
      %v961 = vadd.f32 %v795, %v952
      %v962 = vld [vmem:[%s314] sm:$0x1]
      %v964 = vlaneseq
      %v965 = vshrl.u32 %v964, 7
      %v966 = vsub.s32 0, %v965
      %v967 = vrot.slane %v962, %v966
      %v969 = vadd.f32 %v957, %v967
      %v970 = vadd.f32 %v958, %v967
      %v971 = vadd.f32 %v959, %v967
      %v972 = vadd.f32 %v960, %v967
      %v973 = vadd.f32 %v961, %v967
      %v974 = vmax.f32 %v969, 0.0
      %v975 = vmax.f32 %v970, 0.0
      %v976 = vmax.f32 %v971, 0.0
      %v977 = vmax.f32 %v972, 0.0
      %v978 = vmax.f32 %v973, 0.0
      %v979 = vld [vmem:[%s319] sm:$0xff]
      %v980 = vld [vmem:[%s319 + $0x8] sm:$0xff]
      %v981 = vld [vmem:[%s319 + $0x10] sm:$0xff]
      %v982 = vld [vmem:[%s319 + $0x18] sm:$0xff]
      %v983 = vld [vmem:[%s319 + $0x20] sm:$0xff]
      %985 = vset.pattern.permute.xlu0 0
      %986 = vperm.xlu0 %985, %v979
      %v987 = vpop.permute.xlu0 %986
      %990 = vset.pattern.permute.xlu0 0
      %991 = vperm.xlu0 %990, %v980
      %v992 = vpop.permute.xlu0 %991
      %995 = vset.pattern.permute.xlu0 0
      %996 = vperm.xlu0 %995, %v981
      %v997 = vpop.permute.xlu0 %996
      %1000 = vset.pattern.permute.xlu0 0
      %1001 = vperm.xlu0 %1000, %v982
      %v1002 = vpop.permute.xlu0 %1001
      %1005 = vset.pattern.permute.xlu0 0
      %1006 = vperm.xlu0 %1005, %v983
      %v1007 = vpop.permute.xlu0 %1006
      %v1009 = vmul.f32 %v974, %v987
      %v1010 = vmul.f32 %v975, %v992
      %v1011 = vmul.f32 %v976, %v997
      %v1012 = vmul.f32 %v977, %v1002
      %v1013 = vmul.f32 %v978, %v1007
      %v1014 = vpack.c.bf16 %v1010, %v1009
      %v1015 = vpack.c.bf16 %v1012, %v1011
      %v1016 = vpack.c.bf16 %v1013, %v1013
      %v1020 = vunpack.c.l.b16 %v1014
      %v1021 = vunpack.c.h.b16 %v1014
      %v1022 = vunpack.c.l.b16 %v1015
      %v1023 = vunpack.c.h.b16 %v1015
      %v1024 = vunpack.c.l.b16 %v1016
      %v1025 = vpack.c.b16 %v1020, %v1020
      %v1026 = vpack.c.b16 %v1021, %v1021
      %v1027 = vpack.c.b16 %v1022, %v1022
      %v1028 = vpack.c.b16 %v1023, %v1023
      %v1029 = vpack.c.b16 %v1024, %v1024
      %1035 = vst [vmem:[%s328] sm:$0xf] %v1025
      %1036 = vst [vmem:[%s328 + $0x4] sm:$0xf] %v1026
      %1037 = vst [vmem:[%s328 + $0x8] sm:$0xf] %v1027
      %1038 = vst [vmem:[%s328 + $0xc] sm:$0xf] %v1028
      %1039 = vst [vmem:[%s328 + $0x10] sm:$0xf] %v1029
      %s1040 = smul.u32 5, %s20
      %p1041 = scmp.lt.s32.totalorder %s1040, 24
      %s1042 = scalar_select %p1041, %s1040, 24
      %p1043 = scmp.lt.s32.totalorder %s21, 0
      %s1044 = scalar_select %p1043, %s21, 0
      %s1045 = sadd.s32 %s1044, %s1042
      %s1046 = smul.addr %s1045, 4
      %s1047 = scalar_lea.vmem %s5, %s1046
      // Predicated region
      $region41: #{basic_block_forward.2} parent=39 // pred_check
        %p1048 = pneg %p180
      $region42: #{basic_block_forward.2} parent=39 // pred_check_branch
        %1050 = sbr.rel (%p1048) target = $region44
      $region43: #{basic_block_forward.2} parent=39 // pred_region
        %s1051 = smul.u32 5, %s20
      $region44: #{basic_block_forward.2} parent=39 // pred_fallthru
        _
    $region40: #{basic_block_forward.2} parent=5 // pred_fallthru
      _
    %p1052 = scmp.le.s32.totalorder 2, %s11
    // Predicated region
    $region45: #{basic_block_forward.2} parent=5 // pred_check
      %p1053 = pneg %p1052
    $region46: #{basic_block_forward.2} parent=5 // pred_check_branch
      %1055 = sbr.rel (%p1053) target = $region48
    $region47: #{basic_block_forward.2} parent=5 // pred_region
      %s1056 = ssub.s32 %s11, 2
      // Predicated region
      $region49: #{basic_block_forward.2} parent=47 // pred_check
        %p1057 = pneg %p186
      $region50: #{basic_block_forward.2} parent=47 // pred_check_branch
        %1059 = sbr.rel (%p1057) target = $region52
      $region51: #{basic_block_forward.2} parent=47 // pred_region
        %s1060 = smul.u32 5, %s22
        %p1061 = scmp.lt.s32.totalorder %s1060, 24
        %s1062 = scalar_select %p1061, %s1060, 24
        %p1063 = scmp.lt.s32.totalorder %s23, 0
        %s1064 = scalar_select %p1063, %s23, 0
        %s1065 = sadd.s32 %s1064, %s1062
        %s1066 = smul.addr %s1065, 4
        %s1067 = scalar_lea.vmem %s5, %s1066
      $region52: #{basic_block_forward.2} parent=47 // pred_fallthru
        _
    $region48: #{basic_block_forward.2} parent=5 // pred_fallthru
      _
  $region6: #{basic_block_forward.2} parent=0 // loop_footer
    %s15 = sadd.s32 1, %s11
  $region7: #{basic_block_forward.2} parent=0 // loop_footer_branch
    %10 = sbr.rel target = $region3
  $region8: #{basic_block_forward.2} parent=0 // loop_exit
    _

// kernel: basic_block_forward.3
$region0: #{basic_block_forward.3}
  #allocation0 [shape = 'u32[]', space=smem, size = 0x4, offset = 0x4, fixed_abs, tag = 'smem constant byte address 0x4 - core index']
  #allocation1 [shape = 'u32[144,128]{1,0:T(1,128)}', space=vmem, size = 0x12000, scoped, tag = 'internal scratch']
  #allocation2 [shape = 'bf16[80,128]{1,0:T(16,128)(2,1)}', space=vmem, size = 0x5000, scoped, tag = 'scratch operand']
  %s0 = inlined_call_operand.vmem [shape: bf16[240,128], index: 0, kind: input, shape index: {}, may-alias: {0,1}]
  %s1 = inlined_call_operand.vmem [shape: bf16[240,128], index: 1, kind: input, shape index: {}, may-alias: {0,1}]
  %s2 = inlined_call_operand.vmem [shape: bf16[9,128,128], index: 2, kind: input, shape index: {}]
  %s3 = inlined_call_operand.vmem [shape: f32[1,128], index: 3, kind: input, shape index: {}]
  %s4 = inlined_call_operand.vmem [shape: bf16[200,128], index: 4, kind: input, shape index: {}]
  %s5 = inlined_call_operand.vmem [shape: bf16[128,128], index: 5, kind: input, shape index: {}]
  %s6 = inlined_call_operand.vmem [shape: f32[200,128], index: 6, kind: output, shape index: {}]
  %s7 = sld [smem:[#allocation0]]
  $region57: #{basic_block_forward.3} parent=0
    _
  %s9 = ssub.s32 1, %s7
  %s10 = scalar_select 0, %s9, %s7
  loop: start=0, step=1, limit=7
  $region2: #{basic_block_forward.3} parent=0 // loop_pre_header
    _
  $region3: #{basic_block_forward.3} parent=0 // loop_header
    %s12 = sphi 0, %s16
    %p13 = scmp.ge.s32.totalorder %s12, 7
    %s19 = sphi 0, %s31
    %s20 = sphi 0, %s27
    %s21 = sphi 0, %s19
    %s22 = sphi 0, %s20
    %s23 = sphi 0, %s21
    %s24 = sphi 0, %s22
    %s34 = sphi 0, %s36
    %s37 = sphi 0, %s34
    %s38 = sphi 0, %s37
    %s54 = sphi 0, %s38
    %s62 = sphi 0, %s64
    %s65 = sphi 0, %s62
    %s66 = sphi 0, %s65
    %s82 = sphi 0, %s66
    %s88 = sphi 0, %s90
    %s91 = sphi 0, %s88
    %s92 = sphi 0, %s91
    %s108 = sphi 0, %s92
    %s114 = sphi 0, %s116
    %s117 = sphi 0, %s114
    %s118 = sphi 0, %s117
    %s134 = sphi 0, %s118
    %s140 = sphi 0, %s142
    %s143 = sphi 0, %s140
    %s144 = sphi 0, %s143
    %s160 = sphi 0, %s144
    %s166 = sphi 0, %s168
    %s169 = sphi 0, %s166
    %s170 = sphi 0, %s169
    %s186 = sphi 0, %s170
    %s194 = sphi 0, %s196
    %s197 = sphi 0, %s194
    %s198 = sphi 0, %s197
    %s214 = sphi 0, %s198
  $region4: #{basic_block_forward.3} parent=0 // loop_header_branch
    %15 = sbr.rel (%p13) target = $region8
  $region5: #{basic_block_forward.3} parent=0 // loop_body
    %s17 = ssub.s32 %s12, 1
    %s18 = ssub.s32 %s12, 2
    %s25 = sadd.s32 1, %s20
    %p26 = scmp.ge.s32.totalorder %s25, 1
    %s27 = scalar_select %p26, 0, %s25
    %s28 = sadd.s32 1, %s19
    %s29 = scalar_select %p26, %s28, %s19
    %p30 = scmp.ge.s32.totalorder %s29, 5
    %s31 = scalar_select %p30, 0, %s29
    %s32 = ssub.s32 %s19, %s31
    %p33 = scmp.eq.s32.totalorder %s32, 0
    %s35 = sadd.s32 %s34, 1
    %s36 = scalar_select %p33, %s34, %s35
    %p39 = pneg %p33
    %p40 = scmp.eq.s32.totalorder %s12, 4
    %p41 = por %p39, %p40
    %p42 = scmp.ne.s32.totalorder %s34, %s37
    %p43 = scmp.eq.s32.totalorder %s12, 0
    %p44 = por %p42, %p43
    %p45 = scmp.ne.s32.totalorder %s34, %s37
    %p46 = scmp.eq.s32.totalorder %s17, 4
    %p47 = por %p45, %p46
    %p48 = scmp.ne.s32.totalorder %s37, %s38
    %p49 = scmp.eq.s32.totalorder %s17, 0
    %p50 = por %p48, %p49
    %p51 = scmp.ne.s32.totalorder %s37, %s38
    %p52 = scmp.eq.s32.totalorder %s18, 4
    %p53 = por %p51, %p52
    %p55 = scmp.ne.s32.totalorder %s38, %s54
    %p56 = scmp.eq.s32.totalorder %s18, 0
    %p57 = por %p55, %p56
    %s58 = sadd.s32 %s19, 1
    %s59 = sadd.s32 %s31, 1
    %s60 = ssub.s32 %s58, %s59
    %p61 = scmp.eq.s32.totalorder %s60, 0
    %s63 = sadd.s32 %s62, 1
    %s64 = scalar_select %p61, %s62, %s63
    %p67 = pneg %p61
    %p68 = scmp.eq.s32.totalorder %s12, 4
    %p69 = por %p67, %p68
    %p70 = scmp.ne.s32.totalorder %s62, %s65
    %p71 = scmp.eq.s32.totalorder %s12, 0
    %p72 = por %p70, %p71
    %p73 = scmp.ne.s32.totalorder %s62, %s65
    %p74 = scmp.eq.s32.totalorder %s17, 4
    %p75 = por %p73, %p74
    %p76 = scmp.ne.s32.totalorder %s65, %s66
    %p77 = scmp.eq.s32.totalorder %s17, 0
    %p78 = por %p76, %p77
    %p79 = scmp.ne.s32.totalorder %s65, %s66
    %p80 = scmp.eq.s32.totalorder %s18, 4
    %p81 = por %p79, %p80
    %p83 = scmp.ne.s32.totalorder %s66, %s82
    %p84 = scmp.eq.s32.totalorder %s18, 0
    %p85 = por %p83, %p84
    %s86 = ssub.s32 %s20, %s27
    %p87 = scmp.eq.s32.totalorder %s86, 0
    %s89 = sadd.s32 %s88, 1
    %s90 = scalar_select %p87, %s88, %s89
    %p93 = pneg %p87
    %p94 = scmp.eq.s32.totalorder %s12, 4
    %p95 = por %p93, %p94
    %p96 = scmp.ne.s32.totalorder %s88, %s91
    %p97 = scmp.eq.s32.totalorder %s12, 0
    %p98 = por %p96, %p97
    %p99 = scmp.ne.s32.totalorder %s88, %s91
    %p100 = scmp.eq.s32.totalorder %s17, 4
    %p101 = por %p99, %p100
    %p102 = scmp.ne.s32.totalorder %s91, %s92
    %p103 = scmp.eq.s32.totalorder %s17, 0
    %p104 = por %p102, %p103
    %p105 = scmp.ne.s32.totalorder %s91, %s92
    %p106 = scmp.eq.s32.totalorder %s18, 4
    %p107 = por %p105, %p106
    %p109 = scmp.ne.s32.totalorder %s92, %s108
    %p110 = scmp.eq.s32.totalorder %s18, 0
    %p111 = por %p109, %p110
    %s112 = ssub.s32 %s20, %s27
    %p113 = scmp.eq.s32.totalorder %s112, 0
    %s115 = sadd.s32 %s114, 1
    %s116 = scalar_select %p113, %s114, %s115
    %p119 = pneg %p113
    %p120 = scmp.eq.s32.totalorder %s12, 4
    %p121 = por %p119, %p120
    %p122 = scmp.ne.s32.totalorder %s114, %s117
    %p123 = scmp.eq.s32.totalorder %s12, 0
    %p124 = por %p122, %p123
    %p125 = scmp.ne.s32.totalorder %s114, %s117
    %p126 = scmp.eq.s32.totalorder %s17, 4
    %p127 = por %p125, %p126
    %p128 = scmp.ne.s32.totalorder %s117, %s118
    %p129 = scmp.eq.s32.totalorder %s17, 0
    %p130 = por %p128, %p129
    %p131 = scmp.ne.s32.totalorder %s117, %s118
    %p132 = scmp.eq.s32.totalorder %s18, 4
    %p133 = por %p131, %p132
    %p135 = scmp.ne.s32.totalorder %s118, %s134
    %p136 = scmp.eq.s32.totalorder %s18, 0
    %p137 = por %p135, %p136
    %s138 = ssub.s32 %s19, %s31
    %p139 = scmp.eq.s32.totalorder %s138, 0
    %s141 = sadd.s32 %s140, 1
    %s142 = scalar_select %p139, %s140, %s141
    %p145 = pneg %p139
    %p146 = scmp.eq.s32.totalorder %s12, 4
    %p147 = por %p145, %p146
    %p148 = scmp.ne.s32.totalorder %s140, %s143
    %p149 = scmp.eq.s32.totalorder %s12, 0
    %p150 = por %p148, %p149
    %p151 = scmp.ne.s32.totalorder %s140, %s143
    %p152 = scmp.eq.s32.totalorder %s17, 4
    %p153 = por %p151, %p152
    %p154 = scmp.ne.s32.totalorder %s143, %s144
    %p155 = scmp.eq.s32.totalorder %s17, 0
    %p156 = por %p154, %p155
    %p157 = scmp.ne.s32.totalorder %s143, %s144
    %p158 = scmp.eq.s32.totalorder %s18, 4
    %p159 = por %p157, %p158
    %p161 = scmp.ne.s32.totalorder %s144, %s160
    %p162 = scmp.eq.s32.totalorder %s18, 0
    %p163 = por %p161, %p162
    %s164 = ssub.s32 %s20, %s27
    %p165 = scmp.eq.s32.totalorder %s164, 0
    %s167 = sadd.s32 %s166, 1
    %s168 = scalar_select %p165, %s166, %s167
    %p171 = pneg %p165
    %p172 = scmp.eq.s32.totalorder %s12, 4
    %p173 = por %p171, %p172
    %p174 = scmp.ne.s32.totalorder %s166, %s169
    %p175 = scmp.eq.s32.totalorder %s12, 0
    %p176 = por %p174, %p175
    %p177 = scmp.ne.s32.totalorder %s166, %s169
    %p178 = scmp.eq.s32.totalorder %s17, 4
    %p179 = por %p177, %p178
    %p180 = scmp.ne.s32.totalorder %s169, %s170
    %p181 = scmp.eq.s32.totalorder %s17, 0
    %p182 = por %p180, %p181
    %p183 = scmp.ne.s32.totalorder %s169, %s170
    %p184 = scmp.eq.s32.totalorder %s18, 4
    %p185 = por %p183, %p184
    %p187 = scmp.ne.s32.totalorder %s170, %s186
    %p188 = scmp.eq.s32.totalorder %s18, 0
    %p189 = por %p187, %p188
    %s190 = ssub.s32 %s19, %s31
    %s191 = ssub.s32 %s20, %s27
    %s192 = sor.u32 %s190, %s191
    %p193 = scmp.eq.s32.totalorder %s192, 0
    %s195 = sadd.s32 %s194, 1
    %s196 = scalar_select %p193, %s194, %s195
    %p199 = pneg %p193
    %p200 = scmp.eq.s32.totalorder %s12, 4
    %p201 = por %p199, %p200
    %p202 = scmp.ne.s32.totalorder %s194, %s197
    %p203 = scmp.eq.s32.totalorder %s12, 0
    %p204 = por %p202, %p203
    %p205 = scmp.ne.s32.totalorder %s194, %s197
    %p206 = scmp.eq.s32.totalorder %s17, 4
    %p207 = por %p205, %p206
    %p208 = scmp.ne.s32.totalorder %s197, %s198
    %p209 = scmp.eq.s32.totalorder %s17, 0
    %p210 = por %p208, %p209
    %p211 = scmp.ne.s32.totalorder %s197, %s198
    %p212 = scmp.eq.s32.totalorder %s18, 4
    %p213 = por %p211, %p212
    %p215 = scmp.ne.s32.totalorder %s198, %s214
    %p216 = scmp.eq.s32.totalorder %s18, 0
    %p217 = por %p215, %p216
    %p218 = scmp.le.s32.totalorder 1, %s12
    %p219 = scmp.lt.s32.totalorder %s12, 6
    %p220 = pnand %p218, %p219
    %p221 = pneg %p220
    // Predicated region
    $region9: #{basic_block_forward.3} parent=5 // pred_check
      _
    $region10: #{basic_block_forward.3} parent=5 // pred_check_branch
      %223 = sbr.rel (%p220) target = $region12
    $region11: #{basic_block_forward.3} parent=5 // pred_region
      %s224 = ssub.s32 %s12, 1
      // Predicated region
      $region13: #{basic_block_forward.3} parent=11 // pred_check
        %p225 = pneg %p104
      $region14: #{basic_block_forward.3} parent=11 // pred_check_branch
        %227 = sbr.rel (%p225) target = $region16
      $region15: #{basic_block_forward.3} parent=11 // pred_region
        %p228 = scmp.lt.s32.totalorder %s22, 0
        %s229 = scalar_select %p228, %s22, 0
        %s230 = smul.addr %s229, 4
        %s231 = scalar_lea.vmem %s2, %s230
      $region16: #{basic_block_forward.3} parent=11 // pred_fallthru
        _
      // Predicated region
      $region17: #{basic_block_forward.3} parent=11 // pred_check
        %p232 = pneg %p130
      $region18: #{basic_block_forward.3} parent=11 // pred_check_branch
        %234 = sbr.rel (%p232) target = $region20
      $region19: #{basic_block_forward.3} parent=11 // pred_region
        %p235 = scmp.lt.s32.totalorder %s22, 0
        %s236 = scalar_select %p235, %s22, 0
        %s237 = scalar_lea.vmem %s3, %s236
      $region20: #{basic_block_forward.3} parent=11 // pred_fallthru
        _
      // Predicated region
      $region21: #{basic_block_forward.3} parent=11 // pred_check
        %p238 = pneg %p182
      $region22: #{basic_block_forward.3} parent=11 // pred_check_branch
        %240 = sbr.rel (%p238) target = $region24
      $region23: #{basic_block_forward.3} parent=11 // pred_region
        %p241 = scmp.lt.s32.totalorder %s22, 0
        %s242 = scalar_select %p241, %s22, 0
        %s243 = smul.addr %s242, 4
        %s244 = scalar_lea.vmem %s5, %s243
      $region24: #{basic_block_forward.3} parent=11 // pred_fallthru
        _
    $region12: #{basic_block_forward.3} parent=5 // pred_fallthru
      _
    %p245 = scmp.lt.s32.totalorder %s12, 5
    // Predicated region
    $region25: #{basic_block_forward.3} parent=5 // pred_check
      %p246 = pneg %p245
    $region26: #{basic_block_forward.3} parent=5 // pred_check_branch
      %248 = sbr.rel (%p246) target = $region28
    $region27: #{basic_block_forward.3} parent=5 // pred_region
      // Predicated region
      $region29: #{basic_block_forward.3} parent=27 // pred_check
        %p249 = pneg %p44
      $region30: #{basic_block_forward.3} parent=27 // pred_check_branch
        %251 = sbr.rel (%p249) target = $region32
      $region31: #{basic_block_forward.3} parent=27 // pred_region
        %s252 = smul.u32 5, %s19
        %p253 = scmp.lt.s32.totalorder %s252, 29
        %s254 = scalar_select %p253, %s252, 29
        %s255 = smul.addr %s254, 4
        %s256 = scalar_lea.vmem %s0, %s255
        %s257 = smul.u32 5, %s19
      $region32: #{basic_block_forward.3} parent=27 // pred_fallthru
        _
      // Predicated region
      $region33: #{basic_block_forward.3} parent=27 // pred_check
        %p258 = pneg %p72
      $region34: #{basic_block_forward.3} parent=27 // pred_check_branch
        %260 = sbr.rel (%p258) target = $region36
      $region35: #{basic_block_forward.3} parent=27 // pred_region
        %s261 = sadd.s32 %s19, 1
        %s262 = smul.u32 5, %s261
        %p263 = scmp.lt.s32.totalorder %s262, 29
        %s264 = scalar_select %p263, %s262, 29
        %s265 = smul.addr %s264, 4
        %s266 = scalar_lea.vmem %s1, %s265
        %s267 = sadd.s32 %s19, 1
        %s268 = smul.u32 5, %s267
      $region36: #{basic_block_forward.3} parent=27 // pred_fallthru
        _
      // Predicated region
      $region37: #{basic_block_forward.3} parent=27 // pred_check
        %p269 = pneg %p150
      $region38: #{basic_block_forward.3} parent=27 // pred_check_branch
        %271 = sbr.rel (%p269) target = $region40
      $region39: #{basic_block_forward.3} parent=27 // pred_region
        %s272 = smul.u32 5, %s19
        %p273 = scmp.lt.s32.totalorder %s272, 24
        %s274 = scalar_select %p273, %s272, 24
        %s275 = smul.addr %s274, 4
        %s276 = scalar_lea.vmem %s4, %s275
        %s277 = smul.u32 5, %s19
      $region40: #{basic_block_forward.3} parent=27 // pred_fallthru
        _
    $region28: #{basic_block_forward.3} parent=5 // pred_fallthru
      _
    %p278 = scmp.le.s32.totalorder 1, %s12
    %p279 = scmp.lt.s32.totalorder %s12, 6
    %p280 = pnand %p278, %p279
    %p281 = pneg %p280
    // Predicated region
    $region41: #{basic_block_forward.3} parent=5 // pred_check
      _
    $region42: #{basic_block_forward.3} parent=5 // pred_check_branch
      %283 = sbr.rel (%p280) target = $region44
    $region43: #{basic_block_forward.3} parent=5 // pred_region
      %s284 = ssub.s32 %s12, 1
      %s285 = smul.u32 5, %s21
      %p286 = scmp.lt.s32.totalorder %s285, 29
      %s287 = scalar_select %p286, %s285, 29
      %s288 = smul.addr %s287, 4
      %s289 = scalar_lea.vmem %s0, %s288
      %p290 = pneg %p50
      %p291 = pneg %p47
      %s292 = sadd.s32 %s21, 1
      %s293 = smul.u32 5, %s292
      %p294 = scmp.lt.s32.totalorder %s293, 29
      %s295 = scalar_select %p294, %s293, 29
      %s296 = smul.addr %s295, 4
      %s297 = scalar_lea.vmem %s1, %s296
      %p298 = pneg %p78
      %p299 = pneg %p75
      %p300 = scmp.lt.s32.totalorder %s22, 0
      %s301 = scalar_select %p300, %s22, 0
      %s302 = smul.addr %s301, 4
      %s303 = scalar_lea.vmem %s2, %s302
      %p304 = pneg %p104
      %p305 = pneg %p101
      %p306 = scmp.lt.s32.totalorder %s22, 0
      %s307 = scalar_select %p306, %s22, 0
      %s308 = scalar_lea.vmem %s3, %s307
      %p309 = pneg %p130
      %p310 = pneg %p127
      %s311 = smul.u32 5, %s21
      %p312 = scmp.lt.s32.totalorder %s311, 24
      %s313 = scalar_select %p312, %s311, 24
      %s314 = smul.addr %s313, 4
      %s315 = scalar_lea.vmem %s4, %s314
      %p316 = pneg %p156
      %p317 = pneg %p153
      %p318 = scmp.lt.s32.totalorder %s22, 0
      %s319 = scalar_select %p318, %s22, 0
      %s320 = smul.addr %s319, 4
      %s321 = scalar_lea.vmem %s5, %s320
      %p322 = pneg %p182
      %p323 = pneg %p179
      %p324 = pneg %p210
      %p325 = pneg %p207
      %s326 = smul.u32 5, %s21
      %p327 = scmp.lt.s32.totalorder %s326, 24
      %s328 = scalar_select %p327, %s326, 24
      %p329 = scmp.lt.s32.totalorder %s22, 0
      %s330 = scalar_select %p329, %s22, 0
      %s331 = sadd.s32 %s330, %s328
      %s332 = smul.addr %s331, 8
      %s333 = scalar_lea.vmem %s6, %s332
      %s334 = smul.u32 5, %s21
      %p335 = scmp.lt.s32.totalorder %s334, 29
      %s336 = scalar_select %p335, %s334, 29
      %s337 = smul.addr %s336, 4
      %s338 = scalar_lea.vmem %s0, %s337
      %s339 = smul.u32 5, %s21
      %s340 = sadd.s32 %s21, 1
      %s341 = smul.u32 5, %s340
      %p342 = scmp.lt.s32.totalorder %s341, 29
      %s343 = scalar_select %p342, %s341, 29
      %s344 = smul.addr %s343, 4
      %s345 = scalar_lea.vmem %s1, %s344
      %s346 = sadd.s32 %s21, 1
      %s347 = smul.u32 5, %s346
      %p348 = scmp.lt.s32.totalorder %s22, 0
      %s349 = scalar_select %p348, %s22, 0
      %s350 = smul.addr %s349, 4
      %s351 = scalar_lea.vmem %s2, %s350
      %p352 = scmp.lt.s32.totalorder %s22, 0
      %s353 = scalar_select %p352, %s22, 0
      %s354 = scalar_lea.vmem %s3, %s353
      %s355 = smul.u32 5, %s21
      %p356 = scmp.lt.s32.totalorder %s355, 24
      %s357 = scalar_select %p356, %s355, 24
      %s358 = smul.addr %s357, 4
      %s359 = scalar_lea.vmem %s4, %s358
      %s360 = smul.u32 5, %s21
      %p361 = scmp.lt.s32.totalorder %s22, 0
      %s362 = scalar_select %p361, %s22, 0
      %s363 = smul.addr %s362, 4
      %s364 = scalar_lea.vmem %s5, %s363
      %s365 = smul.u32 5, %s21
      %p366 = scmp.lt.s32.totalorder %s365, 24
      %s367 = scalar_select %p366, %s365, 24
      %p368 = scmp.lt.s32.totalorder %s22, 0
      %s369 = scalar_select %p368, %s22, 0
      %s370 = sadd.s32 %s369, %s367
      %s371 = smul.addr %s370, 8
      %s372 = scalar_lea.vmem %s6, %s371
      %s373 = smul.u32 5, %s21
      %v375 = vld [vmem:[%s338] sm:$0xf]
      %v376 = vld [vmem:[%s338 + $0x4] sm:$0xf]
      %v377 = vld [vmem:[%s338 + $0x8] sm:$0xf]
      %v378 = vld [vmem:[%s338 + $0xc] sm:$0xf]
      %v379 = vld [vmem:[%s338 + $0x10] sm:$0xf]
      %v385 = vunpack.c.l.b16 %v375
      %v386 = vunpack.c.l.b16 %v376
      %v387 = vunpack.c.l.b16 %v377
      %v388 = vunpack.c.l.b16 %v378
      %v389 = vunpack.c.l.b16 %v379
      %v390 = vpack.c.b16 %v386, %v385
      %v391 = vpack.c.b16 %v388, %v387
      %v392 = vpack.c.b16 %v389, %v389
      %396 = vst [vmem:[#allocation2] sm:$0xff] %v390
      %397 = vst [vmem:[#allocation2 + $0x8] sm:$0xff] %v391
      %398 = vst [vmem:[#allocation2 + $0x10] sm:$0xf] %v392
      %v399 = vld [vmem:[%s345] sm:$0xf]
      %v400 = vld [vmem:[%s345 + $0x4] sm:$0xf]
      %v401 = vld [vmem:[%s345 + $0x8] sm:$0xf]
      %v402 = vld [vmem:[%s345 + $0xc] sm:$0xf]
      %v403 = vld [vmem:[%s345 + $0x10] sm:$0xf]
      %v409 = vunpack.c.l.b16 %v399
      %v410 = vunpack.c.l.b16 %v400
      %v411 = vunpack.c.l.b16 %v401
      %v412 = vunpack.c.l.b16 %v402
      %v413 = vunpack.c.l.b16 %v403
      %v414 = vpack.c.b16 %v409, %v409
      %v415 = vpack.c.b16 %v411, %v410
      %v416 = vpack.c.b16 %v413, %v412
      %420 = vst [vmem:[#allocation2 + $0x10] sm:$0xf0] %v414
      %421 = vst [vmem:[#allocation2 + $0x18] sm:$0xff] %v415
      %422 = vst [vmem:[#allocation2 + $0x20] sm:$0xff] %v416
      %v423 = vld [vmem:[#allocation2] sm:$0xff]
      %v424 = vld [vmem:[#allocation2 + $0x8] sm:$0xff]
      %v425 = vld [vmem:[#allocation2 + $0x10] sm:$0xf]
      %v426 = vld [vmem:[%s351] sm:$0xf]
      %v427 = vld [vmem:[%s351 + $0x4] sm:$0xf]
      %v428 = vld [vmem:[%s351 + $0x8] sm:$0xf]
      %v429 = vld [vmem:[%s351 + $0xc] sm:$0xf]
      %v430 = vld [vmem:[%s351 + $0x10] sm:$0xf]
      %v431 = vld [vmem:[%s351 + $0x14] sm:$0xf]
      %v432 = vld [vmem:[%s351 + $0x18] sm:$0xf]
      %v433 = vld [vmem:[%s351 + $0x1c] sm:$0xf]
      %v434 = vld [vmem:[%s351 + $0x20] sm:$0xf]
      %v435 = vld [vmem:[%s351 + $0x24] sm:$0xf]
      %v436 = vld [vmem:[%s351 + $0x28] sm:$0xf]
      %v437 = vld [vmem:[%s351 + $0x2c] sm:$0xf]
      %v438 = vld [vmem:[%s351 + $0x30] sm:$0xf]
      %v439 = vld [vmem:[%s351 + $0x34] sm:$0xf]
      %v440 = vld [vmem:[%s351 + $0x38] sm:$0xf]
      %v441 = vld [vmem:[%s351 + $0x3c] sm:$0xf]
      %v442 = vld [vmem:[#allocation2 + $0x10] sm:$0x1f]
      %s443 = scalar_lea.vmem %s351, 64
      %v444 = vld [vmem:[%s443] sm:$0xf]
      %v445 = vld [vmem:[%s443 + $0x4] sm:$0xf]
      %v446 = vld [vmem:[%s443 + $0x8] sm:$0xf]
      %v447 = vld [vmem:[%s443 + $0xc] sm:$0xf]
      %v448 = vld [vmem:[%s443 + $0x10] sm:$0xf]
      %v449 = vld [vmem:[%s443 + $0x14] sm:$0xf]
      %v450 = vld [vmem:[%s443 + $0x18] sm:$0xf]
      %v451 = vld [vmem:[%s443 + $0x1c] sm:$0xf]
      %v452 = vld [vmem:[%s443 + $0x20] sm:$0xf]
      %v453 = vld [vmem:[%s443 + $0x24] sm:$0xf]
      %v454 = vld [vmem:[%s443 + $0x28] sm:$0xf]
      %v455 = vld [vmem:[%s443 + $0x2c] sm:$0xf]
      %v456 = vld [vmem:[%s443 + $0x30] sm:$0xf]
      %v457 = vld [vmem:[%s443 + $0x34] sm:$0xf]
      %v458 = vld [vmem:[%s443 + $0x38] sm:$0xf]
      %v459 = vld [vmem:[%s443 + $0x3c] sm:$0xf]
      %vm460 = vsmask.f32 7424
      %v462 = vshrl.u32 %v423, 16
      %v464 = vshll.u32 %v423, 16
      %v466 = vrot.slane %v464, 1
      %v467 = vor.u32 %v462, %v466
      %v469 = vshll.u32 %v424, 16
      %v471 = vrot.slane %v469, 1
      %v472 = vsel %vm460, %v467, %v471
      %v473 = vshrl.u32 %v424, 16
      %v475 = vor.u32 %v473, %v471
      %v477 = vshll.u32 %v442, 16
      %v479 = vrot.slane %v477, 1
      %v480 = vsel %vm460, %v475, %v479
      %v481 = vshrl.u32 %v442, 16
      %v483 = vor.u32 %v481, %v479
      %v503 = vunpack.c.l.b16 %v444
      %v504 = vunpack.c.l.b16 %v445
      %v505 = vunpack.c.l.b16 %v446
      %v506 = vunpack.c.l.b16 %v447
      %v507 = vunpack.c.l.b16 %v448
      %v508 = vunpack.c.l.b16 %v449
      %v509 = vunpack.c.l.b16 %v450
      %v510 = vunpack.c.l.b16 %v451
      %v511 = vunpack.c.l.b16 %v452
      %v512 = vunpack.c.l.b16 %v453
      %v513 = vunpack.c.l.b16 %v454
      %v514 = vunpack.c.l.b16 %v455
      %v515 = vunpack.c.l.b16 %v456
      %v516 = vunpack.c.l.b16 %v457
      %v517 = vunpack.c.l.b16 %v458
      %v518 = vunpack.c.l.b16 %v459
      %v519 = vpack.c.b16 %v504, %v503
      %v520 = vpack.c.b16 %v506, %v505
      %v521 = vpack.c.b16 %v508, %v507
      %v522 = vpack.c.b16 %v510, %v509
      %v523 = vpack.c.b16 %v512, %v511
      %v524 = vpack.c.b16 %v514, %v513
      %v525 = vpack.c.b16 %v516, %v515
      %v526 = vpack.c.b16 %v518, %v517
      %535 = vmatprep.subr.bf16.mxu0 0
      %536 = vmatpush1.bf16.msra.mxu0 %v519
      %537 = vmatprep.subr.bf16.mxu0 0
      %538 = vmatpush1.bf16.msra.mxu0 %v520
      %539 = vmatprep.subr.bf16.mxu0 0
      %540 = vmatpush1.bf16.msra.mxu0 %v521
      %541 = vmatprep.subr.bf16.mxu0 0
      %542 = vmatpush1.bf16.msra.mxu0 %v522
      %543 = vmatprep.subr.bf16.mxu0 0
      %544 = vmatpush1.bf16.msra.mxu0 %v523
      %545 = vmatprep.subr.bf16.mxu0 0
      %546 = vmatpush1.bf16.msra.mxu0 %v524
      %547 = vmatprep.subr.bf16.mxu0 0
      %548 = vmatpush1.bf16.msra.mxu0 %v525
      %549 = vmatprep.subr.bf16.mxu0 0
      %550 = vmatpush1.bf16.msra.mxu0 %v526
      %551 = vmatprep.subr.bf16.mxu0 0
      %552 = vmatpush1.bf16.msra.mxu0 0
      %553 = vmatprep.subr.bf16.mxu0 0
      %554 = vmatpush1.bf16.msra.mxu0 0
      %555 = vmatprep.subr.bf16.mxu0 0
      %556 = vmatpush1.bf16.msra.mxu0 0
      %557 = vmatprep.subr.bf16.mxu0 0
      %558 = vmatpush1.bf16.msra.mxu0 0
      %559 = vmatprep.subr.bf16.mxu0 0
      %560 = vmatpush1.bf16.msra.mxu0 0
      %561 = vmatprep.subr.bf16.mxu0 0
      %562 = vmatpush1.bf16.msra.mxu0 0
      %563 = vmatprep.subr.bf16.mxu0 0
      %564 = vmatpush1.bf16.msra.mxu0 0
      %565 = vmatprep.subr.bf16.mxu0 0
      %566 = vmatpush1.bf16.msra.mxu0 0
      %567 = vmatprep.mubr.bf16.mxu0 0
      %568 = vmatmul.mubr.bf16.gmra.mrb[0].mxu0 %v472
      %v569 = vpop.f32.mrb[0].mxu0
      %v570 = vadd.f32 0.0, %v569
      %v571 = vpop.f32.mrb[0].mxu0
      %v572 = vpop.f32.mrb[0].mxu0
      %v573 = vadd.f32 0.0, %v572
      %v574 = vpop.f32.mrb[0].mxu0
      %575 = vmatprep.mubr.bf16.mxu0 0
      %576 = vmatmul.mubr.bf16.gmra.mrb[0].mxu0 %v480
      %v577 = vpop.f32.mrb[0].mxu0
      %v578 = vadd.f32 0.0, %v577
      %v579 = vpop.f32.mrb[0].mxu0
      %v580 = vpop.f32.mrb[0].mxu0
      %v581 = vadd.f32 0.0, %v580
      %v582 = vpop.f32.mrb[0].mxu0
      %583 = vmatprep.mubr.bf16.mxu0 0
      %584 = vmatmul.mubr.bf16.gmra.mrb[0].mxu0 %v483
      %v585 = vpop.f32.mrb[0].mxu0
      %v586 = vadd.f32 0.0, %v585
      %v587 = vpop.f32.mrb[0].mxu0
      %v588 = vpop.f32.mrb[0].mxu0
      %v589 = vpop.f32.mrb[0].mxu0
      %590 = vdwg.mxu0
      %v607 = vunpack.c.l.b16 %v426
      %v608 = vunpack.c.l.b16 %v427
      %v609 = vunpack.c.l.b16 %v428
      %v610 = vunpack.c.l.b16 %v429
      %v611 = vunpack.c.l.b16 %v430
      %v612 = vunpack.c.l.b16 %v431
      %v613 = vunpack.c.l.b16 %v432
      %v614 = vunpack.c.l.b16 %v433
      %v615 = vunpack.c.l.b16 %v434
      %v616 = vunpack.c.l.b16 %v435
      %v617 = vunpack.c.l.b16 %v436
      %v618 = vunpack.c.l.b16 %v437
      %v619 = vunpack.c.l.b16 %v438
      %v620 = vunpack.c.l.b16 %v439
      %v621 = vunpack.c.l.b16 %v440
      %v622 = vunpack.c.l.b16 %v441
      %v623 = vpack.c.b16 %v608, %v607
      %v624 = vpack.c.b16 %v610, %v609
      %v625 = vpack.c.b16 %v612, %v611
      %v626 = vpack.c.b16 %v614, %v613
      %v627 = vpack.c.b16 %v616, %v615
      %v628 = vpack.c.b16 %v618, %v617
      %v629 = vpack.c.b16 %v620, %v619
      %v630 = vpack.c.b16 %v622, %v621
      %639 = vmatprep.subr.bf16.mxu0 0
      %640 = vmatpush1.bf16.msra.mxu0 %v623
      %641 = vmatprep.subr.bf16.mxu0 0
      %642 = vmatpush1.bf16.msra.mxu0 %v624
      %643 = vmatprep.subr.bf16.mxu0 0
      %644 = vmatpush1.bf16.msra.mxu0 %v625
      %645 = vmatprep.subr.bf16.mxu0 0
      %646 = vmatpush1.bf16.msra.mxu0 %v626
      %647 = vmatprep.subr.bf16.mxu0 0
      %648 = vmatpush1.bf16.msra.mxu0 %v627
      %649 = vmatprep.subr.bf16.mxu0 0
      %650 = vmatpush1.bf16.msra.mxu0 %v628
      %651 = vmatprep.subr.bf16.mxu0 0
      %652 = vmatpush1.bf16.msra.mxu0 %v629
      %653 = vmatprep.subr.bf16.mxu0 0
      %654 = vmatpush1.bf16.msra.mxu0 %v630
      %655 = vmatprep.subr.bf16.mxu0 0
      %656 = vmatpush1.bf16.msra.mxu0 0
      %657 = vmatprep.subr.bf16.mxu0 0
      %658 = vmatpush1.bf16.msra.mxu0 0
      %659 = vmatprep.subr.bf16.mxu0 0
      %660 = vmatpush1.bf16.msra.mxu0 0
      %661 = vmatprep.subr.bf16.mxu0 0
      %662 = vmatpush1.bf16.msra.mxu0 0
      %663 = vmatprep.subr.bf16.mxu0 0
      %664 = vmatpush1.bf16.msra.mxu0 0
      %665 = vmatprep.subr.bf16.mxu0 0
      %666 = vmatpush1.bf16.msra.mxu0 0
      %667 = vmatprep.subr.bf16.mxu0 0
      %668 = vmatpush1.bf16.msra.mxu0 0
      %669 = vmatprep.subr.bf16.mxu0 0
      %670 = vmatpush1.bf16.msra.mxu0 0
      %671 = vmatprep.mubr.bf16.mxu0 0
      %672 = vmatmul.mubr.bf16.gmra.mrb[0].mxu0 %v423
      %v673 = vpop.f32.mrb[0].mxu0
      %v674 = vadd.f32 %v570, %v673
      %v675 = vpop.f32.mrb[0].mxu0
      %v676 = vpop.f32.mrb[0].mxu0
      %v677 = vadd.f32 %v573, %v676
      %v678 = vpop.f32.mrb[0].mxu0
      %679 = vmatprep.mubr.bf16.mxu0 0
      %680 = vmatmul.mubr.bf16.gmra.mrb[0].mxu0 %v424
      %v681 = vpop.f32.mrb[0].mxu0
      %v682 = vadd.f32 %v578, %v681
      %v683 = vpop.f32.mrb[0].mxu0
      %v684 = vpop.f32.mrb[0].mxu0
      %v685 = vadd.f32 %v581, %v684
      %v686 = vpop.f32.mrb[0].mxu0
      %687 = vmatprep.mubr.bf16.mxu0 0
      %688 = vmatmul.mubr.bf16.gmra.mrb[0].mxu0 %v425
      %v689 = vpop.f32.mrb[0].mxu0
      %v690 = vadd.f32 %v586, %v689
      %v691 = vpop.f32.mrb[0].mxu0
      %v692 = vpop.f32.mrb[0].mxu0
      %v693 = vpop.f32.mrb[0].mxu0
      %694 = vdwg.mxu0
      %v695 = vld [vmem:[#allocation2] sm:$0xfe]
      %s696 = scalar_lea.vmem %s351, 128
      %v697 = vld [vmem:[%s696] sm:$0xf]
      %v698 = vld [vmem:[%s696 + $0x4] sm:$0xf]
      %v699 = vld [vmem:[%s696 + $0x8] sm:$0xf]
      %v700 = vld [vmem:[%s696 + $0xc] sm:$0xf]
      %v701 = vld [vmem:[%s696 + $0x10] sm:$0xf]
      %v702 = vld [vmem:[%s696 + $0x14] sm:$0xf]
      %v703 = vld [vmem:[%s696 + $0x18] sm:$0xf]
      %v704 = vld [vmem:[%s696 + $0x1c] sm:$0xf]
      %v705 = vld [vmem:[%s696 + $0x20] sm:$0xf]
      %v706 = vld [vmem:[%s696 + $0x24] sm:$0xf]
      %v707 = vld [vmem:[%s696 + $0x28] sm:$0xf]
      %v708 = vld [vmem:[%s696 + $0x2c] sm:$0xf]
      %v709 = vld [vmem:[%s696 + $0x30] sm:$0xf]
      %v710 = vld [vmem:[%s696 + $0x34] sm:$0xf]
      %v711 = vld [vmem:[%s696 + $0x38] sm:$0xf]
      %v712 = vld [vmem:[%s696 + $0x3c] sm:$0xf]
      %vm716 = vcmask 1046528
      %v717 = vrot.slane %v695, 1
      %v718 = vrot.slane %v424, 1
      %v719 = vsel %vm716, %v717, %v718
      %v720 = vrot.slane %v442, 1
      %v721 = vsel %vm716, %v718, %v720
      %v741 = vunpack.c.l.b16 %v697
      %v742 = vunpack.c.l.b16 %v698
      %v743 = vunpack.c.l.b16 %v699
      %v744 = vunpack.c.l.b16 %v700
      %v745 = vunpack.c.l.b16 %v701
      %v746 = vunpack.c.l.b16 %v702
      %v747 = vunpack.c.l.b16 %v703
      %v748 = vunpack.c.l.b16 %v704
      %v749 = vunpack.c.l.b16 %v705
      %v750 = vunpack.c.l.b16 %v706
      %v751 = vunpack.c.l.b16 %v707
      %v752 = vunpack.c.l.b16 %v708
      %v753 = vunpack.c.l.b16 %v709
      %v754 = vunpack.c.l.b16 %v710
      %v755 = vunpack.c.l.b16 %v711
      %v756 = vunpack.c.l.b16 %v712
      %v757 = vpack.c.b16 %v742, %v741
      %v758 = vpack.c.b16 %v744, %v743
      %v759 = vpack.c.b16 %v746, %v745
      %v760 = vpack.c.b16 %v748, %v747
      %v761 = vpack.c.b16 %v750, %v749
      %v762 = vpack.c.b16 %v752, %v751
      %v763 = vpack.c.b16 %v754, %v753
      %v764 = vpack.c.b16 %v756, %v755
      %773 = vmatprep.subr.bf16.mxu0 0
      %774 = vmatpush1.bf16.msra.mxu0 %v757
      %775 = vmatprep.subr.bf16.mxu0 0
      %776 = vmatpush1.bf16.msra.mxu0 %v758
      %777 = vmatprep.subr.bf16.mxu0 0
      %778 = vmatpush1.bf16.msra.mxu0 %v759
      %779 = vmatprep.subr.bf16.mxu0 0
      %780 = vmatpush1.bf16.msra.mxu0 %v760
      %781 = vmatprep.subr.bf16.mxu0 0
      %782 = vmatpush1.bf16.msra.mxu0 %v761
      %783 = vmatprep.subr.bf16.mxu0 0
      %784 = vmatpush1.bf16.msra.mxu0 %v762
      %785 = vmatprep.subr.bf16.mxu0 0
      %786 = vmatpush1.bf16.msra.mxu0 %v763
      %787 = vmatprep.subr.bf16.mxu0 0
      %788 = vmatpush1.bf16.msra.mxu0 %v764
      %789 = vmatprep.subr.bf16.mxu0 0
      %790 = vmatpush1.bf16.msra.mxu0 0
      %791 = vmatprep.subr.bf16.mxu0 0
      %792 = vmatpush1.bf16.msra.mxu0 0
      %793 = vmatprep.subr.bf16.mxu0 0
      %794 = vmatpush1.bf16.msra.mxu0 0
      %795 = vmatprep.subr.bf16.mxu0 0
      %796 = vmatpush1.bf16.msra.mxu0 0
      %797 = vmatprep.subr.bf16.mxu0 0
      %798 = vmatpush1.bf16.msra.mxu0 0
      %799 = vmatprep.subr.bf16.mxu0 0
      %800 = vmatpush1.bf16.msra.mxu0 0
      %801 = vmatprep.subr.bf16.mxu0 0
      %802 = vmatpush1.bf16.msra.mxu0 0
      %803 = vmatprep.subr.bf16.mxu0 0
      %804 = vmatpush1.bf16.msra.mxu0 0
      %805 = vmatprep.mubr.bf16.mxu0 0
      %806 = vmatmul.mubr.bf16.gmra.mrb[0].mxu0 %v719
      %v807 = vpop.f32.mrb[0].mxu0
      %v808 = vadd.f32 0.0, %v807
      %v809 = vpop.f32.mrb[0].mxu0
      %v810 = vpop.f32.mrb[0].mxu0
      %v811 = vadd.f32 0.0, %v810
      %v812 = vpop.f32.mrb[0].mxu0
      %813 = vmatprep.mubr.bf16.mxu0 0
      %814 = vmatmul.mubr.bf16.gmra.mrb[0].mxu0 %v721
      %v815 = vpop.f32.mrb[0].mxu0
      %v816 = vadd.f32 0.0, %v815
      %v817 = vpop.f32.mrb[0].mxu0
      %v818 = vpop.f32.mrb[0].mxu0
      %v819 = vadd.f32 0.0, %v818
      %v820 = vpop.f32.mrb[0].mxu0
      %821 = vmatprep.mubr.bf16.mxu0 0
      %822 = vmatmul.mubr.bf16.gmra.mrb[0].mxu0 %v720
      %v823 = vpop.f32.mrb[0].mxu0
      %v824 = vadd.f32 0.0, %v823
      %v825 = vpop.f32.mrb[0].mxu0
      %v826 = vpop.f32.mrb[0].mxu0
      %v827 = vpop.f32.mrb[0].mxu0
      %828 = vdwg.mxu0
      %v829 = vadd.f32 %v674, %v808
      %v830 = vadd.f32 %v677, %v811
      %v831 = vadd.f32 %v682, %v816
      %v832 = vadd.f32 %v685, %v819
      %v833 = vadd.f32 %v690, %v824
      %v834 = vld [vmem:[#allocation2] sm:$0xe0]
      %v835 = vld [vmem:[#allocation2 + $0x8] sm:$0xff]
      %v836 = vld [vmem:[#allocation2 + $0x10] sm:$0xff]
      %v837 = vld [vmem:[#allocation2 + $0x18] sm:$0x1]
      %s838 = scalar_lea.vmem %s351, 192
      %v839 = vld [vmem:[%s838] sm:$0xf]
      %v840 = vld [vmem:[%s838 + $0x4] sm:$0xf]
      %v841 = vld [vmem:[%s838 + $0x8] sm:$0xf]
      %v842 = vld [vmem:[%s838 + $0xc] sm:$0xf]
      %v843 = vld [vmem:[%s838 + $0x10] sm:$0xf]
      %v844 = vld [vmem:[%s838 + $0x14] sm:$0xf]
      %v845 = vld [vmem:[%s838 + $0x18] sm:$0xf]
      %v846 = vld [vmem:[%s838 + $0x1c] sm:$0xf]
      %v847 = vld [vmem:[%s838 + $0x20] sm:$0xf]
      %v848 = vld [vmem:[%s838 + $0x24] sm:$0xf]
      %v849 = vld [vmem:[%s838 + $0x28] sm:$0xf]
      %v850 = vld [vmem:[%s838 + $0x2c] sm:$0xf]
      %v851 = vld [vmem:[%s838 + $0x30] sm:$0xf]
      %v852 = vld [vmem:[%s838 + $0x34] sm:$0xf]
      %v853 = vld [vmem:[%s838 + $0x38] sm:$0xf]
      %v854 = vld [vmem:[%s838 + $0x3c] sm:$0xf]
      %vm859 = vcmask 1042432
      %v860 = vrot.slane %v834, 5
      %v861 = vrot.slane %v835, 5
      %v862 = vsel %vm859, %v860, %v861
      %v863 = vrot.slane %v836, 5
      %v864 = vsel %vm859, %v861, %v863
      %v865 = vrot.slane %v837, 5
      %v866 = vsel %vm859, %v863, %v865
      %v886 = vunpack.c.l.b16 %v839
      %v887 = vunpack.c.l.b16 %v840
      %v888 = vunpack.c.l.b16 %v841
      %v889 = vunpack.c.l.b16 %v842
      %v890 = vunpack.c.l.b16 %v843
      %v891 = vunpack.c.l.b16 %v844
      %v892 = vunpack.c.l.b16 %v845
      %v893 = vunpack.c.l.b16 %v846
      %v894 = vunpack.c.l.b16 %v847
      %v895 = vunpack.c.l.b16 %v848
      %v896 = vunpack.c.l.b16 %v849
      %v897 = vunpack.c.l.b16 %v850
      %v898 = vunpack.c.l.b16 %v851
      %v899 = vunpack.c.l.b16 %v852
      %v900 = vunpack.c.l.b16 %v853
      %v901 = vunpack.c.l.b16 %v854
      %v902 = vpack.c.b16 %v887, %v886
      %v903 = vpack.c.b16 %v889, %v888
      %v904 = vpack.c.b16 %v891, %v890
      %v905 = vpack.c.b16 %v893, %v892
      %v906 = vpack.c.b16 %v895, %v894
      %v907 = vpack.c.b16 %v897, %v896
      %v908 = vpack.c.b16 %v899, %v898
      %v909 = vpack.c.b16 %v901, %v900
      %918 = vmatprep.subr.bf16.mxu0 0
      %919 = vmatpush1.bf16.msra.mxu0 %v902
      %920 = vmatprep.subr.bf16.mxu0 0
      %921 = vmatpush1.bf16.msra.mxu0 %v903
      %922 = vmatprep.subr.bf16.mxu0 0
      %923 = vmatpush1.bf16.msra.mxu0 %v904
      %924 = vmatprep.subr.bf16.mxu0 0
      %925 = vmatpush1.bf16.msra.mxu0 %v905
      %926 = vmatprep.subr.bf16.mxu0 0
      %927 = vmatpush1.bf16.msra.mxu0 %v906
      %928 = vmatprep.subr.bf16.mxu0 0
      %929 = vmatpush1.bf16.msra.mxu0 %v907
      %930 = vmatprep.subr.bf16.mxu0 0
      %931 = vmatpush1.bf16.msra.mxu0 %v908
      %932 = vmatprep.subr.bf16.mxu0 0
      %933 = vmatpush1.bf16.msra.mxu0 %v909
      %934 = vmatprep.subr.bf16.mxu0 0
      %935 = vmatpush1.bf16.msra.mxu0 0
      %936 = vmatprep.subr.bf16.mxu0 0
      %937 = vmatpush1.bf16.msra.mxu0 0
      %938 = vmatprep.subr.bf16.mxu0 0
      %939 = vmatpush1.bf16.msra.mxu0 0
      %940 = vmatprep.subr.bf16.mxu0 0
      %941 = vmatpush1.bf16.msra.mxu0 0
      %942 = vmatprep.subr.bf16.mxu0 0
      %943 = vmatpush1.bf16.msra.mxu0 0
      %944 = vmatprep.subr.bf16.mxu0 0
      %945 = vmatpush1.bf16.msra.mxu0 0
      %946 = vmatprep.subr.bf16.mxu0 0
      %947 = vmatpush1.bf16.msra.mxu0 0
      %948 = vmatprep.subr.bf16.mxu0 0
      %949 = vmatpush1.bf16.msra.mxu0 0
      %950 = vmatprep.mubr.bf16.mxu0 0
      %951 = vmatmul.mubr.bf16.gmra.mrb[0].mxu0 %v862
      %v952 = vpop.f32.mrb[0].mxu0
      %v953 = vadd.f32 0.0, %v952
      %v954 = vpop.f32.mrb[0].mxu0
      %v955 = vpop.f32.mrb[0].mxu0
      %v956 = vadd.f32 0.0, %v955
      %v957 = vpop.f32.mrb[0].mxu0
      %958 = vmatprep.mubr.bf16.mxu0 0
      %959 = vmatmul.mubr.bf16.gmra.mrb[0].mxu0 %v864
      %v960 = vpop.f32.mrb[0].mxu0
      %v961 = vadd.f32 0.0, %v960
      %v962 = vpop.f32.mrb[0].mxu0
      %v963 = vpop.f32.mrb[0].mxu0
      %v964 = vadd.f32 0.0, %v963
      %v965 = vpop.f32.mrb[0].mxu0
      %966 = vmatprep.mubr.bf16.mxu0 0
      %967 = vmatmul.mubr.bf16.gmra.mrb[0].mxu0 %v866
      %v968 = vpop.f32.mrb[0].mxu0
      %v969 = vadd.f32 0.0, %v968
      %v970 = vpop.f32.mrb[0].mxu0
      %v971 = vpop.f32.mrb[0].mxu0
      %v972 = vpop.f32.mrb[0].mxu0
      %973 = vdwg.mxu0
      %v974 = vadd.f32 %v829, %v953
      %v975 = vadd.f32 %v830, %v956
      %v976 = vadd.f32 %v831, %v961
      %v977 = vadd.f32 %v832, %v964
      %v978 = vadd.f32 %v833, %v969
      %v979 = vld [vmem:[#allocation2 + $0x18] sm:$0x3]
      %s980 = scalar_lea.vmem %s351, 256
      %v981 = vld [vmem:[%s980] sm:$0xf]
      %v982 = vld [vmem:[%s980 + $0x4] sm:$0xf]
      %v983 = vld [vmem:[%s980 + $0x8] sm:$0xf]
      %v984 = vld [vmem:[%s980 + $0xc] sm:$0xf]
      %v985 = vld [vmem:[%s980 + $0x10] sm:$0xf]
      %v986 = vld [vmem:[%s980 + $0x14] sm:$0xf]
      %v987 = vld [vmem:[%s980 + $0x18] sm:$0xf]
      %v988 = vld [vmem:[%s980 + $0x1c] sm:$0xf]
      %v989 = vld [vmem:[%s980 + $0x20] sm:$0xf]
      %v990 = vld [vmem:[%s980 + $0x24] sm:$0xf]
      %v991 = vld [vmem:[%s980 + $0x28] sm:$0xf]
      %v992 = vld [vmem:[%s980 + $0x2c] sm:$0xf]
      %v993 = vld [vmem:[%s980 + $0x30] sm:$0xf]
      %v994 = vld [vmem:[%s980 + $0x34] sm:$0xf]
      %v995 = vld [vmem:[%s980 + $0x38] sm:$0xf]
      %v996 = vld [vmem:[%s980 + $0x3c] sm:$0xf]
      %vm997 = vsmask.f32 2304
      %v999 = vshrl.u32 %v834, 16
      %v1001 = vrot.slane %v999, 5
      %v1002 = vshll.u32 %v834, 16
      %v1004 = vrot.slane %v1002, 6
      %v1005 = vor.u32 %v1001, %v1004
      %v1007 = vshrl.u32 %v835, 16
      %v1009 = vrot.slane %v1007, 5
      %v1010 = vshll.u32 %v835, 16
      %v1012 = vrot.slane %v1010, 6
      %v1013 = vor.u32 %v1009, %v1012
      %v1014 = vsel %vm997, %v1005, %v1013
      %v1016 = vshrl.u32 %v836, 16
      %v1018 = vrot.slane %v1016, 5
      %v1019 = vshll.u32 %v836, 16
      %v1021 = vrot.slane %v1019, 6
      %v1022 = vor.u32 %v1018, %v1021
      %v1023 = vsel %vm997, %v1013, %v1022
      %v1025 = vshrl.u32 %v979, 16
      %v1027 = vrot.slane %v1025, 5
      %v1028 = vshll.u32 %v979, 16
      %v1030 = vrot.slane %v1028, 6
      %v1031 = vor.u32 %v1027, %v1030
      %v1032 = vsel %vm997, %v1022, %v1031
      %v1052 = vunpack.c.l.b16 %v981
      %v1053 = vunpack.c.l.b16 %v982
      %v1054 = vunpack.c.l.b16 %v983
      %v1055 = vunpack.c.l.b16 %v984
      %v1056 = vunpack.c.l.b16 %v985
      %v1057 = vunpack.c.l.b16 %v986
      %v1058 = vunpack.c.l.b16 %v987
      %v1059 = vunpack.c.l.b16 %v988
      %v1060 = vunpack.c.l.b16 %v989
      %v1061 = vunpack.c.l.b16 %v990
      %v1062 = vunpack.c.l.b16 %v991
      %v1063 = vunpack.c.l.b16 %v992
      %v1064 = vunpack.c.l.b16 %v993
      %v1065 = vunpack.c.l.b16 %v994
      %v1066 = vunpack.c.l.b16 %v995
      %v1067 = vunpack.c.l.b16 %v996
      %v1068 = vpack.c.b16 %v1053, %v1052
      %v1069 = vpack.c.b16 %v1055, %v1054
      %v1070 = vpack.c.b16 %v1057, %v1056
      %v1071 = vpack.c.b16 %v1059, %v1058
      %v1072 = vpack.c.b16 %v1061, %v1060
      %v1073 = vpack.c.b16 %v1063, %v1062
      %v1074 = vpack.c.b16 %v1065, %v1064
      %v1075 = vpack.c.b16 %v1067, %v1066
      %1084 = vmatprep.subr.bf16.mxu0 0
      %1085 = vmatpush1.bf16.msra.mxu0 %v1068
      %1086 = vmatprep.subr.bf16.mxu0 0
      %1087 = vmatpush1.bf16.msra.mxu0 %v1069
      %1088 = vmatprep.subr.bf16.mxu0 0
      %1089 = vmatpush1.bf16.msra.mxu0 %v1070
      %1090 = vmatprep.subr.bf16.mxu0 0
      %1091 = vmatpush1.bf16.msra.mxu0 %v1071
      %1092 = vmatprep.subr.bf16.mxu0 0
      %1093 = vmatpush1.bf16.msra.mxu0 %v1072
      %1094 = vmatprep.subr.bf16.mxu0 0
      %1095 = vmatpush1.bf16.msra.mxu0 %v1073
      %1096 = vmatprep.subr.bf16.mxu0 0
      %1097 = vmatpush1.bf16.msra.mxu0 %v1074
      %1098 = vmatprep.subr.bf16.mxu0 0
      %1099 = vmatpush1.bf16.msra.mxu0 %v1075
      %1100 = vmatprep.subr.bf16.mxu0 0
      %1101 = vmatpush1.bf16.msra.mxu0 0
      %1102 = vmatprep.subr.bf16.mxu0 0
      %1103 = vmatpush1.bf16.msra.mxu0 0
      %1104 = vmatprep.subr.bf16.mxu0 0
      %1105 = vmatpush1.bf16.msra.mxu0 0
      %1106 = vmatprep.subr.bf16.mxu0 0
      %1107 = vmatpush1.bf16.msra.mxu0 0
      %1108 = vmatprep.subr.bf16.mxu0 0
      %1109 = vmatpush1.bf16.msra.mxu0 0
      %1110 = vmatprep.subr.bf16.mxu0 0
      %1111 = vmatpush1.bf16.msra.mxu0 0
      %1112 = vmatprep.subr.bf16.mxu0 0
      %1113 = vmatpush1.bf16.msra.mxu0 0
      %1114 = vmatprep.subr.bf16.mxu0 0
      %1115 = vmatpush1.bf16.msra.mxu0 0
      %1116 = vmatprep.mubr.bf16.mxu0 0
      %1117 = vmatmul.mubr.bf16.gmra.mrb[0].mxu0 %v1014
      %v1118 = vpop.f32.mrb[0].mxu0
      %v1119 = vadd.f32 0.0, %v1118
      %v1120 = vpop.f32.mrb[0].mxu0
      %v1121 = vpop.f32.mrb[0].mxu0
      %v1122 = vadd.f32 0.0, %v1121
      %v1123 = vpop.f32.mrb[0].mxu0
      %1124 = vmatprep.mubr.bf16.mxu0 0
      %1125 = vmatmul.mubr.bf16.gmra.mrb[0].mxu0 %v1023
      %v1126 = vpop.f32.mrb[0].mxu0
      %v1127 = vadd.f32 0.0, %v1126
      %v1128 = vpop.f32.mrb[0].mxu0
      %v1129 = vpop.f32.mrb[0].mxu0
      %v1130 = vadd.f32 0.0, %v1129
      %v1131 = vpop.f32.mrb[0].mxu0
      %1132 = vmatprep.mubr.bf16.mxu0 0
      %1133 = vmatmul.mubr.bf16.gmra.mrb[0].mxu0 %v1032
      %v1134 = vpop.f32.mrb[0].mxu0
      %v1135 = vadd.f32 0.0, %v1134
      %v1136 = vpop.f32.mrb[0].mxu0
      %v1137 = vpop.f32.mrb[0].mxu0
      %v1138 = vpop.f32.mrb[0].mxu0
      %1139 = vdwg.mxu0
      %v1140 = vadd.f32 %v974, %v1119
      %v1141 = vadd.f32 %v975, %v1122
      %v1142 = vadd.f32 %v976, %v1127
      %v1143 = vadd.f32 %v977, %v1130
      %v1144 = vadd.f32 %v978, %v1135
      %v1145 = vld [vmem:[#allocation2] sm:$0xc0]
      %s1146 = scalar_lea.vmem %s351, 320
      %v1147 = vld [vmem:[%s1146] sm:$0xf]
      %v1148 = vld [vmem:[%s1146 + $0x4] sm:$0xf]
      %v1149 = vld [vmem:[%s1146 + $0x8] sm:$0xf]
      %v1150 = vld [vmem:[%s1146 + $0xc] sm:$0xf]
      %v1151 = vld [vmem:[%s1146 + $0x10] sm:$0xf]
      %v1152 = vld [vmem:[%s1146 + $0x14] sm:$0xf]
      %v1153 = vld [vmem:[%s1146 + $0x18] sm:$0xf]
      %v1154 = vld [vmem:[%s1146 + $0x1c] sm:$0xf]
      %v1155 = vld [vmem:[%s1146 + $0x20] sm:$0xf]
      %v1156 = vld [vmem:[%s1146 + $0x24] sm:$0xf]
      %v1157 = vld [vmem:[%s1146 + $0x28] sm:$0xf]
      %v1158 = vld [vmem:[%s1146 + $0x2c] sm:$0xf]
      %v1159 = vld [vmem:[%s1146 + $0x30] sm:$0xf]
      %v1160 = vld [vmem:[%s1146 + $0x34] sm:$0xf]
      %v1161 = vld [vmem:[%s1146 + $0x38] sm:$0xf]
      %v1162 = vld [vmem:[%s1146 + $0x3c] sm:$0xf]
      %vm1165 = vcmask 1041408
      %v1166 = vrot.slane %v1145, 6
      %v1167 = vrot.slane %v835, 6
      %v1168 = vsel %vm1165, %v1166, %v1167
      %v1169 = vrot.slane %v836, 6
      %v1170 = vsel %vm1165, %v1167, %v1169
      %v1171 = vrot.slane %v979, 6
      %v1172 = vsel %vm1165, %v1169, %v1171
      %v1192 = vunpack.c.l.b16 %v1147
      %v1193 = vunpack.c.l.b16 %v1148
      %v1194 = vunpack.c.l.b16 %v1149
      %v1195 = vunpack.c.l.b16 %v1150
      %v1196 = vunpack.c.l.b16 %v1151
      %v1197 = vunpack.c.l.b16 %v1152
      %v1198 = vunpack.c.l.b16 %v1153
      %v1199 = vunpack.c.l.b16 %v1154
      %v1200 = vunpack.c.l.b16 %v1155
      %v1201 = vunpack.c.l.b16 %v1156
      %v1202 = vunpack.c.l.b16 %v1157
      %v1203 = vunpack.c.l.b16 %v1158
      %v1204 = vunpack.c.l.b16 %v1159
      %v1205 = vunpack.c.l.b16 %v1160
      %v1206 = vunpack.c.l.b16 %v1161
      %v1207 = vunpack.c.l.b16 %v1162
      %v1208 = vpack.c.b16 %v1193, %v1192
      %v1209 = vpack.c.b16 %v1195, %v1194
      %v1210 = vpack.c.b16 %v1197, %v1196
      %v1211 = vpack.c.b16 %v1199, %v1198
      %v1212 = vpack.c.b16 %v1201, %v1200
      %v1213 = vpack.c.b16 %v1203, %v1202
      %v1214 = vpack.c.b16 %v1205, %v1204
      %v1215 = vpack.c.b16 %v1207, %v1206
      %1224 = vmatprep.subr.bf16.mxu0 0
      %1225 = vmatpush1.bf16.msra.mxu0 %v1208
      %1226 = vmatprep.subr.bf16.mxu0 0
      %1227 = vmatpush1.bf16.msra.mxu0 %v1209
      %1228 = vmatprep.subr.bf16.mxu0 0
      %1229 = vmatpush1.bf16.msra.mxu0 %v1210
      %1230 = vmatprep.subr.bf16.mxu0 0
      %1231 = vmatpush1.bf16.msra.mxu0 %v1211
      %1232 = vmatprep.subr.bf16.mxu0 0
      %1233 = vmatpush1.bf16.msra.mxu0 %v1212
      %1234 = vmatprep.subr.bf16.mxu0 0
      %1235 = vmatpush1.bf16.msra.mxu0 %v1213
      %1236 = vmatprep.subr.bf16.mxu0 0
      %1237 = vmatpush1.bf16.msra.mxu0 %v1214
      %1238 = vmatprep.subr.bf16.mxu0 0
      %1239 = vmatpush1.bf16.msra.mxu0 %v1215
      %1240 = vmatprep.subr.bf16.mxu0 0
      %1241 = vmatpush1.bf16.msra.mxu0 0
      %1242 = vmatprep.subr.bf16.mxu0 0
      %1243 = vmatpush1.bf16.msra.mxu0 0
      %1244 = vmatprep.subr.bf16.mxu0 0
      %1245 = vmatpush1.bf16.msra.mxu0 0
      %1246 = vmatprep.subr.bf16.mxu0 0
      %1247 = vmatpush1.bf16.msra.mxu0 0
      %1248 = vmatprep.subr.bf16.mxu0 0
      %1249 = vmatpush1.bf16.msra.mxu0 0
      %1250 = vmatprep.subr.bf16.mxu0 0
      %1251 = vmatpush1.bf16.msra.mxu0 0
      %1252 = vmatprep.subr.bf16.mxu0 0
      %1253 = vmatpush1.bf16.msra.mxu0 0
      %1254 = vmatprep.subr.bf16.mxu0 0
      %1255 = vmatpush1.bf16.msra.mxu0 0
      %1256 = vmatprep.mubr.bf16.mxu0 0
      %1257 = vmatmul.mubr.bf16.gmra.mrb[0].mxu0 %v1168
      %v1258 = vpop.f32.mrb[0].mxu0
      %v1259 = vadd.f32 0.0, %v1258
      %v1260 = vpop.f32.mrb[0].mxu0
      %v1261 = vpop.f32.mrb[0].mxu0
      %v1262 = vadd.f32 0.0, %v1261
      %v1263 = vpop.f32.mrb[0].mxu0
      %1264 = vmatprep.mubr.bf16.mxu0 0
      %1265 = vmatmul.mubr.bf16.gmra.mrb[0].mxu0 %v1170
      %v1266 = vpop.f32.mrb[0].mxu0
      %v1267 = vadd.f32 0.0, %v1266
      %v1268 = vpop.f32.mrb[0].mxu0
      %v1269 = vpop.f32.mrb[0].mxu0
      %v1270 = vadd.f32 0.0, %v1269
      %v1271 = vpop.f32.mrb[0].mxu0
      %1272 = vmatprep.mubr.bf16.mxu0 0
      %1273 = vmatmul.mubr.bf16.gmra.mrb[0].mxu0 %v1172
      %v1274 = vpop.f32.mrb[0].mxu0
      %v1275 = vadd.f32 0.0, %v1274
      %v1276 = vpop.f32.mrb[0].mxu0
      %v1277 = vpop.f32.mrb[0].mxu0
      %v1278 = vpop.f32.mrb[0].mxu0
      %1279 = vdwg.mxu0
      %v1280 = vadd.f32 %v1140, %v1259
      %v1281 = vadd.f32 %v1141, %v1262
      %v1282 = vadd.f32 %v1142, %v1267
      %v1283 = vadd.f32 %v1143, %v1270
      %v1284 = vadd.f32 %v1144, %v1275
      %v1285 = vld [vmem:[#allocation2 + $0x8] sm:$0xfc]
      %v1286 = vld [vmem:[#allocation2 + $0x18] sm:$0x3f]
      %s1287 = scalar_lea.vmem %s351, 384
      %v1288 = vld [vmem:[%s1287] sm:$0xf]
      %v1289 = vld [vmem:[%s1287 + $0x4] sm:$0xf]
      %v1290 = vld [vmem:[%s1287 + $0x8] sm:$0xf]
      %v1291 = vld [vmem:[%s1287 + $0xc] sm:$0xf]
      %v1292 = vld [vmem:[%s1287 + $0x10] sm:$0xf]
      %v1293 = vld [vmem:[%s1287 + $0x14] sm:$0xf]
      %v1294 = vld [vmem:[%s1287 + $0x18] sm:$0xf]
      %v1295 = vld [vmem:[%s1287 + $0x1c] sm:$0xf]
      %v1296 = vld [vmem:[%s1287 + $0x20] sm:$0xf]
      %v1297 = vld [vmem:[%s1287 + $0x24] sm:$0xf]
      %v1298 = vld [vmem:[%s1287 + $0x28] sm:$0xf]
      %v1299 = vld [vmem:[%s1287 + $0x2c] sm:$0xf]
      %v1300 = vld [vmem:[%s1287 + $0x30] sm:$0xf]
      %v1301 = vld [vmem:[%s1287 + $0x34] sm:$0xf]
      %v1302 = vld [vmem:[%s1287 + $0x38] sm:$0xf]
      %v1303 = vld [vmem:[%s1287 + $0x3c] sm:$0xf]
      %vm1306 = vcmask 1045504
      %v1307 = vrot.slane %v1285, 2
      %v1308 = vrot.slane %v836, 2
      %v1309 = vsel %vm1306, %v1307, %v1308
      %v1310 = vrot.slane %v1286, 2
      %v1311 = vsel %vm1306, %v1308, %v1310
      %v1331 = vunpack.c.l.b16 %v1288
      %v1332 = vunpack.c.l.b16 %v1289
      %v1333 = vunpack.c.l.b16 %v1290
      %v1334 = vunpack.c.l.b16 %v1291
      %v1335 = vunpack.c.l.b16 %v1292
      %v1336 = vunpack.c.l.b16 %v1293
      %v1337 = vunpack.c.l.b16 %v1294
      %v1338 = vunpack.c.l.b16 %v1295
      %v1339 = vunpack.c.l.b16 %v1296
      %v1340 = vunpack.c.l.b16 %v1297
      %v1341 = vunpack.c.l.b16 %v1298
      %v1342 = vunpack.c.l.b16 %v1299
      %v1343 = vunpack.c.l.b16 %v1300
      %v1344 = vunpack.c.l.b16 %v1301
      %v1345 = vunpack.c.l.b16 %v1302
      %v1346 = vunpack.c.l.b16 %v1303
      %v1347 = vpack.c.b16 %v1332, %v1331
      %v1348 = vpack.c.b16 %v1334, %v1333
      %v1349 = vpack.c.b16 %v1336, %v1335
      %v1350 = vpack.c.b16 %v1338, %v1337
      %v1351 = vpack.c.b16 %v1340, %v1339
      %v1352 = vpack.c.b16 %v1342, %v1341
      %v1353 = vpack.c.b16 %v1344, %v1343
      %v1354 = vpack.c.b16 %v1346, %v1345
      %1363 = vmatprep.subr.bf16.mxu0 0
      %1364 = vmatpush1.bf16.msra.mxu0 %v1347
      %1365 = vmatprep.subr.bf16.mxu0 0
      %1366 = vmatpush1.bf16.msra.mxu0 %v1348
      %1367 = vmatprep.subr.bf16.mxu0 0
      %1368 = vmatpush1.bf16.msra.mxu0 %v1349
      %1369 = vmatprep.subr.bf16.mxu0 0
      %1370 = vmatpush1.bf16.msra.mxu0 %v1350
      %1371 = vmatprep.subr.bf16.mxu0 0
      %1372 = vmatpush1.bf16.msra.mxu0 %v1351
      %1373 = vmatprep.subr.bf16.mxu0 0
      %1374 = vmatpush1.bf16.msra.mxu0 %v1352
      %1375 = vmatprep.subr.bf16.mxu0 0
      %1376 = vmatpush1.bf16.msra.mxu0 %v1353
      %1377 = vmatprep.subr.bf16.mxu0 0
      %1378 = vmatpush1.bf16.msra.mxu0 %v1354
      %1379 = vmatprep.subr.bf16.mxu0 0
      %1380 = vmatpush1.bf16.msra.mxu0 0
      %1381 = vmatprep.subr.bf16.mxu0 0
      %1382 = vmatpush1.bf16.msra.mxu0 0
      %1383 = vmatprep.subr.bf16.mxu0 0
      %1384 = vmatpush1.bf16.msra.mxu0 0
      %1385 = vmatprep.subr.bf16.mxu0 0
      %1386 = vmatpush1.bf16.msra.mxu0 0
      %1387 = vmatprep.subr.bf16.mxu0 0
      %1388 = vmatpush1.bf16.msra.mxu0 0
      %1389 = vmatprep.subr.bf16.mxu0 0
      %1390 = vmatpush1.bf16.msra.mxu0 0
      %1391 = vmatprep.subr.bf16.mxu0 0
      %1392 = vmatpush1.bf16.msra.mxu0 0
      %1393 = vmatprep.subr.bf16.mxu0 0
      %1394 = vmatpush1.bf16.msra.mxu0 0
      %1395 = vmatprep.mubr.bf16.mxu0 0
      %1396 = vmatmul.mubr.bf16.gmra.mrb[0].mxu0 %v1309
      %v1397 = vpop.f32.mrb[0].mxu0
      %v1398 = vadd.f32 0.0, %v1397
      %v1399 = vpop.f32.mrb[0].mxu0
      %v1400 = vpop.f32.mrb[0].mxu0
      %v1401 = vadd.f32 0.0, %v1400
      %v1402 = vpop.f32.mrb[0].mxu0
      %1403 = vmatprep.mubr.bf16.mxu0 0
      %1404 = vmatmul.mubr.bf16.gmra.mrb[0].mxu0 %v1311
      %v1405 = vpop.f32.mrb[0].mxu0
      %v1406 = vadd.f32 0.0, %v1405
      %v1407 = vpop.f32.mrb[0].mxu0
      %v1408 = vpop.f32.mrb[0].mxu0
      %v1409 = vadd.f32 0.0, %v1408
      %v1410 = vpop.f32.mrb[0].mxu0
      %1411 = vmatprep.mubr.bf16.mxu0 0
      %1412 = vmatmul.mubr.bf16.gmra.mrb[0].mxu0 %v1310
      %v1413 = vpop.f32.mrb[0].mxu0
      %v1414 = vadd.f32 0.0, %v1413
      %v1415 = vpop.f32.mrb[0].mxu0
      %v1416 = vpop.f32.mrb[0].mxu0
      %v1417 = vpop.f32.mrb[0].mxu0
      %1418 = vdwg.mxu0
      %v1419 = vadd.f32 %v1280, %v1398
      %v1420 = vadd.f32 %v1281, %v1401
      %v1421 = vadd.f32 %v1282, %v1406
      %v1422 = vadd.f32 %v1283, %v1409
      %v1423 = vadd.f32 %v1284, %v1414
      %v1424 = vld [vmem:[#allocation2 + $0x18] sm:$0x7f]
      %s1425 = scalar_lea.vmem %s351, 448
      %v1426 = vld [vmem:[%s1425] sm:$0xf]
      %v1427 = vld [vmem:[%s1425 + $0x4] sm:$0xf]
      %v1428 = vld [vmem:[%s1425 + $0x8] sm:$0xf]
      %v1429 = vld [vmem:[%s1425 + $0xc] sm:$0xf]
      %v1430 = vld [vmem:[%s1425 + $0x10] sm:$0xf]
      %v1431 = vld [vmem:[%s1425 + $0x14] sm:$0xf]
      %v1432 = vld [vmem:[%s1425 + $0x18] sm:$0xf]
      %v1433 = vld [vmem:[%s1425 + $0x1c] sm:$0xf]
      %v1434 = vld [vmem:[%s1425 + $0x20] sm:$0xf]
      %v1435 = vld [vmem:[%s1425 + $0x24] sm:$0xf]
      %v1436 = vld [vmem:[%s1425 + $0x28] sm:$0xf]
      %v1437 = vld [vmem:[%s1425 + $0x2c] sm:$0xf]
      %v1438 = vld [vmem:[%s1425 + $0x30] sm:$0xf]
      %v1439 = vld [vmem:[%s1425 + $0x34] sm:$0xf]
      %v1440 = vld [vmem:[%s1425 + $0x38] sm:$0xf]
      %v1441 = vld [vmem:[%s1425 + $0x3c] sm:$0xf]
      %vm1442 = vsmask.f32 5376
      %v1444 = vshrl.u32 %v1285, 16
      %v1446 = vrot.slane %v1444, 2
      %v1447 = vshll.u32 %v1285, 16
      %v1449 = vrot.slane %v1447, 3
      %v1450 = vor.u32 %v1446, %v1449
      %v1451 = vrot.slane %v1016, 2
      %v1452 = vrot.slane %v1019, 3
      %v1453 = vor.u32 %v1451, %v1452
      %v1454 = vsel %vm1442, %v1450, %v1453
      %v1456 = vshrl.u32 %v1424, 16
      %v1458 = vrot.slane %v1456, 2
      %v1459 = vshll.u32 %v1424, 16
      %v1461 = vrot.slane %v1459, 3
      %v1462 = vor.u32 %v1458, %v1461
      %v1463 = vsel %vm1442, %v1453, %v1462
      %v1483 = vunpack.c.l.b16 %v1426
      %v1484 = vunpack.c.l.b16 %v1427
      %v1485 = vunpack.c.l.b16 %v1428
      %v1486 = vunpack.c.l.b16 %v1429
      %v1487 = vunpack.c.l.b16 %v1430
      %v1488 = vunpack.c.l.b16 %v1431
      %v1489 = vunpack.c.l.b16 %v1432
      %v1490 = vunpack.c.l.b16 %v1433
      %v1491 = vunpack.c.l.b16 %v1434
      %v1492 = vunpack.c.l.b16 %v1435
      %v1493 = vunpack.c.l.b16 %v1436
      %v1494 = vunpack.c.l.b16 %v1437
      %v1495 = vunpack.c.l.b16 %v1438
      %v1496 = vunpack.c.l.b16 %v1439
      %v1497 = vunpack.c.l.b16 %v1440
      %v1498 = vunpack.c.l.b16 %v1441
      %v1499 = vpack.c.b16 %v1484, %v1483
      %v1500 = vpack.c.b16 %v1486, %v1485
      %v1501 = vpack.c.b16 %v1488, %v1487
      %v1502 = vpack.c.b16 %v1490, %v1489
      %v1503 = vpack.c.b16 %v1492, %v1491
      %v1504 = vpack.c.b16 %v1494, %v1493
      %v1505 = vpack.c.b16 %v1496, %v1495
      %v1506 = vpack.c.b16 %v1498, %v1497
      %1515 = vmatprep.subr.bf16.mxu0 0
      %1516 = vmatpush1.bf16.msra.mxu0 %v1499
      %1517 = vmatprep.subr.bf16.mxu0 0
      %1518 = vmatpush1.bf16.msra.mxu0 %v1500
      %1519 = vmatprep.subr.bf16.mxu0 0
      %1520 = vmatpush1.bf16.msra.mxu0 %v1501
      %1521 = vmatprep.subr.bf16.mxu0 0
      %1522 = vmatpush1.bf16.msra.mxu0 %v1502
      %1523 = vmatprep.subr.bf16.mxu0 0
      %1524 = vmatpush1.bf16.msra.mxu0 %v1503
      %1525 = vmatprep.subr.bf16.mxu0 0
      %1526 = vmatpush1.bf16.msra.mxu0 %v1504
      %1527 = vmatprep.subr.bf16.mxu0 0
      %1528 = vmatpush1.bf16.msra.mxu0 %v1505
      %1529 = vmatprep.subr.bf16.mxu0 0
      %1530 = vmatpush1.bf16.msra.mxu0 %v1506
      %1531 = vmatprep.subr.bf16.mxu0 0
      %1532 = vmatpush1.bf16.msra.mxu0 0
      %1533 = vmatprep.subr.bf16.mxu0 0
      %1534 = vmatpush1.bf16.msra.mxu0 0
      %1535 = vmatprep.subr.bf16.mxu0 0
      %1536 = vmatpush1.bf16.msra.mxu0 0
      %1537 = vmatprep.subr.bf16.mxu0 0
      %1538 = vmatpush1.bf16.msra.mxu0 0
      %1539 = vmatprep.subr.bf16.mxu0 0
      %1540 = vmatpush1.bf16.msra.mxu0 0
      %1541 = vmatprep.subr.bf16.mxu0 0
      %1542 = vmatpush1.bf16.msra.mxu0 0
      %1543 = vmatprep.subr.bf16.mxu0 0
      %1544 = vmatpush1.bf16.msra.mxu0 0
      %1545 = vmatprep.subr.bf16.mxu0 0
      %1546 = vmatpush1.bf16.msra.mxu0 0
      %1547 = vmatprep.mubr.bf16.mxu0 0
      %1548 = vmatmul.mubr.bf16.gmra.mrb[0].mxu0 %v1454
      %v1549 = vpop.f32.mrb[0].mxu0
      %v1550 = vadd.f32 0.0, %v1549
      %v1551 = vpop.f32.mrb[0].mxu0
      %v1552 = vpop.f32.mrb[0].mxu0
      %v1553 = vadd.f32 0.0, %v1552
      %v1554 = vpop.f32.mrb[0].mxu0
      %1555 = vmatprep.mubr.bf16.mxu0 0
      %1556 = vmatmul.mubr.bf16.gmra.mrb[0].mxu0 %v1463
      %v1557 = vpop.f32.mrb[0].mxu0
      %v1558 = vadd.f32 0.0, %v1557
      %v1559 = vpop.f32.mrb[0].mxu0
      %v1560 = vpop.f32.mrb[0].mxu0
      %v1561 = vadd.f32 0.0, %v1560
      %v1562 = vpop.f32.mrb[0].mxu0
      %1563 = vmatprep.mubr.bf16.mxu0 0
      %1564 = vmatmul.mubr.bf16.gmra.mrb[0].mxu0 %v1462
      %v1565 = vpop.f32.mrb[0].mxu0
      %v1566 = vadd.f32 0.0, %v1565
      %v1567 = vpop.f32.mrb[0].mxu0
      %v1568 = vpop.f32.mrb[0].mxu0
      %v1569 = vpop.f32.mrb[0].mxu0
      %1570 = vdwg.mxu0
      %v1571 = vadd.f32 %v1419, %v1550
      %v1572 = vadd.f32 %v1420, %v1553
      %v1573 = vadd.f32 %v1421, %v1558
      %v1574 = vadd.f32 %v1422, %v1561
      %v1575 = vadd.f32 %v1423, %v1566
      %v1576 = vld [vmem:[#allocation2 + $0x8] sm:$0xf8]
      %s1577 = scalar_lea.vmem %s351, 512
      %v1578 = vld [vmem:[%s1577] sm:$0xf]
      %v1579 = vld [vmem:[%s1577 + $0x4] sm:$0xf]
      %v1580 = vld [vmem:[%s1577 + $0x8] sm:$0xf]
      %v1581 = vld [vmem:[%s1577 + $0xc] sm:$0xf]
      %v1582 = vld [vmem:[%s1577 + $0x10] sm:$0xf]
      %v1583 = vld [vmem:[%s1577 + $0x14] sm:$0xf]
      %v1584 = vld [vmem:[%s1577 + $0x18] sm:$0xf]
      %v1585 = vld [vmem:[%s1577 + $0x1c] sm:$0xf]
      %v1586 = vld [vmem:[%s1577 + $0x20] sm:$0xf]
      %v1587 = vld [vmem:[%s1577 + $0x24] sm:$0xf]
      %v1588 = vld [vmem:[%s1577 + $0x28] sm:$0xf]
      %v1589 = vld [vmem:[%s1577 + $0x2c] sm:$0xf]
      %v1590 = vld [vmem:[%s1577 + $0x30] sm:$0xf]
      %v1591 = vld [vmem:[%s1577 + $0x34] sm:$0xf]
      %v1592 = vld [vmem:[%s1577 + $0x38] sm:$0xf]
      %v1593 = vld [vmem:[%s1577 + $0x3c] sm:$0xf]
      %vm1596 = vcmask 1044480
      %v1597 = vrot.slane %v1576, 3
      %v1598 = vrot.slane %v836, 3
      %v1599 = vsel %vm1596, %v1597, %v1598
      %v1600 = vrot.slane %v1424, 3
      %v1601 = vsel %vm1596, %v1598, %v1600
      %v1621 = vunpack.c.l.b16 %v1578
      %v1622 = vunpack.c.l.b16 %v1579
      %v1623 = vunpack.c.l.b16 %v1580
      %v1624 = vunpack.c.l.b16 %v1581
      %v1625 = vunpack.c.l.b16 %v1582
      %v1626 = vunpack.c.l.b16 %v1583
      %v1627 = vunpack.c.l.b16 %v1584
      %v1628 = vunpack.c.l.b16 %v1585
      %v1629 = vunpack.c.l.b16 %v1586
      %v1630 = vunpack.c.l.b16 %v1587
      %v1631 = vunpack.c.l.b16 %v1588
      %v1632 = vunpack.c.l.b16 %v1589
      %v1633 = vunpack.c.l.b16 %v1590
      %v1634 = vunpack.c.l.b16 %v1591
      %v1635 = vunpack.c.l.b16 %v1592
      %v1636 = vunpack.c.l.b16 %v1593
      %v1637 = vpack.c.b16 %v1622, %v1621
      %v1638 = vpack.c.b16 %v1624, %v1623
      %v1639 = vpack.c.b16 %v1626, %v1625
      %v1640 = vpack.c.b16 %v1628, %v1627
      %v1641 = vpack.c.b16 %v1630, %v1629
      %v1642 = vpack.c.b16 %v1632, %v1631
      %v1643 = vpack.c.b16 %v1634, %v1633
      %v1644 = vpack.c.b16 %v1636, %v1635
      %1653 = vmatprep.subr.bf16.mxu0 0
      %1654 = vmatpush1.bf16.msra.mxu0 %v1637
      %1655 = vmatprep.subr.bf16.mxu0 0
      %1656 = vmatpush1.bf16.msra.mxu0 %v1638
      %1657 = vmatprep.subr.bf16.mxu0 0
      %1658 = vmatpush1.bf16.msra.mxu0 %v1639
      %1659 = vmatprep.subr.bf16.mxu0 0
      %1660 = vmatpush1.bf16.msra.mxu0 %v1640
      %1661 = vmatprep.subr.bf16.mxu0 0
      %1662 = vmatpush1.bf16.msra.mxu0 %v1641
      %1663 = vmatprep.subr.bf16.mxu0 0
      %1664 = vmatpush1.bf16.msra.mxu0 %v1642
      %1665 = vmatprep.subr.bf16.mxu0 0
      %1666 = vmatpush1.bf16.msra.mxu0 %v1643
      %1667 = vmatprep.subr.bf16.mxu0 0
      %1668 = vmatpush1.bf16.msra.mxu0 %v1644
      %1669 = vmatprep.subr.bf16.mxu0 0
      %1670 = vmatpush1.bf16.msra.mxu0 0
      %1671 = vmatprep.subr.bf16.mxu0 0
      %1672 = vmatpush1.bf16.msra.mxu0 0
      %1673 = vmatprep.subr.bf16.mxu0 0
      %1674 = vmatpush1.bf16.msra.mxu0 0
      %1675 = vmatprep.subr.bf16.mxu0 0
      %1676 = vmatpush1.bf16.msra.mxu0 0
      %1677 = vmatprep.subr.bf16.mxu0 0
      %1678 = vmatpush1.bf16.msra.mxu0 0
      %1679 = vmatprep.subr.bf16.mxu0 0
      %1680 = vmatpush1.bf16.msra.mxu0 0
      %1681 = vmatprep.subr.bf16.mxu0 0
      %1682 = vmatpush1.bf16.msra.mxu0 0
      %1683 = vmatprep.subr.bf16.mxu0 0
      %1684 = vmatpush1.bf16.msra.mxu0 0
      %1685 = vmatprep.mubr.bf16.mxu0 0
      %1686 = vmatmul.mubr.bf16.gmra.mrb[0].mxu0 %v1599
      %v1687 = vpop.f32.mrb[0].mxu0
      %v1688 = vadd.f32 0.0, %v1687
      %v1689 = vpop.f32.mrb[0].mxu0
      %v1690 = vpop.f32.mrb[0].mxu0
      %v1691 = vadd.f32 0.0, %v1690
      %v1692 = vpop.f32.mrb[0].mxu0
      %1693 = vmatprep.mubr.bf16.mxu0 0
      %1694 = vmatmul.mubr.bf16.gmra.mrb[0].mxu0 %v1601
      %v1695 = vpop.f32.mrb[0].mxu0
      %v1696 = vadd.f32 0.0, %v1695
      %v1697 = vpop.f32.mrb[0].mxu0
      %v1698 = vpop.f32.mrb[0].mxu0
      %v1699 = vadd.f32 0.0, %v1698
      %v1700 = vpop.f32.mrb[0].mxu0
      %1701 = vmatprep.mubr.bf16.mxu0 0
      %1702 = vmatmul.mubr.bf16.gmra.mrb[0].mxu0 %v1600
      %v1703 = vpop.f32.mrb[0].mxu0
      %v1704 = vadd.f32 0.0, %v1703
      %v1705 = vpop.f32.mrb[0].mxu0
      %v1706 = vpop.f32.mrb[0].mxu0
      %v1707 = vpop.f32.mrb[0].mxu0
      %1708 = vdwg.mxu0
      %v1709 = vadd.f32 %v1571, %v1688
      %v1710 = vadd.f32 %v1572, %v1691
      %v1711 = vadd.f32 %v1573, %v1696
      %v1712 = vadd.f32 %v1574, %v1699
      %v1713 = vadd.f32 %v1575, %v1704
      %v1714 = vld [vmem:[%s354] sm:$0x1]
      %v1716 = vlaneseq
      %v1717 = vshrl.u32 %v1716, 7
      %v1718 = vsub.s32 0, %v1717
      %v1719 = vrot.slane %v1714, %v1718
      %v1721 = vadd.f32 %v1709, %v1719
      %v1722 = vadd.f32 %v1710, %v1719
      %v1723 = vadd.f32 %v1711, %v1719
      %v1724 = vadd.f32 %v1712, %v1719
      %v1725 = vadd.f32 %v1713, %v1719
      %v1726 = vld [vmem:[%s359] sm:$0xf]
      %v1727 = vld [vmem:[%s359 + $0x4] sm:$0xf]
      %v1728 = vld [vmem:[%s359 + $0x8] sm:$0xf]
      %v1729 = vld [vmem:[%s359 + $0xc] sm:$0xf]
      %v1730 = vld [vmem:[%s359 + $0x10] sm:$0xf]
      %v1731 = vld [vmem:[%s364] sm:$0xf]
      %v1732 = vld [vmem:[%s364 + $0x4] sm:$0xf]
      %v1733 = vld [vmem:[%s364 + $0x8] sm:$0xf]
      %v1734 = vld [vmem:[%s364 + $0xc] sm:$0xf]
      %v1735 = vld [vmem:[%s364 + $0x10] sm:$0xf]
      %v1736 = vld [vmem:[%s364 + $0x14] sm:$0xf]
      %v1737 = vld [vmem:[%s364 + $0x18] sm:$0xf]
      %v1738 = vld [vmem:[%s364 + $0x1c] sm:$0xf]
      %v1739 = vld [vmem:[%s364 + $0x20] sm:$0xf]
      %v1740 = vld [vmem:[%s364 + $0x24] sm:$0xf]
      %v1741 = vld [vmem:[%s364 + $0x28] sm:$0xf]
      %v1742 = vld [vmem:[%s364 + $0x2c] sm:$0xf]
      %v1743 = vld [vmem:[%s364 + $0x30] sm:$0xf]
      %v1744 = vld [vmem:[%s364 + $0x34] sm:$0xf]
      %v1745 = vld [vmem:[%s364 + $0x38] sm:$0xf]
      %v1746 = vld [vmem:[%s364 + $0x3c] sm:$0xf]
      %v1752 = vunpack.c.l.b16 %v1726
      %v1753 = vunpack.c.l.b16 %v1727
      %v1754 = vunpack.c.l.b16 %v1728
      %v1755 = vunpack.c.l.b16 %v1729
      %v1756 = vunpack.c.l.b16 %v1730
      %v1757 = vpack.c.b16 %v1753, %v1752
      %v1758 = vpack.c.b16 %v1755, %v1754
      %v1759 = vpack.c.b16 %v1756, %v1756
      %v1779 = vunpack.c.l.b16 %v1731
      %v1780 = vunpack.c.l.b16 %v1732
      %v1781 = vunpack.c.l.b16 %v1733
      %v1782 = vunpack.c.l.b16 %v1734
      %v1783 = vunpack.c.l.b16 %v1735
      %v1784 = vunpack.c.l.b16 %v1736
      %v1785 = vunpack.c.l.b16 %v1737
      %v1786 = vunpack.c.l.b16 %v1738
      %v1787 = vunpack.c.l.b16 %v1739
      %v1788 = vunpack.c.l.b16 %v1740
      %v1789 = vunpack.c.l.b16 %v1741
      %v1790 = vunpack.c.l.b16 %v1742
      %v1791 = vunpack.c.l.b16 %v1743
      %v1792 = vunpack.c.l.b16 %v1744
      %v1793 = vunpack.c.l.b16 %v1745
      %v1794 = vunpack.c.l.b16 %v1746
      %v1795 = vpack.c.b16 %v1780, %v1779
      %v1796 = vpack.c.b16 %v1782, %v1781
      %v1797 = vpack.c.b16 %v1784, %v1783
      %v1798 = vpack.c.b16 %v1786, %v1785
      %v1799 = vpack.c.b16 %v1788, %v1787
      %v1800 = vpack.c.b16 %v1790, %v1789
      %v1801 = vpack.c.b16 %v1792, %v1791
      %v1802 = vpack.c.b16 %v1794, %v1793
      %1811 = vmatprep.subr.bf16.mxu0 0
      %1812 = vmatpush1.bf16.msra.mxu0 %v1795
      %1813 = vmatprep.subr.bf16.mxu0 0
      %1814 = vmatpush1.bf16.msra.mxu0 %v1796
      %1815 = vmatprep.subr.bf16.mxu0 0
      %1816 = vmatpush1.bf16.msra.mxu0 %v1797
      %1817 = vmatprep.subr.bf16.mxu0 0
      %1818 = vmatpush1.bf16.msra.mxu0 %v1798
      %1819 = vmatprep.subr.bf16.mxu0 0
      %1820 = vmatpush1.bf16.msra.mxu0 %v1799
      %1821 = vmatprep.subr.bf16.mxu0 0
      %1822 = vmatpush1.bf16.msra.mxu0 %v1800
      %1823 = vmatprep.subr.bf16.mxu0 0
      %1824 = vmatpush1.bf16.msra.mxu0 %v1801
      %1825 = vmatprep.subr.bf16.mxu0 0
      %1826 = vmatpush1.bf16.msra.mxu0 %v1802
      %1827 = vmatprep.subr.bf16.mxu0 0
      %1828 = vmatpush1.bf16.msra.mxu0 0
      %1829 = vmatprep.subr.bf16.mxu0 0
      %1830 = vmatpush1.bf16.msra.mxu0 0
      %1831 = vmatprep.subr.bf16.mxu0 0
      %1832 = vmatpush1.bf16.msra.mxu0 0
      %1833 = vmatprep.subr.bf16.mxu0 0
      %1834 = vmatpush1.bf16.msra.mxu0 0
      %1835 = vmatprep.subr.bf16.mxu0 0
      %1836 = vmatpush1.bf16.msra.mxu0 0
      %1837 = vmatprep.subr.bf16.mxu0 0
      %1838 = vmatpush1.bf16.msra.mxu0 0
      %1839 = vmatprep.subr.bf16.mxu0 0
      %1840 = vmatpush1.bf16.msra.mxu0 0
      %1841 = vmatprep.subr.bf16.mxu0 0
      %1842 = vmatpush1.bf16.msra.mxu0 0
      %1843 = vmatprep.mubr.bf16.mxu0 0
      %1844 = vmatmul.mubr.bf16.gmra.mrb[0].mxu0 %v1757
      %v1845 = vpop.f32.mrb[0].mxu0
      %v1846 = vadd.f32 0.0, %v1845
      %v1847 = vpop.f32.mrb[0].mxu0
      %v1848 = vpop.f32.mrb[0].mxu0
      %v1849 = vadd.f32 0.0, %v1848
      %v1850 = vpop.f32.mrb[0].mxu0
      %1851 = vmatprep.mubr.bf16.mxu0 0
      %1852 = vmatmul.mubr.bf16.gmra.mrb[0].mxu0 %v1758
      %v1853 = vpop.f32.mrb[0].mxu0
      %v1854 = vadd.f32 0.0, %v1853
      %v1855 = vpop.f32.mrb[0].mxu0
      %v1856 = vpop.f32.mrb[0].mxu0
      %v1857 = vadd.f32 0.0, %v1856
      %v1858 = vpop.f32.mrb[0].mxu0
      %1859 = vmatprep.mubr.bf16.mxu0 0
      %1860 = vmatmul.mubr.bf16.gmra.mrb[0].mxu0 %v1759
      %v1861 = vpop.f32.mrb[0].mxu0
      %v1862 = vadd.f32 0.0, %v1861
      %v1863 = vpop.f32.mrb[0].mxu0
      %v1864 = vpop.f32.mrb[0].mxu0
      %v1865 = vpop.f32.mrb[0].mxu0
      %1866 = vdwg.mxu0
      %v1867 = vadd.f32 %v1721, %v1846
      %v1868 = vadd.f32 %v1722, %v1849
      %v1869 = vadd.f32 %v1723, %v1854
      %v1870 = vadd.f32 %v1724, %v1857
      %v1871 = vadd.f32 %v1725, %v1862
      %v1872 = vmax.f32 %v1867, 0.0
      %v1873 = vmax.f32 %v1868, 0.0
      %v1874 = vmax.f32 %v1869, 0.0
      %v1875 = vmax.f32 %v1870, 0.0
      %v1876 = vmax.f32 %v1871, 0.0
      %1877 = vst [vmem:[%s372] sm:$0xff] %v1872
      %1878 = vst [vmem:[%s372 + $0x8] sm:$0xff] %v1873
      %1879 = vst [vmem:[%s372 + $0x10] sm:$0xff] %v1874
      %1880 = vst [vmem:[%s372 + $0x18] sm:$0xff] %v1875
      %1881 = vst [vmem:[%s372 + $0x20] sm:$0xff] %v1876
      %s1882 = smul.u32 5, %s21
      %p1883 = scmp.lt.s32.totalorder %s1882, 24
      %s1884 = scalar_select %p1883, %s1882, 24
      %p1885 = scmp.lt.s32.totalorder %s22, 0
      %s1886 = scalar_select %p1885, %s22, 0
      %s1887 = sadd.s32 %s1886, %s1884
      %s1888 = smul.addr %s1887, 8
      %s1889 = scalar_lea.vmem %s6, %s1888
      // Predicated region
      $region45: #{basic_block_forward.3} parent=43 // pred_check
        %p1890 = pneg %p207
      $region46: #{basic_block_forward.3} parent=43 // pred_check_branch
        %1892 = sbr.rel (%p1890) target = $region48
      $region47: #{basic_block_forward.3} parent=43 // pred_region
        %s1893 = smul.u32 5, %s21
      $region48: #{basic_block_forward.3} parent=43 // pred_fallthru
        _
    $region44: #{basic_block_forward.3} parent=5 // pred_fallthru
      _
    %p1894 = scmp.le.s32.totalorder 2, %s12
    // Predicated region
    $region49: #{basic_block_forward.3} parent=5 // pred_check
      %p1895 = pneg %p1894
    $region50: #{basic_block_forward.3} parent=5 // pred_check_branch
      %1897 = sbr.rel (%p1895) target = $region52
    $region51: #{basic_block_forward.3} parent=5 // pred_region
      %s1898 = ssub.s32 %s12, 2
      // Predicated region
      $region53: #{basic_block_forward.3} parent=51 // pred_check
        %p1899 = pneg %p213
      $region54: #{basic_block_forward.3} parent=51 // pred_check_branch
        %1901 = sbr.rel (%p1899) target = $region56
      $region55: #{basic_block_forward.3} parent=51 // pred_region
        %s1902 = smul.u32 5, %s23
        %p1903 = scmp.lt.s32.totalorder %s1902, 24
        %s1904 = scalar_select %p1903, %s1902, 24
        %p1905 = scmp.lt.s32.totalorder %s24, 0
        %s1906 = scalar_select %p1905, %s24, 0
        %s1907 = sadd.s32 %s1906, %s1904
        %s1908 = smul.addr %s1907, 8
        %s1909 = scalar_lea.vmem %s6, %s1908
      $region56: #{basic_block_forward.3} parent=51 // pred_fallthru
        _
    $region52: #{basic_block_forward.3} parent=5 // pred_fallthru
      _
  $region6: #{basic_block_forward.3} parent=0 // loop_footer
    %s16 = sadd.s32 1, %s12
  $region7: #{basic_block_forward.3} parent=0 // loop_footer_branch
    %11 = sbr.rel target = $region3
  $region8: #{basic_block_forward.3} parent=0 // loop_exit
    _

</llo_original>
